<compile_context>
chip_gen: v7x
topology: tpu7x:2x2x1
jax: 0.10.0
libtpu: 0.0.40
codegen_flags: <defaults>
</compile_context>

<pallas_src>
import math
import functools

import jax
import jax.numpy as jnp
from jax import lax
from jax.experimental import pallas as pl
from jax.experimental.pallas import tpu as pltpu


# --------------------------- in_proj: row-tiled matmul, 2 outputs ---------------------------

def _inproj_kernel(x_ref, wx_ref, wz_ref, xo_ref, zo_ref):
    x = x_ref[...]                                          # (tm, dm) bf16
    xo_ref[...] = jnp.dot(x, wx_ref[...],
                          preferred_element_type=jnp.float32).astype(xo_ref.dtype)
    zo_ref[...] = jnp.dot(x, wz_ref[...],
                          preferred_element_type=jnp.float32).astype(zo_ref.dtype)


def in_proj(x, w, tm=512):
    """(M, dm) @ (dm, 2*de) -> two separate lane-dense bf16 outputs (xc, z)."""
    M, dm = x.shape
    de = w.shape[1] // 2
    tm = min(tm, M)
    x = x.astype(jnp.bfloat16)
    wx = w[:, :de].astype(jnp.bfloat16)
    wz = w[:, de:].astype(jnp.bfloat16)
    return pl.pallas_call(
        _inproj_kernel,
        out_shape=(jax.ShapeDtypeStruct((M, de), jnp.bfloat16),
                   jax.ShapeDtypeStruct((M, de), jnp.bfloat16)),
        grid=(pl.cdiv(M, tm),),
        in_specs=[
            pl.BlockSpec((tm, dm), lambda i: (i, 0)),
            pl.BlockSpec((dm, de), lambda i: (0, 0)),
            pl.BlockSpec((dm, de), lambda i: (0, 0)),
        ],
        out_specs=[
            pl.BlockSpec((tm, de), lambda i: (i, 0)),
            pl.BlockSpec((tm, de), lambda i: (i, 0)),
        ],
        compiler_params=pltpu.CompilerParams(
            dimension_semantics=("parallel",)),
    )(x, wx, wz)


# --------------------------- depthwise 3x3 conv + SiLU ---------------------------

def _dwconv_silu_kernel(x_ref, w_ref, b_ref, o_ref, xp_sc):
    # x_ref: (1, H, W, C) bf16, w_ref: (3, 3, C) f32, b_ref: (1, 1, C) f32
    # xp_sc: (H+2, W+2, C) bf16 scratch; zero-padding done here (no jnp.pad HBM pass).
    _, H, W, C = x_ref.shape
    xp_sc[...] = jnp.zeros_like(xp_sc)
    xp_sc[1:H + 1, 1:W + 1, :] = x_ref[0]
    acc = jnp.zeros((H, W, C), jnp.float32)
    # TODO(synk): for large H*W tile over row-bands with a 1-row halo and use
    # pltpu.roll for the dj shifts instead of unaligned sublane slices.
    for di in range(3):
        for dj in range(3):
            acc = acc + xp_sc[di:di + H, dj:dj + W, :].astype(jnp.float32) * \
                  w_ref[di:di + 1, dj:dj + 1, :]
    acc = acc + b_ref[...]
    o_ref[0] = (acc * jax.nn.sigmoid(acc)).astype(o_ref.dtype)   # SiLU


def dwconv_silu(x_nhwc, w3, bias):
    B, H, W, C = x_nhwc.shape
    return pl.pallas_call(
        _dwconv_silu_kernel,
        out_shape=jax.ShapeDtypeStruct((B, H, W, C), jnp.bfloat16),
        grid=(B,),
        in_specs=[
            pl.BlockSpec((1, H, W, C), lambda b: (b, 0, 0, 0)),
            pl.BlockSpec((3, 3, C), lambda b: (0, 0, 0)),
            pl.BlockSpec((1, 1, C), lambda b: (0, 0, 0)),
        ],
        out_specs=pl.BlockSpec((1, H, W, C), lambda b: (b, 0, 0, 0)),
        scratch_shapes=[pltpu.VMEM((H + 2, W + 2, C), jnp.bfloat16)],
        compiler_params=pltpu.CompilerParams(
            dimension_semantics=("parallel",)),
    )(x_nhwc.astype(jnp.bfloat16), w3, bias)


# ------------------------ selective scan (lane-dense layout) ----------------------

def _scan_kernel(xs_ref, w_ref, dtb_ref, At_ref, Ds_ref, o_ref,
                 h_sc, decay_sc, inp_sc, cb_sc, *, N, D, sub):
    # Per (batch, direction, L-chunk) tile, activations with D on lanes:
    #   xs_ref  : (1, 1, Lc, D) bf16 input u chunk
    #   w_ref   : (1, D, D+2N)  bf16 fused [x_proj_dt@dt_proj | x_proj_B | x_proj_C]
    #   dtb_ref : (1, 1, D)  delta bias
    #   At_ref  : (1, N, D)  A^T = -exp(A_log)^T
    #   Ds_ref  : (1, 1, D)  skip D
    chunk = pl.program_id(2)
    Lc = xs_ref.shape[2]

    @pl.when(chunk == 0)
    def _():
        h_sc[...] = jnp.zeros_like(h_sc)          # recurrent state (N, D), reset per (b,k)

    u_bf = xs_ref[0, 0]                           # (Lc, D) bf16
    u = u_bf.astype(jnp.float32)

    # One fused full-width MXU projection for the whole chunk: [dt | B | C].
    proj = jnp.dot(u_bf, w_ref[0], preferred_element_type=jnp.float32)   # (Lc, D+2N)
    dt = jax.nn.softplus(proj[:, :D] + dtb_ref[0])                       # delta_softplus
    Bs = proj[:, D:D + N]                                                # (Lc, N)
    Cs = proj[:, D + N:D + 2 * N]                                        # (Lc, N)

    At = At_ref[0]                                                       # (N, D)

    # Batched precompute (EUP exp + lane broadcasts hoisted off the serial chain).
    decay_sc[...] = jnp.exp(dt[:, None, :] * At[None, :, :])             # (Lc, N, D)
    inp_sc[...] = (dt * u)[:, None, :] * Bs[:, :, None]                  # (Lc, N, D)
    cb_sc[...] = jnp.broadcast_to(Cs[:, :, None], (Lc, N, D))            # (Lc, N, D)

    Dskip = Ds_ref[0]                                                    # (1, D)

    # Serial recurrence: h carried in vregs, y stored `sub` rows at a time.
    # TODO(synk): sweep `sub` in {2,4,8} and check vreg spills (ld/st slot_util).
    def block_body(blk, h):
        base = pl.multiple_of(blk * sub, sub)
        rows = []
        for s in range(sub):
            l = base + s
            h = decay_sc[l] * h + inp_sc[l]                              # (N, D)
            rows.append(jnp.sum(h * cb_sc[l], axis=0, keepdims=True))    # (1, D)
        yblk = jnp.concatenate(rows, axis=0)                             # (sub, D)
        ublk = xs_ref[0, 0, pl.ds(base, sub), :].astype(jnp.float32)
        o_ref[0, 0, pl.ds(base, sub), :] = (yblk + Dskip * ublk).astype(o_ref.dtype)
        return h

    h = lax.fori_loop(0, Lc // sub, block_body, h_sc[...])
    h_sc[...] = h                                 # persist state across chunks only


def _pick_chunk(L, N, D, budget_bytes=12 * 1024 * 1024):
    # 3 x (Lc, N, D) f32 scratch dominates; keep it well under the 32 MiB scoped
    # VMEM default (v7x physical is 64 MiB) so the auto-pipeline keeps
    # double-buffering the (Lc, D) IO blocks.
    Dp = ((D + 127) // 128) * 128                 # lane-padded width actually allocated
    max_lc = max(8, budget_bytes // (3 * 4 * N * Dp))
    max_lc = int(min(max_lc, 512))
    if L <= max_lc:
        return L
    best = 0
    c = 8
    while c <= max_lc:
        if L % c == 0:
            best = c
        c += 8
    return best if best > 0 else L                # TODO(synk): pad L for awkward sizes


def _pick_sub(Lc):
    for s in (8, 4, 2):
        if Lc % s == 0:
            return s
    return 1


def selective_scan_pallas(xs, w_full, dt_b, A_t, Ds_t):
    # TODO(synk): for de < 128 pack the K=4 directions along the lane axis
    # (h: (N, 4*de)) to fill vregs and quarter the serial step count.
    B, K, L, D = xs.shape
    N = A_t.shape[1]
    W2 = w_full.shape[-1]                         # D + 2N
    Lc = _pick_chunk(L, N, D)
    n_chunks = L // Lc
    sub = _pick_sub(Lc)
    kernel = functools.partial(_scan_kernel, N=N, D=D, sub=sub)
    return pl.pallas_call(
        kernel,
        out_shape=jax.ShapeDtypeStruct((B, K, L, D), jnp.bfloat16),
        grid=(B, K, n_chunks),
        in_specs=[
            pl.BlockSpec((1, 1, Lc, D), lambda b, k, c: (b, k, c, 0)),
            pl.BlockSpec((1, D, W2), lambda b, k, c: (k, 0, 0)),
            pl.BlockSpec((1, 1, D), lambda b, k, c: (k, 0, 0)),
            pl.BlockSpec((1, N, D), lambda b, k, c: (k, 0, 0)),
            pl.BlockSpec((1, 1, D), lambda b, k, c: (k, 0, 0)),
        ],
        out_specs=pl.BlockSpec((1, 1, Lc, D), lambda b, k, c: (b, k, c, 0)),
        scratch_shapes=[
            pltpu.VMEM((N, D), jnp.float32),      # h state (carried across chunks)
            pltpu.VMEM((Lc, N, D), jnp.float32),  # decay = exp(dt * A^T)
            pltpu.VMEM((Lc, N, D), jnp.float32),  # inp   = dt*u * B
            pltpu.VMEM((Lc, N, D), jnp.float32),  # C broadcast over D
        ],
        compiler_params=pltpu.CompilerParams(
            # B and K are independent (h_sc re-zeroed at chunk==0); only the
            # chunk axis carries state -> lets v7x shard B*K across its 2 TCs.
            dimension_semantics=("parallel", "parallel", "arbitrary")),
    )(xs, w_full, dt_b, A_t, Ds_t)


# ------------------- fused LayerNorm + gate + out_proj (tail) --------------------

def _tail_kernel(y_ref, z_ref, g_ref, b_ref, w_ref, o_ref, *, eps):
    y = y_ref[...].astype(jnp.float32)                        # (tm, de)
    mu = jnp.mean(y, axis=-1, keepdims=True)
    d = y - mu
    var = jnp.mean(d * d, axis=-1, keepdims=True)
    yn = d * lax.rsqrt(var + eps)
    yn = yn * g_ref[...] + b_ref[...]
    z = z_ref[...].astype(jnp.float32)
    yz = (yn * (z * jax.nn.sigmoid(z))).astype(w_ref.dtype)   # bf16 for MXU
    o_ref[...] = jnp.dot(yz, w_ref[...], preferred_element_type=jnp.float32)


def tail(y_flat, z_flat, ln_g, ln_b, w_out, eps=1e-5, tm=512):
    # TODO(synk): for d_model < 128 the output store is lane-masked; a packed
    # lane-dense output layout would avoid the vst.msk penalty.
    M, de = y_flat.shape
    dm = w_out.shape[1]
    tm = min(tm, M)
    w_out = w_out.astype(jnp.bfloat16)
    return pl.pallas_call(
        functools.partial(_tail_kernel, eps=eps),
        out_shape=jax.ShapeDtypeStruct((M, dm), jnp.float32),
        grid=(pl.cdiv(M, tm),),
        in_specs=[
            pl.BlockSpec((tm, de), lambda i: (i, 0)),
            pl.BlockSpec((tm, de), lambda i: (i, 0)),
            pl.BlockSpec((1, de), lambda i: (0, 0)),
            pl.BlockSpec((1, de), lambda i: (0, 0)),
            pl.BlockSpec((de, dm), lambda i: (0, 0)),
        ],
        out_specs=pl.BlockSpec((tm, dm), lambda i: (i, 0)),
        compiler_params=pltpu.CompilerParams(
            dimension_semantics=("parallel",)),
    )(y_flat, z_flat, ln_g, ln_b, w_out)


# ------------------------------ SS2D forward ------------------------------

def ss2d_forward(x, p):
    """x: (B, H, W, d_model), float32.  step_size = 2, d_conv = 3, K = 4."""
    B, H, W, dm = x.shape
    de = p["in_proj_w"].shape[1] // 2            # d_expand == d_inner
    R = p["dt_w"].shape[-1]
    N = p["A_logs"].shape[-1]
    assert H % 2 == 0 and W % 2 == 0             # TODO(synk): odd H/W zero-padding branch

    # ---- parameter prep: fold dt_proj into x_proj, fuse [dt|B|C], transpose, bf16 ----
    As = -jnp.exp(p["A_logs"])                   # (K, de, N)
    w_dt = jnp.einsum("krd,ker->kde", p["x_proj_w"][:, :R, :], p["dt_w"])       # (K, de, de)
    w_b = jnp.transpose(p["x_proj_w"][:, R:R + N, :], (0, 2, 1))                # (K, de, N)
    w_c = jnp.transpose(p["x_proj_w"][:, R + N:R + 2 * N, :], (0, 2, 1))        # (K, de, N)
    w_full = jnp.concatenate([w_dt, w_b, w_c], axis=-1).astype(jnp.bfloat16)    # (K, de, de+2N)
    dt_b = jnp.transpose(p["dt_b"], (0, 2, 1))   # (K, 1, de)
    A_t = jnp.transpose(As, (0, 2, 1))           # (K, N, de)
    Ds_t = jnp.transpose(p["Ds"], (0, 2, 1))     # (K, 1, de)

    # 1) in_proj: two separate lane-dense bf16 outputs (no lane-slice glue)
    xc, z = in_proj(x.reshape(B * H * W, dm), p["in_proj_w"])
    xc = xc.reshape(B, H, W, de)                 # z stays flat (M, de) for the tail

    # 2) depthwise conv + SiLU (z gets SiLU in the tail kernel)
    xc = dwconv_silu(xc, p["conv_w"], p["conv_b"])            # (B, H, W, de) bf16

    # 3) EfficientScan, step_size=2 (H, W even here), channel-last
    # TODO(synk): fold the stride-2 gather into the conv kernel (emit 4 streams)
    #    and defer EfficientMerge until after out_proj to kill these HBM glue
    #    passes (largest relative cost on v5e).
    Hp, Wp = H // 2, W // 2
    Lp = Hp * Wp
    x00 = xc[:, 0::2, 0::2, :].reshape(B, Lp, de)
    x10 = jnp.transpose(xc[:, 1::2, 0::2, :], (0, 2, 1, 3)).reshape(B, Lp, de)
    x01 = xc[:, 0::2, 1::2, :].reshape(B, Lp, de)
    x11 = jnp.transpose(xc[:, 1::2, 1::2, :], (0, 2, 1, 3)).reshape(B, Lp, de)
    xs = jnp.stack([x00, x10, x01, x11], axis=1)              # (B, 4, Lp, de) bf16

    # 4) projections + selective scan (single Pallas kernel)
    ys = selective_scan_pallas(xs, w_full, dt_b, A_t, Ds_t)   # (B, 4, Lp, de) bf16

    # 5) EfficientMerge (channel-last)
    a = ys[:, 0].reshape(B, Hp, Wp, de)
    b_ = jnp.transpose(ys[:, 1].reshape(B, Wp, Hp, de), (0, 2, 1, 3))
    c_ = ys[:, 2].reshape(B, Hp, Wp, de)
    d_ = jnp.transpose(ys[:, 3].reshape(B, Wp, Hp, de), (0, 2, 1, 3))
    col_even = jnp.stack([a, b_], axis=2).reshape(B, H, Wp, de)   # interleave rows
    col_odd = jnp.stack([c_, d_], axis=2).reshape(B, H, Wp, de)
    y = jnp.stack([col_even, col_odd], axis=3).reshape(B, H, W, de)

    # 6) LayerNorm + y * SiLU(z) + out_proj (fused, row-tiled)
    out = tail(y.reshape(B * H * W, de), z, p["ln_g"], p["ln_b"], p["out_proj_w"])
    return out.reshape(B, H, W, dm)


# ------------------------------ param init --------------------------------

def init_params(key, d_model=16, d_state=16, ssm_ratio=2.0,
                dt_min=0.001, dt_max=0.1, dt_init_floor=1e-4):
    de = int(ssm_ratio * d_model)                 # d_expand == d_inner
    R = math.ceil(d_model / 16)                   # dt_rank ('auto')
    N = d_state
    K = 4
    ks = jax.random.split(key, 8)

    in_proj_w = jax.random.normal(ks[0], (d_model, 2 * de), jnp.float32) / math.sqrt(d_model)
    conv_w = jax.random.normal(ks[1], (3, 3, de), jnp.float32) / 3.0
    conv_b = jax.random.normal(ks[2], (1, 1, de), jnp.float32) * 0.02
    x_proj_w = jax.random.normal(ks[3], (K, R + 2 * N, de), jnp.float32) / math.sqrt(de)

    dt_std = R ** -0.5
    dt_w = jax.random.uniform(ks[4], (K, de, R), jnp.float32, -dt_std, dt_std)
    dt = jnp.exp(jax.random.uniform(ks[5], (K, de), jnp.float32)
                 * (math.log(dt_max) - math.log(dt_min)) + math.log(dt_min))
    dt = jnp.maximum(dt, dt_init_floor)
    dt_b = (dt + jnp.log(-jnp.expm1(-dt))).reshape(K, de, 1)   # inverse softplus

    # A_logs = log(arange(1, N+1)) repeated -> A = -exp(A_logs)
    A_logs = jnp.log(jnp.broadcast_to(
        jnp.arange(1, N + 1, dtype=jnp.float32), (K, de, N)))
    Ds = jnp.ones((K, de, 1), jnp.float32)

    ln_g = jnp.ones((1, de), jnp.float32)
    ln_b = jnp.zeros((1, de), jnp.float32)
    out_proj_w = jax.random.normal(ks[6], (de, d_model), jnp.float32) / math.sqrt(de)

    return dict(in_proj_w=in_proj_w, conv_w=conv_w, conv_b=conv_b,
                x_proj_w=x_proj_w, dt_w=dt_w, dt_b=dt_b, A_logs=A_logs, Ds=Ds,
                ln_g=ln_g, ln_b=ln_b, out_proj_w=out_proj_w)


if __name__ == "__main__":
    key = jax.random.PRNGKey(0)
    kx, kp = jax.random.split(key)
    B, H, W, d_model = 2, 8, 8, 16
    x = jax.random.normal(kx, (B, H, W, d_model), jnp.float32)
    params = init_params(kp, d_model=d_model)

    out = jax.jit(ss2d_forward)(x, params)
    out = jax.block_until_ready(out)
    assert out.shape == (B, H, W, d_model)
    assert jnp.all(jnp.isfinite(out))
    print("KERNEL_OK")
</pallas_src>

<mosaic_0001>
module attributes {stable_mosaic.version = 11 : i64} {
  func.func @_dwconv_silu_kernel(%arg0: i32, %arg1: memref<1x8x8x32xbf16, #tpu.memory_space<vmem>>, %arg2: memref<3x3x32xf32, #tpu.memory_space<vmem>>, %arg3: memref<1x1x32xf32, #tpu.memory_space<vmem>>, %arg4: memref<1x8x8x32xbf16, #tpu.memory_space<vmem>>, %arg5: memref<10x10x32xbf16, #tpu.memory_space<vmem>>) attributes {dimension_semantics = [#tpu.dimension_semantics<parallel>], iteration_bounds = array<i64: 2>, scalar_prefetch = 0 : i64, scratch_operands = 1 : i64, tpu.core_type = #tpu.core_type<tc>, window_params = [{transform_indices = @transform_0, window_bounds = array<i64: 1, 8, 8, 32>}, {pipeline_mode = #tpu.pipeline_mode<synchronous>, transform_indices = @transform_1, window_bounds = array<i64: 3, 3, 32>}, {pipeline_mode = #tpu.pipeline_mode<synchronous>, transform_indices = @transform_2, window_bounds = array<i64: 1, 1, 32>}, {transform_indices = @transform_3, window_bounds = array<i64: 1, 8, 8, 32>}]} {
    %cst = arith.constant 0.000000e+00 : bf16
    %0 = vector.broadcast %cst : bf16 to vector<10x10x32xbf16>
    %c0 = arith.constant 0 : index
    %c0_0 = arith.constant 0 : index
    %c0_1 = arith.constant 0 : index
    %1 = vector.load %arg5[%c0, %c0_0, %c0_1] : memref<10x10x32xbf16, #tpu.memory_space<vmem>>, vector<10x10x32xbf16>
    tpu.vector_store %arg5[%c0, %c0_0, %c0_1], %0 {strides = array<i32>} : memref<10x10x32xbf16, #tpu.memory_space<vmem>>, vector<10x10x32xbf16>,
    %c0_2 = arith.constant 0 : index
    %c0_3 = arith.constant 0 : index
    %c0_4 = arith.constant 0 : index
    %c0_5 = arith.constant 0 : index
    %2 = vector.load %arg1[%c0_2, %c0_3, %c0_4, %c0_5] : memref<1x8x8x32xbf16, #tpu.memory_space<vmem>>, vector<1x8x8x32xbf16>
    %3 = vector.shape_cast %2 : vector<1x8x8x32xbf16> to vector<8x8x32xbf16>
    %c1 = arith.constant 1 : index
    %c1_6 = arith.constant 1 : index
    %c0_7 = arith.constant 0 : index
    %4 = vector.load %arg5[%c1, %c1_6, %c0_7] : memref<10x10x32xbf16, #tpu.memory_space<vmem>>, vector<8x8x32xbf16>
    tpu.vector_store %arg5[%c1, %c1_6, %c0_7], %3 {strides = array<i32>} : memref<10x10x32xbf16, #tpu.memory_space<vmem>>, vector<8x8x32xbf16>,
    %cst_8 = arith.constant 0.000000e+00 : f32
    %5 = vector.broadcast %cst_8 : f32 to vector<8x8x32xf32>
    %c0_9 = arith.constant 0 : index
    %c0_10 = arith.constant 0 : index
    %c0_11 = arith.constant 0 : index
    %6 = vector.load %arg5[%c0_9, %c0_10, %c0_11] : memref<10x10x32xbf16, #tpu.memory_space<vmem>>, vector<8x8x32xbf16>
    %7 = arith.extf %6 : vector<8x8x32xbf16> to vector<8x8x32xf32>
    %c0_12 = arith.constant 0 : index
    %c0_13 = arith.constant 0 : index
    %c0_14 = arith.constant 0 : index
    %8 = vector.load %arg2[%c0_12, %c0_13, %c0_14] : memref<3x3x32xf32, #tpu.memory_space<vmem>>, vector<1x1x32xf32>
    %9 = vector.broadcast %8 : vector<1x1x32xf32> to vector<8x8x32xf32>
    %10 = arith.mulf %7, %9 : vector<8x8x32xf32>
    %11 = arith.addf %5, %10 : vector<8x8x32xf32>
    %c0_15 = arith.constant 0 : index
    %c1_16 = arith.constant 1 : index
    %c0_17 = arith.constant 0 : index
    %12 = vector.load %arg5[%c0_15, %c1_16, %c0_17] : memref<10x10x32xbf16, #tpu.memory_space<vmem>>, vector<8x8x32xbf16>
    %13 = arith.extf %12 : vector<8x8x32xbf16> to vector<8x8x32xf32>
    %c0_18 = arith.constant 0 : index
    %c1_19 = arith.constant 1 : index
    %c0_20 = arith.constant 0 : index
    %14 = vector.load %arg2[%c0_18, %c1_19, %c0_20] : memref<3x3x32xf32, #tpu.memory_space<vmem>>, vector<1x1x32xf32>
    %15 = vector.broadcast %14 : vector<1x1x32xf32> to vector<8x8x32xf32>
    %16 = arith.mulf %13, %15 : vector<8x8x32xf32>
    %17 = arith.addf %11, %16 : vector<8x8x32xf32>
    %c0_21 = arith.constant 0 : index
    %c2 = arith.constant 2 : index
    %c0_22 = arith.constant 0 : index
    %18 = vector.load %arg5[%c0_21, %c2, %c0_22] : memref<10x10x32xbf16, #tpu.memory_space<vmem>>, vector<8x8x32xbf16>
    %19 = arith.extf %18 : vector<8x8x32xbf16> to vector<8x8x32xf32>
    %c0_23 = arith.constant 0 : index
    %c2_24 = arith.constant 2 : index
    %c0_25 = arith.constant 0 : index
    %20 = vector.load %arg2[%c0_23, %c2_24, %c0_25] : memref<3x3x32xf32, #tpu.memory_space<vmem>>, vector<1x1x32xf32>
    %21 = vector.broadcast %20 : vector<1x1x32xf32> to vector<8x8x32xf32>
    %22 = arith.mulf %19, %21 : vector<8x8x32xf32>
    %23 = arith.addf %17, %22 : vector<8x8x32xf32>
    %c1_26 = arith.constant 1 : index
    %c0_27 = arith.constant 0 : index
    %c0_28 = arith.constant 0 : index
    %24 = vector.load %arg5[%c1_26, %c0_27, %c0_28] : memref<10x10x32xbf16, #tpu.memory_space<vmem>>, vector<8x8x32xbf16>
    %25 = arith.extf %24 : vector<8x8x32xbf16> to vector<8x8x32xf32>
    %c1_29 = arith.constant 1 : index
    %c0_30 = arith.constant 0 : index
    %c0_31 = arith.constant 0 : index
    %26 = vector.load %arg2[%c1_29, %c0_30, %c0_31] : memref<3x3x32xf32, #tpu.memory_space<vmem>>, vector<1x1x32xf32>
    %27 = vector.broadcast %26 : vector<1x1x32xf32> to vector<8x8x32xf32>
    %28 = arith.mulf %25, %27 : vector<8x8x32xf32>
    %29 = arith.addf %23, %28 : vector<8x8x32xf32>
    %c1_32 = arith.constant 1 : index
    %c1_33 = arith.constant 1 : index
    %c0_34 = arith.constant 0 : index
    %30 = vector.load %arg5[%c1_32, %c1_33, %c0_34] : memref<10x10x32xbf16, #tpu.memory_space<vmem>>, vector<8x8x32xbf16>
    %31 = arith.extf %30 : vector<8x8x32xbf16> to vector<8x8x32xf32>
    %c1_35 = arith.constant 1 : index
    %c1_36 = arith.constant 1 : index
    %c0_37 = arith.constant 0 : index
    %32 = vector.load %arg2[%c1_35, %c1_36, %c0_37] : memref<3x3x32xf32, #tpu.memory_space<vmem>>, vector<1x1x32xf32>
    %33 = vector.broadcast %32 : vector<1x1x32xf32> to vector<8x8x32xf32>
    %34 = arith.mulf %31, %33 : vector<8x8x32xf32>
    %35 = arith.addf %29, %34 : vector<8x8x32xf32>
    %c1_38 = arith.constant 1 : index
    %c2_39 = arith.constant 2 : index
    %c0_40 = arith.constant 0 : index
    %36 = vector.load %arg5[%c1_38, %c2_39, %c0_40] : memref<10x10x32xbf16, #tpu.memory_space<vmem>>, vector<8x8x32xbf16>
    %37 = arith.extf %36 : vector<8x8x32xbf16> to vector<8x8x32xf32>
    %c1_41 = arith.constant 1 : index
    %c2_42 = arith.constant 2 : index
    %c0_43 = arith.constant 0 : index
    %38 = vector.load %arg2[%c1_41, %c2_42, %c0_43] : memref<3x3x32xf32, #tpu.memory_space<vmem>>, vector<1x1x32xf32>
    %39 = vector.broadcast %38 : vector<1x1x32xf32> to vector<8x8x32xf32>
    %40 = arith.mulf %37, %39 : vector<8x8x32xf32>
    %41 = arith.addf %35, %40 : vector<8x8x32xf32>
    %c2_44 = arith.constant 2 : index
    %c0_45 = arith.constant 0 : index
    %c0_46 = arith.constant 0 : index
    %42 = vector.load %arg5[%c2_44, %c0_45, %c0_46] : memref<10x10x32xbf16, #tpu.memory_space<vmem>>, vector<8x8x32xbf16>
    %43 = arith.extf %42 : vector<8x8x32xbf16> to vector<8x8x32xf32>
    %c2_47 = arith.constant 2 : index
    %c0_48 = arith.constant 0 : index
    %c0_49 = arith.constant 0 : index
    %44 = vector.load %arg2[%c2_47, %c0_48, %c0_49] : memref<3x3x32xf32, #tpu.memory_space<vmem>>, vector<1x1x32xf32>
    %45 = vector.broadcast %44 : vector<1x1x32xf32> to vector<8x8x32xf32>
    %46 = arith.mulf %43, %45 : vector<8x8x32xf32>
    %47 = arith.addf %41, %46 : vector<8x8x32xf32>
    %c2_50 = arith.constant 2 : index
    %c1_51 = arith.constant 1 : index
    %c0_52 = arith.constant 0 : index
    %48 = vector.load %arg5[%c2_50, %c1_51, %c0_52] : memref<10x10x32xbf16, #tpu.memory_space<vmem>>, vector<8x8x32xbf16>
    %49 = arith.extf %48 : vector<8x8x32xbf16> to vector<8x8x32xf32>
    %c2_53 = arith.constant 2 : index
    %c1_54 = arith.constant 1 : index
    %c0_55 = arith.constant 0 : index
    %50 = vector.load %arg2[%c2_53, %c1_54, %c0_55] : memref<3x3x32xf32, #tpu.memory_space<vmem>>, vector<1x1x32xf32>
    %51 = vector.broadcast %50 : vector<1x1x32xf32> to vector<8x8x32xf32>
    %52 = arith.mulf %49, %51 : vector<8x8x32xf32>
    %53 = arith.addf %47, %52 : vector<8x8x32xf32>
    %c2_56 = arith.constant 2 : index
    %c2_57 = arith.constant 2 : index
    %c0_58 = arith.constant 0 : index
    %54 = vector.load %arg5[%c2_56, %c2_57, %c0_58] : memref<10x10x32xbf16, #tpu.memory_space<vmem>>, vector<8x8x32xbf16>
    %55 = arith.extf %54 : vector<8x8x32xbf16> to vector<8x8x32xf32>
    %c2_59 = arith.constant 2 : index
    %c2_60 = arith.constant 2 : index
    %c0_61 = arith.constant 0 : index
    %56 = vector.load %arg2[%c2_59, %c2_60, %c0_61] : memref<3x3x32xf32, #tpu.memory_space<vmem>>, vector<1x1x32xf32>
    %57 = vector.broadcast %56 : vector<1x1x32xf32> to vector<8x8x32xf32>
    %58 = arith.mulf %55, %57 : vector<8x8x32xf32>
    %59 = arith.addf %53, %58 : vector<8x8x32xf32>
    %c0_62 = arith.constant 0 : index
    %c0_63 = arith.constant 0 : index
    %c0_64 = arith.constant 0 : index
    %60 = vector.load %arg3[%c0_62, %c0_63, %c0_64] : memref<1x1x32xf32, #tpu.memory_space<vmem>>, vector<1x1x32xf32>
    %61 = vector.broadcast %60 : vector<1x1x32xf32> to vector<8x8x32xf32>
    %62 = arith.addf %59, %61 : vector<8x8x32xf32>
    %63 = arith.negf %62 : vector<8x8x32xf32>
    %64 = math.exp %63 : vector<8x8x32xf32>
    %cst_65 = arith.constant 1.000000e+00 : f32
    %65 = vector.broadcast %cst_65 : f32 to vector<8x8x32xf32>
    %66 = arith.addf %65, %64 : vector<8x8x32xf32>
    %67 = arith.divf %65, %66 : vector<8x8x32xf32>
    %68 = arith.mulf %62, %67 : vector<8x8x32xf32>
    %69 = arith.truncf %68 : vector<8x8x32xf32> to vector<8x8x32xbf16>
    %c0_66 = arith.constant 0 : index
    %c0_67 = arith.constant 0 : index
    %c0_68 = arith.constant 0 : index
    %c0_69 = arith.constant 0 : index
    %70 = vector.load %arg4[%c0_66, %c0_67, %c0_68, %c0_69] : memref<1x8x8x32xbf16, #tpu.memory_space<vmem>>, vector<1x8x8x32xbf16>
    %71 = vector.shape_cast %70 : vector<1x8x8x32xbf16> to vector<8x8x32xbf16>
    %72 = vector.shape_cast %69 : vector<8x8x32xbf16> to vector<1x8x8x32xbf16>
    tpu.vector_store %arg4[%c0_66, %c0_67, %c0_68, %c0_69], %72 {strides = array<i32>} : memref<1x8x8x32xbf16, #tpu.memory_space<vmem>>, vector<1x8x8x32xbf16>,
    return
  }
  func.func @transform_0(%arg0: i32) -> (i32, i32, i32, i32) {
    %c0_i32 = arith.constant 0 : i32
    %c0_i32_0 = arith.constant 0 : i32
    %c0_i32_1 = arith.constant 0 : i32
    %c0_i32_2 = arith.constant 0 : i32
    return %arg0, %c0_i32, %c0_i32_0, %c0_i32_1 : i32, i32, i32, i32
  }
  func.func @transform_1(%arg0: i32) -> (i32, i32, i32) {
    %c0_i32 = arith.constant 0 : i32
    %c0_i32_0 = arith.constant 0 : i32
    %c0_i32_1 = arith.constant 0 : i32
    %c0_i32_2 = arith.constant 0 : i32
    return %c0_i32, %c0_i32_0, %c0_i32_1 : i32, i32, i32
  }
  func.func @transform_2(%arg0: i32) -> (i32, i32, i32) {
    %c0_i32 = arith.constant 0 : i32
    %c0_i32_0 = arith.constant 0 : i32
    %c0_i32_1 = arith.constant 0 : i32
    %c0_i32_2 = arith.constant 0 : i32
    return %c0_i32, %c0_i32_0, %c0_i32_1 : i32, i32, i32
  }
  func.func @transform_3(%arg0: i32) -> (i32, i32, i32, i32) {
    %c0_i32 = arith.constant 0 : i32
    %c0_i32_0 = arith.constant 0 : i32
    %c0_i32_1 = arith.constant 0 : i32
    %c0_i32_2 = arith.constant 0 : i32
    return %arg0, %c0_i32, %c0_i32_0, %c0_i32_1 : i32, i32, i32, i32
  }
}

module attributes {stable_mosaic.version = 11 : i64} {
  func.func @_inproj_kernel(%arg0: i32, %arg1: memref<128x16xbf16, #tpu.memory_space<vmem>>, %arg2: memref<16x32xbf16, #tpu.memory_space<vmem>>, %arg3: memref<16x32xbf16, #tpu.memory_space<vmem>>, %arg4: memref<128x32xbf16, #tpu.memory_space<vmem>>, %arg5: memref<128x32xbf16, #tpu.memory_space<vmem>>) attributes {dimension_semantics = [#tpu.dimension_semantics<parallel>], iteration_bounds = array<i64: 1>, scalar_prefetch = 0 : i64, scratch_operands = 0 : i64, tpu.core_type = #tpu.core_type<tc>, window_params = [{transform_indices = @transform_0, window_bounds = array<i64: 128, 16>}, {pipeline_mode = #tpu.pipeline_mode<synchronous>, transform_indices = @transform_1, window_bounds = array<i64: 16, 32>}, {pipeline_mode = #tpu.pipeline_mode<synchronous>, transform_indices = @transform_2, window_bounds = array<i64: 16, 32>}, {transform_indices = @transform_3, window_bounds = array<i64: 128, 32>}, {transform_indices = @transform_4, window_bounds = array<i64: 128, 32>}]} {
    %c0 = arith.constant 0 : index
    %c0_0 = arith.constant 0 : index
    %0 = vector.load %arg1[%c0, %c0_0] : memref<128x16xbf16, #tpu.memory_space<vmem>>, vector<128x16xbf16>
    %c0_1 = arith.constant 0 : index
    %c0_2 = arith.constant 0 : index
    %1 = vector.load %arg2[%c0_1, %c0_2] : memref<16x32xbf16, #tpu.memory_space<vmem>>, vector<16x32xbf16>
    %cst = arith.constant dense<0.000000e+00> : vector<128x32xf32>
    %2 = tpu.matmul %0, %1, %cst {dimension_numbers = #tpu.dot_dimension_numbers<[1], [0], [0], [1], [0, 0, 1, 1], [], []>} : vector<128x16xbf16>, vector<16x32xbf16>, vector<128x32xf32> -> vector<128x32xf32>
    %3 = arith.truncf %2 : vector<128x32xf32> to vector<128x32xbf16>
    %c0_3 = arith.constant 0 : index
    %c0_4 = arith.constant 0 : index
    %4 = vector.load %arg4[%c0_3, %c0_4] : memref<128x32xbf16, #tpu.memory_space<vmem>>, vector<128x32xbf16>
    tpu.vector_store %arg4[%c0_3, %c0_4], %3 {strides = array<i32>} : memref<128x32xbf16, #tpu.memory_space<vmem>>, vector<128x32xbf16>,
    %c0_5 = arith.constant 0 : index
    %c0_6 = arith.constant 0 : index
    %5 = vector.load %arg3[%c0_5, %c0_6] : memref<16x32xbf16, #tpu.memory_space<vmem>>, vector<16x32xbf16>
    %cst_7 = arith.constant dense<0.000000e+00> : vector<128x32xf32>
    %6 = tpu.matmul %0, %5, %cst_7 {dimension_numbers = #tpu.dot_dimension_numbers<[1], [0], [0], [1], [0, 0, 1, 1], [], []>} : vector<128x16xbf16>, vector<16x32xbf16>, vector<128x32xf32> -> vector<128x32xf32>
    %7 = arith.truncf %6 : vector<128x32xf32> to vector<128x32xbf16>
    %c0_8 = arith.constant 0 : index
    %c0_9 = arith.constant 0 : index
    %8 = vector.load %arg5[%c0_8, %c0_9] : memref<128x32xbf16, #tpu.memory_space<vmem>>, vector<128x32xbf16>
    tpu.vector_store %arg5[%c0_8, %c0_9], %7 {strides = array<i32>} : memref<128x32xbf16, #tpu.memory_space<vmem>>, vector<128x32xbf16>,
    return
  }
  func.func @transform_0(%arg0: i32) -> (i32, i32) {
    %c0_i32 = arith.constant 0 : i32
    %c0_i32_0 = arith.constant 0 : i32
    return %arg0, %c0_i32 : i32, i32
  }
  func.func @transform_1(%arg0: i32) -> (i32, i32) {
    %c0_i32 = arith.constant 0 : i32
    %c0_i32_0 = arith.constant 0 : i32
    %c0_i32_1 = arith.constant 0 : i32
    return %c0_i32, %c0_i32_0 : i32, i32
  }
  func.func @transform_2(%arg0: i32) -> (i32, i32) {
    %c0_i32 = arith.constant 0 : i32
    %c0_i32_0 = arith.constant 0 : i32
    %c0_i32_1 = arith.constant 0 : i32
    return %c0_i32, %c0_i32_0 : i32, i32
  }
  func.func @transform_3(%arg0: i32) -> (i32, i32) {
    %c0_i32 = arith.constant 0 : i32
    %c0_i32_0 = arith.constant 0 : i32
    return %arg0, %c0_i32 : i32, i32
  }
  func.func @transform_4(%arg0: i32) -> (i32, i32) {
    %c0_i32 = arith.constant 0 : i32
    %c0_i32_0 = arith.constant 0 : i32
    return %arg0, %c0_i32 : i32, i32
  }
}

module attributes {stable_mosaic.version = 11 : i64} {
  func.func @_scan_kernel(%arg0: i32, %arg1: i32, %arg2: i32, %arg3: memref<1x1x16x32xbf16, #tpu.memory_space<vmem>>, %arg4: memref<1x32x64xbf16, #tpu.memory_space<vmem>>, %arg5: memref<1x1x32xf32, #tpu.memory_space<vmem>>, %arg6: memref<1x16x32xf32, #tpu.memory_space<vmem>>, %arg7: memref<1x1x32xf32, #tpu.memory_space<vmem>>, %arg8: memref<1x1x16x32xbf16, #tpu.memory_space<vmem>>, %arg9: memref<16x32xf32, #tpu.memory_space<vmem>>, %arg10: memref<16x16x32xf32, #tpu.memory_space<vmem>>, %arg11: memref<16x16x32xf32, #tpu.memory_space<vmem>>, %arg12: memref<16x16x32xf32, #tpu.memory_space<vmem>>) attributes {dimension_semantics = [#tpu.dimension_semantics<parallel>, #tpu.dimension_semantics<parallel>, #tpu.dimension_semantics<arbitrary>], iteration_bounds = array<i64: 2, 4, 1>, scalar_prefetch = 0 : i64, scratch_operands = 4 : i64, tpu.core_type = #tpu.core_type<tc>, window_params = [{transform_indices = @transform_0, window_bounds = array<i64: 1, 1, 16, 32>}, {transform_indices = @transform_1, window_bounds = array<i64: 1, 32, 64>}, {transform_indices = @transform_2, window_bounds = array<i64: 1, 1, 32>}, {transform_indices = @transform_3, window_bounds = array<i64: 1, 16, 32>}, {transform_indices = @transform_4, window_bounds = array<i64: 1, 1, 32>}, {transform_indices = @transform_5, window_bounds = array<i64: 1, 1, 16, 32>}]} {
    %c0_i32 = arith.constant 0 : i32
    %0 = arith.cmpi eq, %arg2, %c0_i32 : i32
    %1 = arith.extui %0 : i1 to i32
    %c0_i32_0 = arith.constant 0 : i32
    %2 = arith.cmpi ne, %1, %c0_i32_0 : i32
    scf.if %2 {
      %cst_33 = arith.constant 0.000000e+00 : f32
      %56 = vector.broadcast %cst_33 : f32 to vector<16x32xf32>
      %c0_34 = arith.constant 0 : index
      %c0_35 = arith.constant 0 : index
      %57 = vector.load %arg9[%c0_34, %c0_35] : memref<16x32xf32, #tpu.memory_space<vmem>>, vector<16x32xf32>
      tpu.vector_store %arg9[%c0_34, %c0_35], %56 {strides = array<i32>} : memref<16x32xf32, #tpu.memory_space<vmem>>, vector<16x32xf32>,
    } else {
    }
    %c0 = arith.constant 0 : index
    %c0_1 = arith.constant 0 : index
    %c0_2 = arith.constant 0 : index
    %c0_3 = arith.constant 0 : index
    %3 = vector.load %arg3[%c0, %c0_1, %c0_2, %c0_3] : memref<1x1x16x32xbf16, #tpu.memory_space<vmem>>, vector<1x1x16x32xbf16>
    %4 = vector.shape_cast %3 : vector<1x1x16x32xbf16> to vector<16x32xbf16>
    %5 = arith.extf %4 : vector<16x32xbf16> to vector<16x32xf32>
    %c0_4 = arith.constant 0 : index
    %c0_5 = arith.constant 0 : index
    %c0_6 = arith.constant 0 : index
    %6 = vector.load %arg4[%c0_4, %c0_5, %c0_6] : memref<1x32x64xbf16, #tpu.memory_space<vmem>>, vector<1x32x64xbf16>
    %7 = vector.shape_cast %6 : vector<1x32x64xbf16> to vector<32x64xbf16>
    %cst = arith.constant dense<0.000000e+00> : vector<16x64xf32>
    %8 = tpu.matmul %4, %7, %cst {dimension_numbers = #tpu.dot_dimension_numbers<[1], [0], [0], [1], [0, 0, 1, 1], [], []>} : vector<16x32xbf16>, vector<32x64xbf16>, vector<16x64xf32> -> vector<16x64xf32>
    %9 = vector.extract_strided_slice %8 {offsets = [0, 0], sizes = [16, 32], strides = [1, 1]} : vector<16x64xf32> to vector<16x32xf32>
    %c0_7 = arith.constant 0 : index
    %c0_8 = arith.constant 0 : index
    %c0_9 = arith.constant 0 : index
    %10 = vector.load %arg5[%c0_7, %c0_8, %c0_9] : memref<1x1x32xf32, #tpu.memory_space<vmem>>, vector<1x1x32xf32>
    %11 = vector.shape_cast %10 : vector<1x1x32xf32> to vector<1x32xf32>
    %12 = vector.broadcast %11 : vector<1x32xf32> to vector<16x32xf32>
    %13 = arith.addf %9, %12 : vector<16x32xf32>
    %cst_10 = arith.constant 0.000000e+00 : f32
    %14 = vector.broadcast %cst_10 : f32 to vector<16x32xf32>
    %15 = arith.maximumf %13, %14 : vector<16x32xf32>
    %16 = vector.broadcast %cst_10 : f32 to vector<16x32xf32>
    %17 = arith.subf %13, %16 : vector<16x32xf32>
    %18 = arith.cmpf one, %17, %17 : vector<16x32xf32>
    %19 = vector.broadcast %cst_10 : f32 to vector<16x32xf32>
    %20 = arith.addf %13, %19 : vector<16x32xf32>
    %21 = math.absf %17 : vector<16x32xf32>
    %cst_11 = arith.constant 0.000000e+00 : f32
    %22 = vector.broadcast %cst_11 : f32 to vector<16x32xf32>
    %23 = arith.subf %22, %21 : vector<16x32xf32>
    %24 = math.exp %23 : vector<16x32xf32>
    %25 = math.log1p %24 : vector<16x32xf32>
    %26 = arith.addf %15, %25 : vector<16x32xf32>
    %27 = arith.select %18, %20, %26 : vector<16x32xi1>, vector<16x32xf32>
    %28 = vector.extract_strided_slice %8 {offsets = [0, 32], sizes = [16, 16], strides = [1, 1]} : vector<16x64xf32> to vector<16x16xf32>
    %29 = vector.extract_strided_slice %8 {offsets = [0, 48], sizes = [16, 16], strides = [1, 1]} : vector<16x64xf32> to vector<16x16xf32>
    %c0_12 = arith.constant 0 : index
    %c0_13 = arith.constant 0 : index
    %c0_14 = arith.constant 0 : index
    %30 = vector.load %arg6[%c0_12, %c0_13, %c0_14] : memref<1x16x32xf32, #tpu.memory_space<vmem>>, vector<1x16x32xf32>
    %31 = vector.shape_cast %30 : vector<1x16x32xf32> to vector<16x32xf32>
    %32 = vector.shape_cast %27 : vector<16x32xf32> to vector<16x1x32xf32>
    %33 = vector.shape_cast %31 : vector<16x32xf32> to vector<1x16x32xf32>
    %34 = vector.broadcast %32 : vector<16x1x32xf32> to vector<16x16x32xf32>
    %35 = vector.broadcast %33 : vector<1x16x32xf32> to vector<16x16x32xf32>
    %36 = arith.mulf %34, %35 : vector<16x16x32xf32>
    %37 = math.exp %36 : vector<16x16x32xf32>
    %c0_15 = arith.constant 0 : index
    %c0_16 = arith.constant 0 : index
    %c0_17 = arith.constant 0 : index
    %38 = vector.load %arg10[%c0_15, %c0_16, %c0_17] : memref<16x16x32xf32, #tpu.memory_space<vmem>>, vector<16x16x32xf32>
    tpu.vector_store %arg10[%c0_15, %c0_16, %c0_17], %37 {strides = array<i32>} : memref<16x16x32xf32, #tpu.memory_space<vmem>>, vector<16x16x32xf32>,
    %39 = arith.mulf %27, %5 : vector<16x32xf32>
    %40 = vector.shape_cast %39 : vector<16x32xf32> to vector<16x1x32xf32>
    %41 = vector.shape_cast %28 : vector<16x16xf32> to vector<16x16x1xf32>
    %42 = vector.broadcast %40 : vector<16x1x32xf32> to vector<16x16x32xf32>
    %43 = vector.broadcast %41 : vector<16x16x1xf32> to vector<16x16x32xf32>
    %44 = arith.mulf %42, %43 : vector<16x16x32xf32>
    %c0_18 = arith.constant 0 : index
    %c0_19 = arith.constant 0 : index
    %c0_20 = arith.constant 0 : index
    %45 = vector.load %arg11[%c0_18, %c0_19, %c0_20] : memref<16x16x32xf32, #tpu.memory_space<vmem>>, vector<16x16x32xf32>
    tpu.vector_store %arg11[%c0_18, %c0_19, %c0_20], %44 {strides = array<i32>} : memref<16x16x32xf32, #tpu.memory_space<vmem>>, vector<16x16x32xf32>,
    %46 = vector.shape_cast %29 : vector<16x16xf32> to vector<16x16x1xf32>
    %47 = vector.shape_cast %46 : vector<16x16x1xf32> to vector<16x16x1xf32>
    %48 = vector.broadcast %47 : vector<16x16x1xf32> to vector<16x16x32xf32>
    %c0_21 = arith.constant 0 : index
    %c0_22 = arith.constant 0 : index
    %c0_23 = arith.constant 0 : index
    %49 = vector.load %arg12[%c0_21, %c0_22, %c0_23] : memref<16x16x32xf32, #tpu.memory_space<vmem>>, vector<16x16x32xf32>
    tpu.vector_store %arg12[%c0_21, %c0_22, %c0_23], %48 {strides = array<i32>} : memref<16x16x32xf32, #tpu.memory_space<vmem>>, vector<16x16x32xf32>,
    %c0_24 = arith.constant 0 : index
    %c0_25 = arith.constant 0 : index
    %c0_26 = arith.constant 0 : index
    %50 = vector.load %arg7[%c0_24, %c0_25, %c0_26] : memref<1x1x32xf32, #tpu.memory_space<vmem>>, vector<1x1x32xf32>
    %51 = vector.shape_cast %50 : vector<1x1x32xf32> to vector<1x32xf32>
    %c0_27 = arith.constant 0 : index
    %c0_28 = arith.constant 0 : index
    %52 = vector.load %arg9[%c0_27, %c0_28] : memref<16x32xf32, #tpu.memory_space<vmem>>, vector<16x32xf32>
    %c0_i32_29 = arith.constant 0 : i32
    %c2_i32 = arith.constant 2 : i32
    %53 = arith.addi %c0_i32_29, %c2_i32 : i32
    %c1_i32 = arith.constant 1 : i32
    %54 = scf.for %arg13 = %c0_i32_29 to %53 step %c1_i32 iter_args(%arg14 = %52) -> (vector<16x32xf32>)  : i32 {
      %c8_i32 = arith.constant 8 : i32
      %56 = arith.muli %arg13, %c8_i32 : i32
      %57 = tpu.assume_multiple %56, 8 : i32
      %c0_i32_33 = arith.constant 0 : i32
      %58 = arith.addi %57, %c0_i32_33 : i32
      %59 = arith.index_cast %58 : i32 to index
      %c0_34 = arith.constant 0 : index
      %c0_35 = arith.constant 0 : index
      %60 = vector.load %arg10[%59, %c0_34, %c0_35] : memref<16x16x32xf32, #tpu.memory_space<vmem>>, vector<1x16x32xf32>
      %61 = vector.shape_cast %60 : vector<1x16x32xf32> to vector<16x32xf32>
      %62 = arith.mulf %61, %arg14 : vector<16x32xf32>
      %63 = arith.index_cast %58 : i32 to index
      %c0_36 = arith.constant 0 : index
      %c0_37 = arith.constant 0 : index
      %64 = vector.load %arg11[%63, %c0_36, %c0_37] : memref<16x16x32xf32, #tpu.memory_space<vmem>>, vector<1x16x32xf32>
      %65 = vector.shape_cast %64 : vector<1x16x32xf32> to vector<16x32xf32>
      %66 = arith.addf %62, %65 : vector<16x32xf32>
      %67 = arith.index_cast %58 : i32 to index
      %c0_38 = arith.constant 0 : index
      %c0_39 = arith.constant 0 : index
      %68 = vector.load %arg12[%67, %c0_38, %c0_39] : memref<16x16x32xf32, #tpu.memory_space<vmem>>, vector<1x16x32xf32>
      %69 = vector.shape_cast %68 : vector<1x16x32xf32> to vector<16x32xf32>
      %70 = arith.mulf %66, %69 : vector<16x32xf32>
      %cst_40 = arith.constant dense<0.000000e+00> : vector<32xf32>
      %71 = vector.multi_reduction <add>, %70, %cst_40 [0] : vector<16x32xf32> to vector<32xf32>
      %72 = vector.shape_cast %71 : vector<32xf32> to vector<1x32xf32>
      %c1_i32_41 = arith.constant 1 : i32
      %73 = arith.addi %57, %c1_i32_41 : i32
      %74 = arith.index_cast %73 : i32 to index
      %c0_42 = arith.constant 0 : index
      %c0_43 = arith.constant 0 : index
      %75 = vector.load %arg10[%74, %c0_42, %c0_43] : memref<16x16x32xf32, #tpu.memory_space<vmem>>, vector<1x16x32xf32>
      %76 = vector.shape_cast %75 : vector<1x16x32xf32> to vector<16x32xf32>
      %77 = arith.mulf %76, %66 : vector<16x32xf32>
      %78 = arith.index_cast %73 : i32 to index
      %c0_44 = arith.constant 0 : index
      %c0_45 = arith.constant 0 : index
      %79 = vector.load %arg11[%78, %c0_44, %c0_45] : memref<16x16x32xf32, #tpu.memory_space<vmem>>, vector<1x16x32xf32>
      %80 = vector.shape_cast %79 : vector<1x16x32xf32> to vector<16x32xf32>
      %81 = arith.addf %77, %80 : vector<16x32xf32>
      %82 = arith.index_cast %73 : i32 to index
      %c0_46 = arith.constant 0 : index
      %c0_47 = arith.constant 0 : index
      %83 = vector.load %arg12[%82, %c0_46, %c0_47] : memref<16x16x32xf32, #tpu.memory_space<vmem>>, vector<1x16x32xf32>
      %84 = vector.shape_cast %83 : vector<1x16x32xf32> to vector<16x32xf32>
      %85 = arith.mulf %81, %84 : vector<16x32xf32>
      %cst_48 = arith.constant dense<0.000000e+00> : vector<32xf32>
      %86 = vector.multi_reduction <add>, %85, %cst_48 [0] : vector<16x32xf32> to vector<32xf32>
      %87 = vector.shape_cast %86 : vector<32xf32> to vector<1x32xf32>
      %c2_i32_49 = arith.constant 2 : i32
      %88 = arith.addi %57, %c2_i32_49 : i32
      %89 = arith.index_cast %88 : i32 to index
      %c0_50 = arith.constant 0 : index
      %c0_51 = arith.constant 0 : index
      %90 = vector.load %arg10[%89, %c0_50, %c0_51] : memref<16x16x32xf32, #tpu.memory_space<vmem>>, vector<1x16x32xf32>
      %91 = vector.shape_cast %90 : vector<1x16x32xf32> to vector<16x32xf32>
      %92 = arith.mulf %91, %81 : vector<16x32xf32>
      %93 = arith.index_cast %88 : i32 to index
      %c0_52 = arith.constant 0 : index
      %c0_53 = arith.constant 0 : index
      %94 = vector.load %arg11[%93, %c0_52, %c0_53] : memref<16x16x32xf32, #tpu.memory_space<vmem>>, vector<1x16x32xf32>
      %95 = vector.shape_cast %94 : vector<1x16x32xf32> to vector<16x32xf32>
      %96 = arith.addf %92, %95 : vector<16x32xf32>
      %97 = arith.index_cast %88 : i32 to index
      %c0_54 = arith.constant 0 : index
      %c0_55 = arith.constant 0 : index
      %98 = vector.load %arg12[%97, %c0_54, %c0_55] : memref<16x16x32xf32, #tpu.memory_space<vmem>>, vector<1x16x32xf32>
      %99 = vector.shape_cast %98 : vector<1x16x32xf32> to vector<16x32xf32>
      %100 = arith.mulf %96, %99 : vector<16x32xf32>
      %cst_56 = arith.constant dense<0.000000e+00> : vector<32xf32>
      %101 = vector.multi_reduction <add>, %100, %cst_56 [0] : vector<16x32xf32> to vector<32xf32>
      %102 = vector.shape_cast %101 : vector<32xf32> to vector<1x32xf32>
      %c3_i32 = arith.constant 3 : i32
      %103 = arith.addi %57, %c3_i32 : i32
      %104 = arith.index_cast %103 : i32 to index
      %c0_57 = arith.constant 0 : index
      %c0_58 = arith.constant 0 : index
      %105 = vector.load %arg10[%104, %c0_57, %c0_58] : memref<16x16x32xf32, #tpu.memory_space<vmem>>, vector<1x16x32xf32>
      %106 = vector.shape_cast %105 : vector<1x16x32xf32> to vector<16x32xf32>
      %107 = arith.mulf %106, %96 : vector<16x32xf32>
      %108 = arith.index_cast %103 : i32 to index
      %c0_59 = arith.constant 0 : index
      %c0_60 = arith.constant 0 : index
      %109 = vector.load %arg11[%108, %c0_59, %c0_60] : memref<16x16x32xf32, #tpu.memory_space<vmem>>, vector<1x16x32xf32>
      %110 = vector.shape_cast %109 : vector<1x16x32xf32> to vector<16x32xf32>
      %111 = arith.addf %107, %110 : vector<16x32xf32>
      %112 = arith.index_cast %103 : i32 to index
      %c0_61 = arith.constant 0 : index
      %c0_62 = arith.constant 0 : index
      %113 = vector.load %arg12[%112, %c0_61, %c0_62] : memref<16x16x32xf32, #tpu.memory_space<vmem>>, vector<1x16x32xf32>
      %114 = vector.shape_cast %113 : vector<1x16x32xf32> to vector<16x32xf32>
      %115 = arith.mulf %111, %114 : vector<16x32xf32>
      %cst_63 = arith.constant dense<0.000000e+00> : vector<32xf32>
      %116 = vector.multi_reduction <add>, %115, %cst_63 [0] : vector<16x32xf32> to vector<32xf32>
      %117 = vector.shape_cast %116 : vector<32xf32> to vector<1x32xf32>
      %c4_i32 = arith.constant 4 : i32
      %118 = arith.addi %57, %c4_i32 : i32
      %119 = arith.index_cast %118 : i32 to index
      %c0_64 = arith.constant 0 : index
      %c0_65 = arith.constant 0 : index
      %120 = vector.load %arg10[%119, %c0_64, %c0_65] : memref<16x16x32xf32, #tpu.memory_space<vmem>>, vector<1x16x32xf32>
      %121 = vector.shape_cast %120 : vector<1x16x32xf32> to vector<16x32xf32>
      %122 = arith.mulf %121, %111 : vector<16x32xf32>
      %123 = arith.index_cast %118 : i32 to index
      %c0_66 = arith.constant 0 : index
      %c0_67 = arith.constant 0 : index
      %124 = vector.load %arg11[%123, %c0_66, %c0_67] : memref<16x16x32xf32, #tpu.memory_space<vmem>>, vector<1x16x32xf32>
      %125 = vector.shape_cast %124 : vector<1x16x32xf32> to vector<16x32xf32>
      %126 = arith.addf %122, %125 : vector<16x32xf32>
      %127 = arith.index_cast %118 : i32 to index
      %c0_68 = arith.constant 0 : index
      %c0_69 = arith.constant 0 : index
      %128 = vector.load %arg12[%127, %c0_68, %c0_69] : memref<16x16x32xf32, #tpu.memory_space<vmem>>, vector<1x16x32xf32>
      %129 = vector.shape_cast %128 : vector<1x16x32xf32> to vector<16x32xf32>
      %130 = arith.mulf %126, %129 : vector<16x32xf32>
      %cst_70 = arith.constant dense<0.000000e+00> : vector<32xf32>
      %131 = vector.multi_reduction <add>, %130, %cst_70 [0] : vector<16x32xf32> to vector<32xf32>
      %132 = vector.shape_cast %131 : vector<32xf32> to vector<1x32xf32>
      %c5_i32 = arith.constant 5 : i32
      %133 = arith.addi %57, %c5_i32 : i32
      %134 = arith.index_cast %133 : i32 to index
      %c0_71 = arith.constant 0 : index
      %c0_72 = arith.constant 0 : index
      %135 = vector.load %arg10[%134, %c0_71, %c0_72] : memref<16x16x32xf32, #tpu.memory_space<vmem>>, vector<1x16x32xf32>
      %136 = vector.shape_cast %135 : vector<1x16x32xf32> to vector<16x32xf32>
      %137 = arith.mulf %136, %126 : vector<16x32xf32>
      %138 = arith.index_cast %133 : i32 to index
      %c0_73 = arith.constant 0 : index
      %c0_74 = arith.constant 0 : index
      %139 = vector.load %arg11[%138, %c0_73, %c0_74] : memref<16x16x32xf32, #tpu.memory_space<vmem>>, vector<1x16x32xf32>
      %140 = vector.shape_cast %139 : vector<1x16x32xf32> to vector<16x32xf32>
      %141 = arith.addf %137, %140 : vector<16x32xf32>
      %142 = arith.index_cast %133 : i32 to index
      %c0_75 = arith.constant 0 : index
      %c0_76 = arith.constant 0 : index
      %143 = vector.load %arg12[%142, %c0_75, %c0_76] : memref<16x16x32xf32, #tpu.memory_space<vmem>>, vector<1x16x32xf32>
      %144 = vector.shape_cast %143 : vector<1x16x32xf32> to vector<16x32xf32>
      %145 = arith.mulf %141, %144 : vector<16x32xf32>
      %cst_77 = arith.constant dense<0.000000e+00> : vector<32xf32>
      %146 = vector.multi_reduction <add>, %145, %cst_77 [0] : vector<16x32xf32> to vector<32xf32>
      %147 = vector.shape_cast %146 : vector<32xf32> to vector<1x32xf32>
      %c6_i32 = arith.constant 6 : i32
      %148 = arith.addi %57, %c6_i32 : i32
      %149 = arith.index_cast %148 : i32 to index
      %c0_78 = arith.constant 0 : index
      %c0_79 = arith.constant 0 : index
      %150 = vector.load %arg10[%149, %c0_78, %c0_79] : memref<16x16x32xf32, #tpu.memory_space<vmem>>, vector<1x16x32xf32>
      %151 = vector.shape_cast %150 : vector<1x16x32xf32> to vector<16x32xf32>
      %152 = arith.mulf %151, %141 : vector<16x32xf32>
      %153 = arith.index_cast %148 : i32 to index
      %c0_80 = arith.constant 0 : index
      %c0_81 = arith.constant 0 : index
      %154 = vector.load %arg11[%153, %c0_80, %c0_81] : memref<16x16x32xf32, #tpu.memory_space<vmem>>, vector<1x16x32xf32>
      %155 = vector.shape_cast %154 : vector<1x16x32xf32> to vector<16x32xf32>
      %156 = arith.addf %152, %155 : vector<16x32xf32>
      %157 = arith.index_cast %148 : i32 to index
      %c0_82 = arith.constant 0 : index
      %c0_83 = arith.constant 0 : index
      %158 = vector.load %arg12[%157, %c0_82, %c0_83] : memref<16x16x32xf32, #tpu.memory_space<vmem>>, vector<1x16x32xf32>
      %159 = vector.shape_cast %158 : vector<1x16x32xf32> to vector<16x32xf32>
      %160 = arith.mulf %156, %159 : vector<16x32xf32>
      %cst_84 = arith.constant dense<0.000000e+00> : vector<32xf32>
      %161 = vector.multi_reduction <add>, %160, %cst_84 [0] : vector<16x32xf32> to vector<32xf32>
      %162 = vector.shape_cast %161 : vector<32xf32> to vector<1x32xf32>
      %c7_i32 = arith.constant 7 : i32
      %163 = arith.addi %57, %c7_i32 : i32
      %164 = arith.index_cast %163 : i32 to index
      %c0_85 = arith.constant 0 : index
      %c0_86 = arith.constant 0 : index
      %165 = vector.load %arg10[%164, %c0_85, %c0_86] : memref<16x16x32xf32, #tpu.memory_space<vmem>>, vector<1x16x32xf32>
      %166 = vector.shape_cast %165 : vector<1x16x32xf32> to vector<16x32xf32>
      %167 = arith.mulf %166, %156 : vector<16x32xf32>
      %168 = arith.index_cast %163 : i32 to index
      %c0_87 = arith.constant 0 : index
      %c0_88 = arith.constant 0 : index
      %169 = vector.load %arg11[%168, %c0_87, %c0_88] : memref<16x16x32xf32, #tpu.memory_space<vmem>>, vector<1x16x32xf32>
      %170 = vector.shape_cast %169 : vector<1x16x32xf32> to vector<16x32xf32>
      %171 = arith.addf %167, %170 : vector<16x32xf32>
      %172 = arith.index_cast %163 : i32 to index
      %c0_89 = arith.constant 0 : index
      %c0_90 = arith.constant 0 : index
      %173 = vector.load %arg12[%172, %c0_89, %c0_90] : memref<16x16x32xf32, #tpu.memory_space<vmem>>, vector<1x16x32xf32>
      %174 = vector.shape_cast %173 : vector<1x16x32xf32> to vector<16x32xf32>
      %175 = arith.mulf %171, %174 : vector<16x32xf32>
      %cst_91 = arith.constant dense<0.000000e+00> : vector<32xf32>
      %176 = vector.multi_reduction <add>, %175, %cst_91 [0] : vector<16x32xf32> to vector<32xf32>
      %177 = vector.shape_cast %176 : vector<32xf32> to vector<1x32xf32>
      %178 = tpu.concatenate %72, %87, %102, %117, %132, %147, %162, %177 in 0 : vector<1x32xf32>, vector<1x32xf32>, vector<1x32xf32>, vector<1x32xf32>, vector<1x32xf32>, vector<1x32xf32>, vector<1x32xf32>, vector<1x32xf32> -> vector<8x32xf32>
      %c0_92 = arith.constant 0 : index
      %c0_93 = arith.constant 0 : index
      %179 = arith.index_cast %57 : i32 to index
      %c0_94 = arith.constant 0 : index
      %180 = vector.load %arg3[%c0_92, %c0_93, %179, %c0_94] : memref<1x1x16x32xbf16, #tpu.memory_space<vmem>>, vector<1x1x8x32xbf16>
      %181 = vector.shape_cast %180 : vector<1x1x8x32xbf16> to vector<8x32xbf16>
      %182 = arith.extf %181 : vector<8x32xbf16> to vector<8x32xf32>
      %183 = vector.broadcast %51 : vector<1x32xf32> to vector<8x32xf32>
      %184 = arith.mulf %183, %182 : vector<8x32xf32>
      %185 = arith.addf %178, %184 : vector<8x32xf32>
      %186 = arith.truncf %185 : vector<8x32xf32> to vector<8x32xbf16>
      %c0_95 = arith.constant 0 : index
      %c0_96 = arith.constant 0 : index
      %187 = arith.index_cast %57 : i32 to index
      %c0_97 = arith.constant 0 : index
      %188 = vector.load %arg8[%c0_95, %c0_96, %187, %c0_97] : memref<1x1x16x32xbf16, #tpu.memory_space<vmem>>, vector<1x1x8x32xbf16>
      %189 = vector.shape_cast %188 : vector<1x1x8x32xbf16> to vector<8x32xbf16>
      %190 = vector.shape_cast %186 : vector<8x32xbf16> to vector<1x1x8x32xbf16>
      tpu.vector_store %arg8[%c0_95, %c0_96, %187, %c0_97], %190 {strides = array<i32>} : memref<1x1x16x32xbf16, #tpu.memory_space<vmem>>, vector<1x1x8x32xbf16>,
      scf.yield %171 : vector<16x32xf32>
    }
    %c2_i32_30 = arith.constant 2 : i32
    %c0_31 = arith.constant 0 : index
    %c0_32 = arith.constant 0 : index
    %55 = vector.load %arg9[%c0_31, %c0_32] : memref<16x32xf32, #tpu.memory_space<vmem>>, vector<16x32xf32>
    tpu.vector_store %arg9[%c0_31, %c0_32], %54 {strides = array<i32>} : memref<16x32xf32, #tpu.memory_space<vmem>>, vector<16x32xf32>,
    return
  }
  func.func @transform_0(%arg0: i32, %arg1: i32, %arg2: i32) -> (i32, i32, i32, i32) {
    %c0_i32 = arith.constant 0 : i32
    %c0_i32_0 = arith.constant 0 : i32
    return %arg0, %arg1, %arg2, %c0_i32 : i32, i32, i32, i32
  }
  func.func @transform_1(%arg0: i32, %arg1: i32, %arg2: i32) -> (i32, i32, i32) {
    %c0_i32 = arith.constant 0 : i32
    %c0_i32_0 = arith.constant 0 : i32
    %c0_i32_1 = arith.constant 0 : i32
    return %arg1, %c0_i32, %c0_i32_0 : i32, i32, i32
  }
  func.func @transform_2(%arg0: i32, %arg1: i32, %arg2: i32) -> (i32, i32, i32) {
    %c0_i32 = arith.constant 0 : i32
    %c0_i32_0 = arith.constant 0 : i32
    %c0_i32_1 = arith.constant 0 : i32
    return %arg1, %c0_i32, %c0_i32_0 : i32, i32, i32
  }
  func.func @transform_3(%arg0: i32, %arg1: i32, %arg2: i32) -> (i32, i32, i32) {
    %c0_i32 = arith.constant 0 : i32
    %c0_i32_0 = arith.constant 0 : i32
    %c0_i32_1 = arith.constant 0 : i32
    return %arg1, %c0_i32, %c0_i32_0 : i32, i32, i32
  }
  func.func @transform_4(%arg0: i32, %arg1: i32, %arg2: i32) -> (i32, i32, i32) {
    %c0_i32 = arith.constant 0 : i32
    %c0_i32_0 = arith.constant 0 : i32
    %c0_i32_1 = arith.constant 0 : i32
    return %arg1, %c0_i32, %c0_i32_0 : i32, i32, i32
  }
  func.func @transform_5(%arg0: i32, %arg1: i32, %arg2: i32) -> (i32, i32, i32, i32) {
    %c0_i32 = arith.constant 0 : i32
    %c0_i32_0 = arith.constant 0 : i32
    return %arg0, %arg1, %arg2, %c0_i32 : i32, i32, i32, i32
  }
}

module attributes {stable_mosaic.version = 11 : i64} {
  func.func @_tail_kernel(%arg0: i32, %arg1: memref<128x32xbf16, #tpu.memory_space<vmem>>, %arg2: memref<128x32xbf16, #tpu.memory_space<vmem>>, %arg3: memref<1x32xf32, #tpu.memory_space<vmem>>, %arg4: memref<1x32xf32, #tpu.memory_space<vmem>>, %arg5: memref<32x16xbf16, #tpu.memory_space<vmem>>, %arg6: memref<128x16xf32, #tpu.memory_space<vmem>>) attributes {dimension_semantics = [#tpu.dimension_semantics<parallel>], iteration_bounds = array<i64: 1>, scalar_prefetch = 0 : i64, scratch_operands = 0 : i64, tpu.core_type = #tpu.core_type<tc>, window_params = [{transform_indices = @transform_0, window_bounds = array<i64: 128, 32>}, {transform_indices = @transform_1, window_bounds = array<i64: 128, 32>}, {pipeline_mode = #tpu.pipeline_mode<synchronous>, transform_indices = @transform_2, window_bounds = array<i64: 1, 32>}, {pipeline_mode = #tpu.pipeline_mode<synchronous>, transform_indices = @transform_3, window_bounds = array<i64: 1, 32>}, {pipeline_mode = #tpu.pipeline_mode<synchronous>, transform_indices = @transform_4, window_bounds = array<i64: 32, 16>}, {transform_indices = @transform_5, window_bounds = array<i64: 128, 16>}]} {
    %c0 = arith.constant 0 : index
    %c0_0 = arith.constant 0 : index
    %0 = vector.load %arg1[%c0, %c0_0] : memref<128x32xbf16, #tpu.memory_space<vmem>>, vector<128x32xbf16>
    %1 = arith.extf %0 : vector<128x32xbf16> to vector<128x32xf32>
    %cst = arith.constant dense<0.000000e+00> : vector<128xf32>
    %2 = vector.multi_reduction <add>, %1, %cst [1] : vector<128x32xf32> to vector<128xf32>
    %3 = vector.shape_cast %2 : vector<128xf32> to vector<128x1xf32>
    %cst_1 = arith.constant 3.200000e+01 : f32
    %4 = vector.broadcast %cst_1 : f32 to vector<128x1xf32>
    %5 = arith.divf %3, %4 : vector<128x1xf32>
    %6 = vector.broadcast %5 : vector<128x1xf32> to vector<128x32xf32>
    %7 = arith.subf %1, %6 : vector<128x32xf32>
    %8 = arith.mulf %7, %7 : vector<128x32xf32>
    %cst_2 = arith.constant dense<0.000000e+00> : vector<128xf32>
    %9 = vector.multi_reduction <add>, %8, %cst_2 [1] : vector<128x32xf32> to vector<128xf32>
    %10 = vector.shape_cast %9 : vector<128xf32> to vector<128x1xf32>
    %cst_3 = arith.constant 3.200000e+01 : f32
    %11 = vector.broadcast %cst_3 : f32 to vector<128x1xf32>
    %12 = arith.divf %10, %11 : vector<128x1xf32>
    %cst_4 = arith.constant 9.99999974E-6 : f32
    %13 = vector.broadcast %cst_4 : f32 to vector<128x1xf32>
    %14 = arith.addf %12, %13 : vector<128x1xf32>
    %15 = math.rsqrt %14 : vector<128x1xf32>
    %16 = vector.broadcast %15 : vector<128x1xf32> to vector<128x32xf32>
    %17 = arith.mulf %7, %16 : vector<128x32xf32>
    %c0_5 = arith.constant 0 : index
    %c0_6 = arith.constant 0 : index
    %18 = vector.load %arg3[%c0_5, %c0_6] : memref<1x32xf32, #tpu.memory_space<vmem>>, vector<1x32xf32>
    %19 = vector.broadcast %18 : vector<1x32xf32> to vector<128x32xf32>
    %20 = arith.mulf %17, %19 : vector<128x32xf32>
    %c0_7 = arith.constant 0 : index
    %c0_8 = arith.constant 0 : index
    %21 = vector.load %arg4[%c0_7, %c0_8] : memref<1x32xf32, #tpu.memory_space<vmem>>, vector<1x32xf32>
    %22 = vector.broadcast %21 : vector<1x32xf32> to vector<128x32xf32>
    %23 = arith.addf %20, %22 : vector<128x32xf32>
    %c0_9 = arith.constant 0 : index
    %c0_10 = arith.constant 0 : index
    %24 = vector.load %arg2[%c0_9, %c0_10] : memref<128x32xbf16, #tpu.memory_space<vmem>>, vector<128x32xbf16>
    %25 = arith.extf %24 : vector<128x32xbf16> to vector<128x32xf32>
    %26 = arith.negf %25 : vector<128x32xf32>
    %27 = math.exp %26 : vector<128x32xf32>
    %cst_11 = arith.constant 1.000000e+00 : f32
    %28 = vector.broadcast %cst_11 : f32 to vector<128x32xf32>
    %29 = arith.addf %28, %27 : vector<128x32xf32>
    %30 = arith.divf %28, %29 : vector<128x32xf32>
    %31 = arith.mulf %25, %30 : vector<128x32xf32>
    %32 = arith.mulf %23, %31 : vector<128x32xf32>
    %33 = arith.truncf %32 : vector<128x32xf32> to vector<128x32xbf16>
    %c0_12 = arith.constant 0 : index
    %c0_13 = arith.constant 0 : index
    %34 = vector.load %arg5[%c0_12, %c0_13] : memref<32x16xbf16, #tpu.memory_space<vmem>>, vector<32x16xbf16>
    %cst_14 = arith.constant dense<0.000000e+00> : vector<128x16xf32>
    %35 = tpu.matmul %33, %34, %cst_14 {dimension_numbers = #tpu.dot_dimension_numbers<[1], [0], [0], [1], [0, 0, 1, 1], [], []>} : vector<128x32xbf16>, vector<32x16xbf16>, vector<128x16xf32> -> vector<128x16xf32>
    %c0_15 = arith.constant 0 : index
    %c0_16 = arith.constant 0 : index
    %36 = vector.load %arg6[%c0_15, %c0_16] : memref<128x16xf32, #tpu.memory_space<vmem>>, vector<128x16xf32>
    tpu.vector_store %arg6[%c0_15, %c0_16], %35 {strides = array<i32>} : memref<128x16xf32, #tpu.memory_space<vmem>>, vector<128x16xf32>,
    return
  }
  func.func @transform_0(%arg0: i32) -> (i32, i32) {
    %c0_i32 = arith.constant 0 : i32
    %c0_i32_0 = arith.constant 0 : i32
    return %arg0, %c0_i32 : i32, i32
  }
  func.func @transform_1(%arg0: i32) -> (i32, i32) {
    %c0_i32 = arith.constant 0 : i32
    %c0_i32_0 = arith.constant 0 : i32
    return %arg0, %c0_i32 : i32, i32
  }
  func.func @transform_2(%arg0: i32) -> (i32, i32) {
    %c0_i32 = arith.constant 0 : i32
    %c0_i32_0 = arith.constant 0 : i32
    %c0_i32_1 = arith.constant 0 : i32
    return %c0_i32, %c0_i32_0 : i32, i32
  }
  func.func @transform_3(%arg0: i32) -> (i32, i32) {
    %c0_i32 = arith.constant 0 : i32
    %c0_i32_0 = arith.constant 0 : i32
    %c0_i32_1 = arith.constant 0 : i32
    return %c0_i32, %c0_i32_0 : i32, i32
  }
  func.func @transform_4(%arg0: i32) -> (i32, i32) {
    %c0_i32 = arith.constant 0 : i32
    %c0_i32_0 = arith.constant 0 : i32
    %c0_i32_1 = arith.constant 0 : i32
    return %c0_i32, %c0_i32_0 : i32, i32
  }
  func.func @transform_5(%arg0: i32) -> (i32, i32) {
    %c0_i32 = arith.constant 0 : i32
    %c0_i32_0 = arith.constant 0 : i32
    return %arg0, %c0_i32 : i32, i32
  }
}

</mosaic_0001>

<llo_original>
// kernel: ss2d_forward.4
$region0: #{ss2d_forward.4}
  #allocation0 [shape = 'u32[]', space=smem, size = 0x4, offset = 0x4, fixed_abs, tag = 'smem constant byte address 0x4 - core index']
  #allocation1 [shape = 'u32[144,128]{1,0:T(1,128)}', space=vmem, size = 0x12000, scoped, tag = 'internal scratch']
  %s0 = inlined_call_operand.vmem [shape: bf16[128,16], index: 0, kind: input, shape index: {}]
  %s1 = inlined_call_operand.vmem [shape: bf16[16,32], index: 1, kind: input, shape index: {}]
  %s2 = inlined_call_operand.vmem [shape: bf16[16,32], index: 2, kind: input, shape index: {}]
  %s3 = inlined_call_operand.vmem [shape: bf16[128,32], index: 3, kind: output, shape index: {0}]
  %s4 = inlined_call_operand.vmem [shape: bf16[128,32], index: 4, kind: output, shape index: {1}]
  %5 = xla_tuple %s3, %s4
  %s6 = sld [smem:[#allocation0]]
  $region30: #{ss2d_forward.4} parent=0
    _
  %s8 = ssub.s32 1, %s6
  %s9 = scalar_select 0, %s8, %s6
  // Predicated region
  $region2: #{ss2d_forward.4} parent=0 // pred_check
    _
  $region3: #{ss2d_forward.4} parent=0 // pred_check_branch
    %11 = sbr.rel (0) target = $region5
  $region4: #{ss2d_forward.4} parent=0 // pred_region
    _
  $region5: #{ss2d_forward.4} parent=0 // pred_fallthru
    _
  // Predicated region
  $region6: #{ss2d_forward.4} parent=0 // pred_check
    _
  $region7: #{ss2d_forward.4} parent=0 // pred_check_branch
    %13 = sbr.rel (0) target = $region9
  $region8: #{ss2d_forward.4} parent=0 // pred_region
    _
  $region9: #{ss2d_forward.4} parent=0 // pred_fallthru
    _
  // Predicated region
  $region10: #{ss2d_forward.4} parent=0 // pred_check
    _
  $region11: #{ss2d_forward.4} parent=0 // pred_check_branch
    %15 = sbr.rel (0) target = $region13
  $region12: #{ss2d_forward.4} parent=0 // pred_region
    _
  $region13: #{ss2d_forward.4} parent=0 // pred_fallthru
    _
  %v17 = vld [vmem:[%s0] sm:$0xf]
  %v18 = vld [vmem:[%s0 + $0x4] sm:$0xf]
  %v19 = vld [vmem:[%s0 + $0x8] sm:$0xf]
  %v20 = vld [vmem:[%s0 + $0xc] sm:$0xf]
  %v21 = vld [vmem:[%s0 + $0x10] sm:$0xf]
  %v22 = vld [vmem:[%s0 + $0x14] sm:$0xf]
  %v23 = vld [vmem:[%s0 + $0x18] sm:$0xf]
  %v24 = vld [vmem:[%s0 + $0x1c] sm:$0xf]
  %v25 = vld [vmem:[%s0 + $0x20] sm:$0xf]
  %v26 = vld [vmem:[%s0 + $0x24] sm:$0xf]
  %v27 = vld [vmem:[%s0 + $0x28] sm:$0xf]
  %v28 = vld [vmem:[%s0 + $0x2c] sm:$0xf]
  %v29 = vld [vmem:[%s0 + $0x30] sm:$0xf]
  %v30 = vld [vmem:[%s0 + $0x34] sm:$0xf]
  %v31 = vld [vmem:[%s0 + $0x38] sm:$0xf]
  %v32 = vld [vmem:[%s0 + $0x3c] sm:$0xf]
  %v33 = vld [vmem:[%s1] sm:$0xf]
  %v34 = vld [vmem:[%s1 + $0x4] sm:$0xf]
  %v51 = vunpack.c.l.b16 %v17
  %v52 = vunpack.c.l.b16 %v18
  %v53 = vunpack.c.l.b16 %v19
  %v54 = vunpack.c.l.b16 %v20
  %v55 = vunpack.c.l.b16 %v21
  %v56 = vunpack.c.l.b16 %v22
  %v57 = vunpack.c.l.b16 %v23
  %v58 = vunpack.c.l.b16 %v24
  %v59 = vunpack.c.l.b16 %v25
  %v60 = vunpack.c.l.b16 %v26
  %v61 = vunpack.c.l.b16 %v27
  %v62 = vunpack.c.l.b16 %v28
  %v63 = vunpack.c.l.b16 %v29
  %v64 = vunpack.c.l.b16 %v30
  %v65 = vunpack.c.l.b16 %v31
  %v66 = vunpack.c.l.b16 %v32
  %v67 = vpack.c.b16 %v52, %v51
  %v68 = vpack.c.b16 %v54, %v53
  %v69 = vpack.c.b16 %v56, %v55
  %v70 = vpack.c.b16 %v58, %v57
  %v71 = vpack.c.b16 %v60, %v59
  %v72 = vpack.c.b16 %v62, %v61
  %v73 = vpack.c.b16 %v64, %v63
  %v74 = vpack.c.b16 %v66, %v65
  %v77 = vunpack.c.l.b16 %v33
  %v78 = vunpack.c.l.b16 %v34
  %v79 = vpack.c.b16 %v78, %v77
  %vm81 = vcmask 130048
  %v83 = vsel %vm81, %v67, 0
  %v86 = vsel %vm81, %v68, 0
  %v89 = vsel %vm81, %v69, 0
  %v92 = vsel %vm81, %v70, 0
  %v95 = vsel %vm81, %v71, 0
  %v98 = vsel %vm81, %v72, 0
  %v101 = vsel %vm81, %v73, 0
  %v104 = vsel %vm81, %v74, 0
  %106 = vmatprep.subr.bf16.mxu0 0
  %107 = vmatpush1.bf16.msra.mxu0 %v79
  %108 = vmatprep.subr.bf16.mxu0 0
  %109 = vmatpush1.bf16.msra.mxu0 0
  %110 = vmatprep.subr.bf16.mxu0 0
  %111 = vmatpush1.bf16.msra.mxu0 0
  %112 = vmatprep.subr.bf16.mxu0 0
  %113 = vmatpush1.bf16.msra.mxu0 0
  %114 = vmatprep.subr.bf16.mxu0 0
  %115 = vmatpush1.bf16.msra.mxu0 0
  %116 = vmatprep.subr.bf16.mxu0 0
  %117 = vmatpush1.bf16.msra.mxu0 0
  %118 = vmatprep.subr.bf16.mxu0 0
  %119 = vmatpush1.bf16.msra.mxu0 0
  %120 = vmatprep.subr.bf16.mxu0 0
  %121 = vmatpush1.bf16.msra.mxu0 0
  %122 = vmatprep.subr.bf16.mxu0 0
  %123 = vmatpush1.bf16.msra.mxu0 0
  %124 = vmatprep.subr.bf16.mxu0 0
  %125 = vmatpush1.bf16.msra.mxu0 0
  %126 = vmatprep.subr.bf16.mxu0 0
  %127 = vmatpush1.bf16.msra.mxu0 0
  %128 = vmatprep.subr.bf16.mxu0 0
  %129 = vmatpush1.bf16.msra.mxu0 0
  %130 = vmatprep.subr.bf16.mxu0 0
  %131 = vmatpush1.bf16.msra.mxu0 0
  %132 = vmatprep.subr.bf16.mxu0 0
  %133 = vmatpush1.bf16.msra.mxu0 0
  %134 = vmatprep.subr.bf16.mxu0 0
  %135 = vmatpush1.bf16.msra.mxu0 0
  %136 = vmatprep.subr.bf16.mxu0 0
  %137 = vmatpush1.bf16.msra.mxu0 0
  %138 = vmatprep.mubr.bf16.mxu0 0
  %139 = vmatmul.mubr.bf16.gmra.mrb[0].mxu0 %v83
  %v140 = vpop.f32.mrb[0].mxu0
  %v141 = vadd.f32 0.0, %v140
  %v142 = vpop.f32.mrb[0].mxu0
  %v143 = vpop.f32.mrb[0].mxu0
  %v144 = vadd.f32 0.0, %v143
  %v145 = vpop.f32.mrb[0].mxu0
  %146 = vmatprep.mubr.bf16.mxu0 0
  %147 = vmatmul.mubr.bf16.gmra.mrb[0].mxu0 %v86
  %v148 = vpop.f32.mrb[0].mxu0
  %v149 = vadd.f32 0.0, %v148
  %v150 = vpop.f32.mrb[0].mxu0
  %v151 = vpop.f32.mrb[0].mxu0
  %v152 = vadd.f32 0.0, %v151
  %v153 = vpop.f32.mrb[0].mxu0
  %154 = vmatprep.mubr.bf16.mxu0 0
  %155 = vmatmul.mubr.bf16.gmra.mrb[0].mxu0 %v89
  %v156 = vpop.f32.mrb[0].mxu0
  %v157 = vadd.f32 0.0, %v156
  %v158 = vpop.f32.mrb[0].mxu0
  %v159 = vpop.f32.mrb[0].mxu0
  %v160 = vadd.f32 0.0, %v159
  %v161 = vpop.f32.mrb[0].mxu0
  %162 = vmatprep.mubr.bf16.mxu0 0
  %163 = vmatmul.mubr.bf16.gmra.mrb[0].mxu0 %v92
  %v164 = vpop.f32.mrb[0].mxu0
  %v165 = vadd.f32 0.0, %v164
  %v166 = vpop.f32.mrb[0].mxu0
  %v167 = vpop.f32.mrb[0].mxu0
  %v168 = vadd.f32 0.0, %v167
  %v169 = vpop.f32.mrb[0].mxu0
  %170 = vmatprep.mubr.bf16.mxu0 0
  %171 = vmatmul.mubr.bf16.gmra.mrb[0].mxu0 %v95
  %v172 = vpop.f32.mrb[0].mxu0
  %v173 = vadd.f32 0.0, %v172
  %v174 = vpop.f32.mrb[0].mxu0
  %v175 = vpop.f32.mrb[0].mxu0
  %v176 = vadd.f32 0.0, %v175
  %v177 = vpop.f32.mrb[0].mxu0
  %178 = vmatprep.mubr.bf16.mxu0 0
  %179 = vmatmul.mubr.bf16.gmra.mrb[0].mxu0 %v98
  %v180 = vpop.f32.mrb[0].mxu0
  %v181 = vadd.f32 0.0, %v180
  %v182 = vpop.f32.mrb[0].mxu0
  %v183 = vpop.f32.mrb[0].mxu0
  %v184 = vadd.f32 0.0, %v183
  %v185 = vpop.f32.mrb[0].mxu0
  %186 = vmatprep.mubr.bf16.mxu0 0
  %187 = vmatmul.mubr.bf16.gmra.mrb[0].mxu0 %v101
  %v188 = vpop.f32.mrb[0].mxu0
  %v189 = vadd.f32 0.0, %v188
  %v190 = vpop.f32.mrb[0].mxu0
  %v191 = vpop.f32.mrb[0].mxu0
  %v192 = vadd.f32 0.0, %v191
  %v193 = vpop.f32.mrb[0].mxu0
  %194 = vmatprep.mubr.bf16.mxu0 0
  %195 = vmatmul.mubr.bf16.gmra.mrb[0].mxu0 %v104
  %v196 = vpop.f32.mrb[0].mxu0
  %v197 = vadd.f32 0.0, %v196
  %v198 = vpop.f32.mrb[0].mxu0
  %v199 = vpop.f32.mrb[0].mxu0
  %v200 = vadd.f32 0.0, %v199
  %v201 = vpop.f32.mrb[0].mxu0
  %202 = vdwg.mxu0
  %v203 = vpack.c.bf16 %v144, %v141
  %v204 = vpack.c.bf16 %v152, %v149
  %v205 = vpack.c.bf16 %v160, %v157
  %v206 = vpack.c.bf16 %v168, %v165
  %v207 = vpack.c.bf16 %v176, %v173
  %v208 = vpack.c.bf16 %v184, %v181
  %v209 = vpack.c.bf16 %v192, %v189
  %v210 = vpack.c.bf16 %v200, %v197
  %v219 = vunpack.c.l.b16 %v203
  %v220 = vunpack.c.h.b16 %v203
  %v221 = vunpack.c.l.b16 %v204
  %v222 = vunpack.c.h.b16 %v204
  %v223 = vunpack.c.l.b16 %v205
  %v224 = vunpack.c.h.b16 %v205
  %v225 = vunpack.c.l.b16 %v206
  %v226 = vunpack.c.h.b16 %v206
  %v227 = vunpack.c.l.b16 %v207
  %v228 = vunpack.c.h.b16 %v207
  %v229 = vunpack.c.l.b16 %v208
  %v230 = vunpack.c.h.b16 %v208
  %v231 = vunpack.c.l.b16 %v209
  %v232 = vunpack.c.h.b16 %v209
  %v233 = vunpack.c.l.b16 %v210
  %v234 = vunpack.c.h.b16 %v210
  %v235 = vpack.c.b16 %v219, %v219
  %v236 = vpack.c.b16 %v220, %v220
  %v237 = vpack.c.b16 %v221, %v221
  %v238 = vpack.c.b16 %v222, %v222
  %v239 = vpack.c.b16 %v223, %v223
  %v240 = vpack.c.b16 %v224, %v224
  %v241 = vpack.c.b16 %v225, %v225
  %v242 = vpack.c.b16 %v226, %v226
  %v243 = vpack.c.b16 %v227, %v227
  %v244 = vpack.c.b16 %v228, %v228
  %v245 = vpack.c.b16 %v229, %v229
  %v246 = vpack.c.b16 %v230, %v230
  %v247 = vpack.c.b16 %v231, %v231
  %v248 = vpack.c.b16 %v232, %v232
  %v249 = vpack.c.b16 %v233, %v233
  %v250 = vpack.c.b16 %v234, %v234
  %vm267 = vcmask 257024
  %268 = vst.msk [vmem:[%s3] sm:$0xf] %vm267, %v235
  %269 = vst.msk [vmem:[%s3 + $0x4] sm:$0xf] %vm267, %v236
  %270 = vst.msk [vmem:[%s3 + $0x8] sm:$0xf] %vm267, %v237
  %271 = vst.msk [vmem:[%s3 + $0xc] sm:$0xf] %vm267, %v238
  %272 = vst.msk [vmem:[%s3 + $0x10] sm:$0xf] %vm267, %v239
  %273 = vst.msk [vmem:[%s3 + $0x14] sm:$0xf] %vm267, %v240
  %274 = vst.msk [vmem:[%s3 + $0x18] sm:$0xf] %vm267, %v241
  %275 = vst.msk [vmem:[%s3 + $0x1c] sm:$0xf] %vm267, %v242
  %276 = vst.msk [vmem:[%s3 + $0x20] sm:$0xf] %vm267, %v243
  %277 = vst.msk [vmem:[%s3 + $0x24] sm:$0xf] %vm267, %v244
  %278 = vst.msk [vmem:[%s3 + $0x28] sm:$0xf] %vm267, %v245
  %279 = vst.msk [vmem:[%s3 + $0x2c] sm:$0xf] %vm267, %v246
  %280 = vst.msk [vmem:[%s3 + $0x30] sm:$0xf] %vm267, %v247
  %281 = vst.msk [vmem:[%s3 + $0x34] sm:$0xf] %vm267, %v248
  %282 = vst.msk [vmem:[%s3 + $0x38] sm:$0xf] %vm267, %v249
  %283 = vst.msk [vmem:[%s3 + $0x3c] sm:$0xf] %vm267, %v250
  %v284 = vld [vmem:[%s2] sm:$0xf]
  %v285 = vld [vmem:[%s2 + $0x4] sm:$0xf]
  %v288 = vunpack.c.l.b16 %v284
  %v289 = vunpack.c.l.b16 %v285
  %v290 = vpack.c.b16 %v289, %v288
  %292 = vmatprep.subr.bf16.mxu0 0
  %293 = vmatpush1.bf16.msra.mxu0 %v290
  %294 = vmatprep.subr.bf16.mxu0 0
  %295 = vmatpush1.bf16.msra.mxu0 0
  %296 = vmatprep.subr.bf16.mxu0 0
  %297 = vmatpush1.bf16.msra.mxu0 0
  %298 = vmatprep.subr.bf16.mxu0 0
  %299 = vmatpush1.bf16.msra.mxu0 0
  %300 = vmatprep.subr.bf16.mxu0 0
  %301 = vmatpush1.bf16.msra.mxu0 0
  %302 = vmatprep.subr.bf16.mxu0 0
  %303 = vmatpush1.bf16.msra.mxu0 0
  %304 = vmatprep.subr.bf16.mxu0 0
  %305 = vmatpush1.bf16.msra.mxu0 0
  %306 = vmatprep.subr.bf16.mxu0 0
  %307 = vmatpush1.bf16.msra.mxu0 0
  %308 = vmatprep.subr.bf16.mxu0 0
  %309 = vmatpush1.bf16.msra.mxu0 0
  %310 = vmatprep.subr.bf16.mxu0 0
  %311 = vmatpush1.bf16.msra.mxu0 0
  %312 = vmatprep.subr.bf16.mxu0 0
  %313 = vmatpush1.bf16.msra.mxu0 0
  %314 = vmatprep.subr.bf16.mxu0 0
  %315 = vmatpush1.bf16.msra.mxu0 0
  %316 = vmatprep.subr.bf16.mxu0 0
  %317 = vmatpush1.bf16.msra.mxu0 0
  %318 = vmatprep.subr.bf16.mxu0 0
  %319 = vmatpush1.bf16.msra.mxu0 0
  %320 = vmatprep.subr.bf16.mxu0 0
  %321 = vmatpush1.bf16.msra.mxu0 0
  %322 = vmatprep.subr.bf16.mxu0 0
  %323 = vmatpush1.bf16.msra.mxu0 0
  %324 = vmatprep.mubr.bf16.mxu0 0
  %325 = vmatmul.mubr.bf16.gmra.mrb[0].mxu0 %v83
  %v326 = vpop.f32.mrb[0].mxu0
  %v327 = vadd.f32 0.0, %v326
  %v328 = vpop.f32.mrb[0].mxu0
  %v329 = vpop.f32.mrb[0].mxu0
  %v330 = vadd.f32 0.0, %v329
  %v331 = vpop.f32.mrb[0].mxu0
  %332 = vmatprep.mubr.bf16.mxu0 0
  %333 = vmatmul.mubr.bf16.gmra.mrb[0].mxu0 %v86
  %v334 = vpop.f32.mrb[0].mxu0
  %v335 = vadd.f32 0.0, %v334
  %v336 = vpop.f32.mrb[0].mxu0
  %v337 = vpop.f32.mrb[0].mxu0
  %v338 = vadd.f32 0.0, %v337
  %v339 = vpop.f32.mrb[0].mxu0
  %340 = vmatprep.mubr.bf16.mxu0 0
  %341 = vmatmul.mubr.bf16.gmra.mrb[0].mxu0 %v89
  %v342 = vpop.f32.mrb[0].mxu0
  %v343 = vadd.f32 0.0, %v342
  %v344 = vpop.f32.mrb[0].mxu0
  %v345 = vpop.f32.mrb[0].mxu0
  %v346 = vadd.f32 0.0, %v345
  %v347 = vpop.f32.mrb[0].mxu0
  %348 = vmatprep.mubr.bf16.mxu0 0
  %349 = vmatmul.mubr.bf16.gmra.mrb[0].mxu0 %v92
  %v350 = vpop.f32.mrb[0].mxu0
  %v351 = vadd.f32 0.0, %v350
  %v352 = vpop.f32.mrb[0].mxu0
  %v353 = vpop.f32.mrb[0].mxu0
  %v354 = vadd.f32 0.0, %v353
  %v355 = vpop.f32.mrb[0].mxu0
  %356 = vmatprep.mubr.bf16.mxu0 0
  %357 = vmatmul.mubr.bf16.gmra.mrb[0].mxu0 %v95
  %v358 = vpop.f32.mrb[0].mxu0
  %v359 = vadd.f32 0.0, %v358
  %v360 = vpop.f32.mrb[0].mxu0
  %v361 = vpop.f32.mrb[0].mxu0
  %v362 = vadd.f32 0.0, %v361
  %v363 = vpop.f32.mrb[0].mxu0
  %364 = vmatprep.mubr.bf16.mxu0 0
  %365 = vmatmul.mubr.bf16.gmra.mrb[0].mxu0 %v98
  %v366 = vpop.f32.mrb[0].mxu0
  %v367 = vadd.f32 0.0, %v366
  %v368 = vpop.f32.mrb[0].mxu0
  %v369 = vpop.f32.mrb[0].mxu0
  %v370 = vadd.f32 0.0, %v369
  %v371 = vpop.f32.mrb[0].mxu0
  %372 = vmatprep.mubr.bf16.mxu0 0
  %373 = vmatmul.mubr.bf16.gmra.mrb[0].mxu0 %v101
  %v374 = vpop.f32.mrb[0].mxu0
  %v375 = vadd.f32 0.0, %v374
  %v376 = vpop.f32.mrb[0].mxu0
  %v377 = vpop.f32.mrb[0].mxu0
  %v378 = vadd.f32 0.0, %v377
  %v379 = vpop.f32.mrb[0].mxu0
  %380 = vmatprep.mubr.bf16.mxu0 0
  %381 = vmatmul.mubr.bf16.gmra.mrb[0].mxu0 %v104
  %v382 = vpop.f32.mrb[0].mxu0
  %v383 = vadd.f32 0.0, %v382
  %v384 = vpop.f32.mrb[0].mxu0
  %v385 = vpop.f32.mrb[0].mxu0
  %v386 = vadd.f32 0.0, %v385
  %v387 = vpop.f32.mrb[0].mxu0
  %388 = vdwg.mxu0
  %v389 = vpack.c.bf16 %v330, %v327
  %v390 = vpack.c.bf16 %v338, %v335
  %v391 = vpack.c.bf16 %v346, %v343
  %v392 = vpack.c.bf16 %v354, %v351
  %v393 = vpack.c.bf16 %v362, %v359
  %v394 = vpack.c.bf16 %v370, %v367
  %v395 = vpack.c.bf16 %v378, %v375
  %v396 = vpack.c.bf16 %v386, %v383
  %v405 = vunpack.c.l.b16 %v389
  %v406 = vunpack.c.h.b16 %v389
  %v407 = vunpack.c.l.b16 %v390
  %v408 = vunpack.c.h.b16 %v390
  %v409 = vunpack.c.l.b16 %v391
  %v410 = vunpack.c.h.b16 %v391
  %v411 = vunpack.c.l.b16 %v392
  %v412 = vunpack.c.h.b16 %v392
  %v413 = vunpack.c.l.b16 %v393
  %v414 = vunpack.c.h.b16 %v393
  %v415 = vunpack.c.l.b16 %v394
  %v416 = vunpack.c.h.b16 %v394
  %v417 = vunpack.c.l.b16 %v395
  %v418 = vunpack.c.h.b16 %v395
  %v419 = vunpack.c.l.b16 %v396
  %v420 = vunpack.c.h.b16 %v396
  %v421 = vpack.c.b16 %v405, %v405
  %v422 = vpack.c.b16 %v406, %v406
  %v423 = vpack.c.b16 %v407, %v407
  %v424 = vpack.c.b16 %v408, %v408
  %v425 = vpack.c.b16 %v409, %v409
  %v426 = vpack.c.b16 %v410, %v410
  %v427 = vpack.c.b16 %v411, %v411
  %v428 = vpack.c.b16 %v412, %v412
  %v429 = vpack.c.b16 %v413, %v413
  %v430 = vpack.c.b16 %v414, %v414
  %v431 = vpack.c.b16 %v415, %v415
  %v432 = vpack.c.b16 %v416, %v416
  %v433 = vpack.c.b16 %v417, %v417
  %v434 = vpack.c.b16 %v418, %v418
  %v435 = vpack.c.b16 %v419, %v419
  %v436 = vpack.c.b16 %v420, %v420
  %453 = vst.msk [vmem:[%s4] sm:$0xf] %vm267, %v421
  %454 = vst.msk [vmem:[%s4 + $0x4] sm:$0xf] %vm267, %v422
  %455 = vst.msk [vmem:[%s4 + $0x8] sm:$0xf] %vm267, %v423
  %456 = vst.msk [vmem:[%s4 + $0xc] sm:$0xf] %vm267, %v424
  %457 = vst.msk [vmem:[%s4 + $0x10] sm:$0xf] %vm267, %v425
  %458 = vst.msk [vmem:[%s4 + $0x14] sm:$0xf] %vm267, %v426
  %459 = vst.msk [vmem:[%s4 + $0x18] sm:$0xf] %vm267, %v427
  %460 = vst.msk [vmem:[%s4 + $0x1c] sm:$0xf] %vm267, %v428
  %461 = vst.msk [vmem:[%s4 + $0x20] sm:$0xf] %vm267, %v429
  %462 = vst.msk [vmem:[%s4 + $0x24] sm:$0xf] %vm267, %v430
  %463 = vst.msk [vmem:[%s4 + $0x28] sm:$0xf] %vm267, %v431
  %464 = vst.msk [vmem:[%s4 + $0x2c] sm:$0xf] %vm267, %v432
  %465 = vst.msk [vmem:[%s4 + $0x30] sm:$0xf] %vm267, %v433
  %466 = vst.msk [vmem:[%s4 + $0x34] sm:$0xf] %vm267, %v434
  %467 = vst.msk [vmem:[%s4 + $0x38] sm:$0xf] %vm267, %v435
  %468 = vst.msk [vmem:[%s4 + $0x3c] sm:$0xf] %vm267, %v436
  // Predicated region
  $region14: #{ss2d_forward.4} parent=0 // pred_check
    _
  $region15: #{ss2d_forward.4} parent=0 // pred_check_branch
    %470 = sbr.rel (0) target = $region17
  $region16: #{ss2d_forward.4} parent=0 // pred_region
    _
  $region17: #{ss2d_forward.4} parent=0 // pred_fallthru
    _
  // Predicated region
  $region18: #{ss2d_forward.4} parent=0 // pred_check
    _
  $region19: #{ss2d_forward.4} parent=0 // pred_check_branch
    %472 = sbr.rel (0) target = $region21
  $region20: #{ss2d_forward.4} parent=0 // pred_region
    _
  $region21: #{ss2d_forward.4} parent=0 // pred_fallthru
    _
  // Predicated region
  $region22: #{ss2d_forward.4} parent=0 // pred_check
    _
  $region23: #{ss2d_forward.4} parent=0 // pred_check_branch
    %474 = sbr.rel (0) target = $region25
  $region24: #{ss2d_forward.4} parent=0 // pred_region
    _
  $region25: #{ss2d_forward.4} parent=0 // pred_fallthru
    _
  // Predicated region
  $region26: #{ss2d_forward.4} parent=0 // pred_check
    _
  $region27: #{ss2d_forward.4} parent=0 // pred_check_branch
    %476 = sbr.rel (0) target = $region29
  $region28: #{ss2d_forward.4} parent=0 // pred_region
    _
  $region29: #{ss2d_forward.4} parent=0 // pred_fallthru
    _

// kernel: ss2d_forward.5
$region0: #{ss2d_forward.5}
  #allocation0 [shape = 'u32[]', space=smem, size = 0x4, offset = 0x4, fixed_abs, tag = 'smem constant byte address 0x4 - core index']
  #allocation1 [shape = 'u32[144,128]{1,0:T(1,128)}', space=vmem, size = 0x12000, scoped, tag = 'internal scratch']
  #allocation2 [shape = 'bf16[10,10,32]{2,1,0:T(8,128)(2,1)}', space=vmem, size = 0xa000, scoped, tag = 'scratch operand']
  %s0 = inlined_call_operand.vmem [shape: bf16[2,8,8,32], index: 0, kind: input, shape index: {}]
  %s1 = inlined_call_operand.vmem [shape: f32[3,3,32], index: 1, kind: input, shape index: {}]
  %s2 = inlined_call_operand.vmem [shape: f32[1,1,32], index: 2, kind: input, shape index: {}]
  %s3 = inlined_call_operand.vmem [shape: bf16[2,8,8,32], index: 3, kind: output, shape index: {}]
  %s4 = sld [smem:[#allocation0]]
  $region45: #{ss2d_forward.5} parent=0
    _
  %s6 = ssub.s32 1, %s4
  %s7 = scalar_select 0, %s6, %s4
  loop: start=0, step=1, limit=4
  $region2: #{ss2d_forward.5} parent=0 // loop_pre_header
    _
  $region3: #{ss2d_forward.5} parent=0 // loop_header
    %s9 = sphi 0, %s13
    %p10 = scmp.ge.s32.totalorder %s9, 4
    %s19 = sphi 0, %s21
    %s22 = sphi 0, %s19
    %s23 = sphi 0, %s22
    %s39 = sphi 0, %s23
    %s43 = sphi 0, %s43
    %s45 = sphi 0, %s43
    %s46 = sphi 0, %s45
    %s60 = sphi 0, %s46
    %s64 = sphi 0, %s64
    %s66 = sphi 0, %s64
    %s67 = sphi 0, %s66
    %s81 = sphi 0, %s67
    %s87 = sphi 0, %s89
    %s90 = sphi 0, %s87
    %s91 = sphi 0, %s90
    %s107 = sphi 0, %s91
  $region4: #{ss2d_forward.5} parent=0 // loop_header_branch
    %12 = sbr.rel (%p10) target = $region8
  $region5: #{ss2d_forward.5} parent=0 // loop_body
    %s14 = ssub.s32 %s9, 1
    %s15 = ssub.s32 %s9, 2
    %s16 = sadd.s32 %s9, 1
    %s17 = ssub.s32 %s9, %s16
    %p18 = scmp.eq.s32.totalorder %s17, 0
    %s20 = sadd.s32 %s19, 1
    %s21 = scalar_select %p18, %s19, %s20
    %p24 = pneg %p18
    %p25 = scmp.eq.s32.totalorder %s9, 1
    %p26 = por %p24, %p25
    %p27 = scmp.ne.s32.totalorder %s19, %s22
    %p28 = scmp.eq.s32.totalorder %s9, 0
    %p29 = por %p27, %p28
    %p30 = scmp.ne.s32.totalorder %s19, %s22
    %p31 = scmp.eq.s32.totalorder %s14, 1
    %p32 = por %p30, %p31
    %p33 = scmp.ne.s32.totalorder %s22, %s23
    %p34 = scmp.eq.s32.totalorder %s14, 0
    %p35 = por %p33, %p34
    %p36 = scmp.ne.s32.totalorder %s22, %s23
    %p37 = scmp.eq.s32.totalorder %s15, 1
    %p38 = por %p36, %p37
    %p40 = scmp.ne.s32.totalorder %s23, %s39
    %p41 = scmp.eq.s32.totalorder %s15, 0
    %p42 = por %p40, %p41
    %s44 = sadd.s32 %s43, 1
    %p47 = scmp.eq.s32.totalorder %s9, 1
    %p48 = scmp.ne.s32.totalorder %s43, %s45
    %p49 = scmp.eq.s32.totalorder %s9, 0
    %p50 = por %p48, %p49
    %p51 = scmp.ne.s32.totalorder %s43, %s45
    %p52 = scmp.eq.s32.totalorder %s14, 1
    %p53 = por %p51, %p52
    %p54 = scmp.ne.s32.totalorder %s45, %s46
    %p55 = scmp.eq.s32.totalorder %s14, 0
    %p56 = por %p54, %p55
    %p57 = scmp.ne.s32.totalorder %s45, %s46
    %p58 = scmp.eq.s32.totalorder %s15, 1
    %p59 = por %p57, %p58
    %p61 = scmp.ne.s32.totalorder %s46, %s60
    %p62 = scmp.eq.s32.totalorder %s15, 0
    %p63 = por %p61, %p62
    %s65 = sadd.s32 %s64, 1
    %p68 = scmp.eq.s32.totalorder %s9, 1
    %p69 = scmp.ne.s32.totalorder %s64, %s66
    %p70 = scmp.eq.s32.totalorder %s9, 0
    %p71 = por %p69, %p70
    %p72 = scmp.ne.s32.totalorder %s64, %s66
    %p73 = scmp.eq.s32.totalorder %s14, 1
    %p74 = por %p72, %p73
    %p75 = scmp.ne.s32.totalorder %s66, %s67
    %p76 = scmp.eq.s32.totalorder %s14, 0
    %p77 = por %p75, %p76
    %p78 = scmp.ne.s32.totalorder %s66, %s67
    %p79 = scmp.eq.s32.totalorder %s15, 1
    %p80 = por %p78, %p79
    %p82 = scmp.ne.s32.totalorder %s67, %s81
    %p83 = scmp.eq.s32.totalorder %s15, 0
    %p84 = por %p82, %p83
    %s85 = ssub.s32 %s9, %s16
    %p86 = scmp.eq.s32.totalorder %s85, 0
    %s88 = sadd.s32 %s87, 1
    %s89 = scalar_select %p86, %s87, %s88
    %p92 = pneg %p86
    %p93 = scmp.eq.s32.totalorder %s9, 1
    %p94 = por %p92, %p93
    %p95 = scmp.ne.s32.totalorder %s87, %s90
    %p96 = scmp.eq.s32.totalorder %s9, 0
    %p97 = por %p95, %p96
    %p98 = scmp.ne.s32.totalorder %s87, %s90
    %p99 = scmp.eq.s32.totalorder %s14, 1
    %p100 = por %p98, %p99
    %p101 = scmp.ne.s32.totalorder %s90, %s91
    %p102 = scmp.eq.s32.totalorder %s14, 0
    %p103 = por %p101, %p102
    %p104 = scmp.ne.s32.totalorder %s90, %s91
    %p105 = scmp.eq.s32.totalorder %s15, 1
    %p106 = por %p104, %p105
    %p108 = scmp.ne.s32.totalorder %s91, %s107
    %p109 = scmp.eq.s32.totalorder %s15, 0
    %p110 = por %p108, %p109
    %p111 = scmp.le.s32.totalorder 1, %s9
    %p112 = scmp.lt.s32.totalorder %s9, 3
    %p113 = pnand %p111, %p112
    %p114 = pneg %p113
    // Predicated region
    $region9: #{ss2d_forward.5} parent=5 // pred_check
      _
    $region10: #{ss2d_forward.5} parent=5 // pred_check_branch
      %116 = sbr.rel (%p113) target = $region12
    $region11: #{ss2d_forward.5} parent=5 // pred_region
      %s117 = ssub.s32 %s9, 1
      // Predicated region
      $region13: #{ss2d_forward.5} parent=11 // pred_check
        %p118 = pneg %p56
      $region14: #{ss2d_forward.5} parent=11 // pred_check_branch
        %120 = sbr.rel (%p118) target = $region16
      $region15: #{ss2d_forward.5} parent=11 // pred_region
        _
      $region16: #{ss2d_forward.5} parent=11 // pred_fallthru
        _
      // Predicated region
      $region17: #{ss2d_forward.5} parent=11 // pred_check
        %p121 = pneg %p77
      $region18: #{ss2d_forward.5} parent=11 // pred_check_branch
        %123 = sbr.rel (%p121) target = $region20
      $region19: #{ss2d_forward.5} parent=11 // pred_region
        _
      $region20: #{ss2d_forward.5} parent=11 // pred_fallthru
        _
    $region12: #{ss2d_forward.5} parent=5 // pred_fallthru
      _
    %p124 = scmp.lt.s32.totalorder %s9, 2
    // Predicated region
    $region21: #{ss2d_forward.5} parent=5 // pred_check
      %p125 = pneg %p124
    $region22: #{ss2d_forward.5} parent=5 // pred_check_branch
      %127 = sbr.rel (%p125) target = $region24
    $region23: #{ss2d_forward.5} parent=5 // pred_region
      // Predicated region
      $region25: #{ss2d_forward.5} parent=23 // pred_check
        %p128 = pneg %p29
      $region26: #{ss2d_forward.5} parent=23 // pred_check_branch
        %130 = sbr.rel (%p128) target = $region28
      $region27: #{ss2d_forward.5} parent=23 // pred_region
        %p131 = scmp.lt.s32.totalorder %s9, 1
        %s132 = scalar_select %p131, %s9, 1
        %s133 = smul.addr %s132, 8
        %s134 = smul.addr %s133, 4
        %s135 = scalar_lea.vmem %s0, %s134
      $region28: #{ss2d_forward.5} parent=23 // pred_fallthru
        _
    $region24: #{ss2d_forward.5} parent=5 // pred_fallthru
      _
    %p136 = scmp.le.s32.totalorder 1, %s9
    %p137 = scmp.lt.s32.totalorder %s9, 3
    %p138 = pnand %p136, %p137
    %p139 = pneg %p138
    // Predicated region
    $region29: #{ss2d_forward.5} parent=5 // pred_check
      _
    $region30: #{ss2d_forward.5} parent=5 // pred_check_branch
      %141 = sbr.rel (%p138) target = $region32
    $region31: #{ss2d_forward.5} parent=5 // pred_region
      %s142 = ssub.s32 %s9, 1
      %p143 = scmp.lt.s32.totalorder %s14, 1
      %s144 = scalar_select %p143, %s14, 1
      %s145 = smul.addr %s144, 8
      %s146 = smul.addr %s145, 4
      %s147 = scalar_lea.vmem %s0, %s146
      %p148 = pneg %p35
      %p149 = pneg %p32
      %p150 = pneg %p56
      %p151 = pneg %p53
      %p152 = pneg %p77
      %p153 = pneg %p74
      %p154 = pneg %p103
      %p155 = pneg %p100
      %p156 = scmp.lt.s32.totalorder %s14, 1
      %s157 = scalar_select %p156, %s14, 1
      %s158 = smul.addr %s157, 8
      %s159 = smul.addr %s158, 4
      %s160 = scalar_lea.vmem %s3, %s159
      %p161 = scmp.lt.s32.totalorder %s14, 1
      %s162 = scalar_select %p161, %s14, 1
      %s163 = smul.addr %s162, 8
      %s164 = smul.addr %s163, 4
      %s165 = scalar_lea.vmem %s0, %s164
      %p166 = scmp.lt.s32.totalorder %s14, 1
      %s167 = scalar_select %p166, %s14, 1
      %s168 = smul.addr %s167, 8
      %s169 = smul.addr %s168, 4
      %s170 = scalar_lea.vmem %s3, %s169
      %vm172 = vcmask 257024
      %173 = vst.msk [vmem:[#allocation2] sm:$0xf] %vm172, 0
      %vm174 = vcmask 253952
      %175 = vst.msk [vmem:[#allocation2 + $0x4] sm:$0x1] %vm174, 0
      %176 = vst.msk [vmem:[#allocation2 + $0x8] sm:$0xf] %vm172, 0
      %177 = vst.msk [vmem:[#allocation2 + $0xc] sm:$0x1] %vm174, 0
      %178 = vst.msk [vmem:[#allocation2 + $0x10] sm:$0xf] %vm172, 0
      %179 = vst.msk [vmem:[#allocation2 + $0x14] sm:$0x1] %vm174, 0
      %180 = vst.msk [vmem:[#allocation2 + $0x18] sm:$0xf] %vm172, 0
      %181 = vst.msk [vmem:[#allocation2 + $0x1c] sm:$0x1] %vm174, 0
      %182 = vst.msk [vmem:[#allocation2 + $0x20] sm:$0xf] %vm172, 0
      %183 = vst.msk [vmem:[#allocation2 + $0x24] sm:$0x1] %vm174, 0
      %184 = vst.msk [vmem:[#allocation2 + $0x28] sm:$0xf] %vm172, 0
      %185 = vst.msk [vmem:[#allocation2 + $0x2c] sm:$0x1] %vm174, 0
      %186 = vst.msk [vmem:[#allocation2 + $0x30] sm:$0xf] %vm172, 0
      %187 = vst.msk [vmem:[#allocation2 + $0x34] sm:$0x1] %vm174, 0
      %188 = vst.msk [vmem:[#allocation2 + $0x38] sm:$0xf] %vm172, 0
      %189 = vst.msk [vmem:[#allocation2 + $0x3c] sm:$0x1] %vm174, 0
      %190 = vst.msk [vmem:[#allocation2 + $0x40] sm:$0xf] %vm172, 0
      %191 = vst.msk [vmem:[#allocation2 + $0x44] sm:$0x1] %vm174, 0
      %192 = vst.msk [vmem:[#allocation2 + $0x48] sm:$0xf] %vm172, 0
      %193 = vst.msk [vmem:[#allocation2 + $0x4c] sm:$0x1] %vm174, 0
      %v194 = vld [vmem:[%s165] sm:$0xf]
      %v195 = vld [vmem:[%s165 + $0x4] sm:$0xf]
      %v196 = vld [vmem:[%s165 + $0x8] sm:$0xf]
      %v197 = vld [vmem:[%s165 + $0xc] sm:$0xf]
      %v198 = vld [vmem:[%s165 + $0x10] sm:$0xf]
      %v199 = vld [vmem:[%s165 + $0x14] sm:$0xf]
      %v200 = vld [vmem:[%s165 + $0x18] sm:$0xf]
      %v201 = vld [vmem:[%s165 + $0x1c] sm:$0xf]
      %v203 = vshrl.u32 %v194, 16
      %v205 = vrot.slane %v203, 7
      %v206 = vshll.u32 %v194, 16
      %v208 = vor.u32 %v205, %v206
      %v209 = vrot.slane %v205, 4
      %v211 = vshrl.u32 %v195, 16
      %v213 = vrot.slane %v211, 7
      %v214 = vshll.u32 %v195, 16
      %v216 = vor.u32 %v213, %v214
      %v217 = vrot.slane %v213, 4
      %v219 = vshrl.u32 %v196, 16
      %v221 = vrot.slane %v219, 7
      %v222 = vshll.u32 %v196, 16
      %v224 = vor.u32 %v221, %v222
      %v225 = vrot.slane %v221, 4
      %v227 = vshrl.u32 %v197, 16
      %v229 = vrot.slane %v227, 7
      %v230 = vshll.u32 %v197, 16
      %v232 = vor.u32 %v229, %v230
      %v233 = vrot.slane %v229, 4
      %v235 = vshrl.u32 %v198, 16
      %v237 = vrot.slane %v235, 7
      %v238 = vshll.u32 %v198, 16
      %v240 = vor.u32 %v237, %v238
      %v241 = vrot.slane %v237, 4
      %v243 = vshrl.u32 %v199, 16
      %v245 = vrot.slane %v243, 7
      %v246 = vshll.u32 %v199, 16
      %v248 = vor.u32 %v245, %v246
      %v249 = vrot.slane %v245, 4
      %v251 = vshrl.u32 %v200, 16
      %v253 = vrot.slane %v251, 7
      %v254 = vshll.u32 %v200, 16
      %v256 = vor.u32 %v253, %v254
      %v257 = vrot.slane %v253, 4
      %v259 = vshrl.u32 %v201, 16
      %v261 = vrot.slane %v259, 7
      %v262 = vshll.u32 %v201, 16
      %v264 = vor.u32 %v261, %v262
      %v265 = vrot.slane %v261, 4
      %s282 = scalar_lea.vmem [#allocation2], 8
      %vm283 = vcmask 257024
      %vm284 = vsmask.f32 7938
      %vm285 = vmand %vm283, %vm284
      %v286 = vld [vmem:[%s282] sm:$0xf]
      %v287 = vsel %vm285, %v208, %v286
      %288 = vst [vmem:[%s282] sm:$0xf] %v287
      %vm289 = vcmask 253952
      %vm290 = vsmask.f32 256
      %vm291 = vmand %vm289, %vm290
      %v292 = vld [vmem:[%s282 + $0x4] sm:$0x1]
      %v293 = vsel %vm291, %v209, %v292
      %294 = vst [vmem:[%s282 + $0x4] sm:$0x1] %v293
      %v295 = vld [vmem:[%s282 + $0x8] sm:$0xf]
      %v296 = vsel %vm285, %v216, %v295
      %297 = vst [vmem:[%s282 + $0x8] sm:$0xf] %v296
      %v298 = vld [vmem:[%s282 + $0xc] sm:$0x1]
      %v299 = vsel %vm291, %v217, %v298
      %300 = vst [vmem:[%s282 + $0xc] sm:$0x1] %v299
      %v301 = vld [vmem:[%s282 + $0x10] sm:$0xf]
      %v302 = vsel %vm285, %v224, %v301
      %303 = vst [vmem:[%s282 + $0x10] sm:$0xf] %v302
      %v304 = vld [vmem:[%s282 + $0x14] sm:$0x1]
      %v305 = vsel %vm291, %v225, %v304
      %306 = vst [vmem:[%s282 + $0x14] sm:$0x1] %v305
      %v307 = vld [vmem:[%s282 + $0x18] sm:$0xf]
      %v308 = vsel %vm285, %v232, %v307
      %309 = vst [vmem:[%s282 + $0x18] sm:$0xf] %v308
      %v310 = vld [vmem:[%s282 + $0x1c] sm:$0x1]
      %v311 = vsel %vm291, %v233, %v310
      %312 = vst [vmem:[%s282 + $0x1c] sm:$0x1] %v311
      %v313 = vld [vmem:[%s282 + $0x20] sm:$0xf]
      %v314 = vsel %vm285, %v240, %v313
      %315 = vst [vmem:[%s282 + $0x20] sm:$0xf] %v314
      %v316 = vld [vmem:[%s282 + $0x24] sm:$0x1]
      %v317 = vsel %vm291, %v241, %v316
      %318 = vst [vmem:[%s282 + $0x24] sm:$0x1] %v317
      %v319 = vld [vmem:[%s282 + $0x28] sm:$0xf]
      %v320 = vsel %vm285, %v248, %v319
      %321 = vst [vmem:[%s282 + $0x28] sm:$0xf] %v320
      %v322 = vld [vmem:[%s282 + $0x2c] sm:$0x1]
      %v323 = vsel %vm291, %v249, %v322
      %324 = vst [vmem:[%s282 + $0x2c] sm:$0x1] %v323
      %v325 = vld [vmem:[%s282 + $0x30] sm:$0xf]
      %v326 = vsel %vm285, %v256, %v325
      %327 = vst [vmem:[%s282 + $0x30] sm:$0xf] %v326
      %v328 = vld [vmem:[%s282 + $0x34] sm:$0x1]
      %v329 = vsel %vm291, %v257, %v328
      %330 = vst [vmem:[%s282 + $0x34] sm:$0x1] %v329
      %v331 = vld [vmem:[%s282 + $0x38] sm:$0xf]
      %v332 = vsel %vm285, %v264, %v331
      %333 = vst [vmem:[%s282 + $0x38] sm:$0xf] %v332
      %v334 = vld [vmem:[%s282 + $0x3c] sm:$0x1]
      %v335 = vsel %vm291, %v265, %v334
      %336 = vst [vmem:[%s282 + $0x3c] sm:$0x1] %v335
      %v337 = vld [vmem:[#allocation2] sm:$0xf]
      %v338 = vld [vmem:[#allocation2 + $0x8] sm:$0xf]
      %v339 = vld [vmem:[#allocation2 + $0x10] sm:$0xf]
      %v340 = vld [vmem:[#allocation2 + $0x18] sm:$0xf]
      %v341 = vld [vmem:[#allocation2 + $0x20] sm:$0xf]
      %v342 = vld [vmem:[#allocation2 + $0x28] sm:$0xf]
      %v343 = vld [vmem:[#allocation2 + $0x30] sm:$0xf]
      %v344 = vld [vmem:[#allocation2 + $0x38] sm:$0xf]
      %v345 = vunpack.c.l.bf16 %v337
      %v346 = vunpack.c.l.bf16 %v338
      %v347 = vunpack.c.l.bf16 %v339
      %v348 = vunpack.c.l.bf16 %v340
      %v349 = vunpack.c.l.bf16 %v341
      %v350 = vunpack.c.l.bf16 %v342
      %v351 = vunpack.c.l.bf16 %v343
      %v352 = vunpack.c.l.bf16 %v344
      %v353 = vld [vmem:[%s1] sm:$0x1]
      %v354 = vlaneseq
      %v355 = vshrl.u32 %v354, 7
      %v356 = vsub.s32 0, %v355
      %v357 = vrot.slane %v353, %v356
      %v358 = vmul.f32 %v345, %v357
      %v359 = vmul.f32 %v346, %v357
      %v360 = vmul.f32 %v347, %v357
      %v361 = vmul.f32 %v348, %v357
      %v362 = vmul.f32 %v349, %v357
      %v363 = vmul.f32 %v350, %v357
      %v364 = vmul.f32 %v351, %v357
      %v365 = vmul.f32 %v352, %v357
      %v366 = vadd.f32 %v358, 0.0
      %v367 = vadd.f32 %v359, 0.0
      %v368 = vadd.f32 %v360, 0.0
      %v369 = vadd.f32 %v361, 0.0
      %v370 = vadd.f32 %v362, 0.0
      %v371 = vadd.f32 %v363, 0.0
      %v372 = vadd.f32 %v364, 0.0
      %v373 = vadd.f32 %v365, 0.0
      %v374 = vld [vmem:[#allocation2 + $0x4] sm:$0x1]
      %v375 = vld [vmem:[#allocation2 + $0xc] sm:$0x1]
      %v376 = vld [vmem:[#allocation2 + $0x14] sm:$0x1]
      %v377 = vld [vmem:[#allocation2 + $0x1c] sm:$0x1]
      %v378 = vld [vmem:[#allocation2 + $0x24] sm:$0x1]
      %v379 = vld [vmem:[#allocation2 + $0x2c] sm:$0x1]
      %v380 = vld [vmem:[#allocation2 + $0x34] sm:$0x1]
      %v381 = vld [vmem:[#allocation2 + $0x3c] sm:$0x1]
      %v382 = vunpack.c.l.bf16 %v374
      %v383 = vunpack.c.l.bf16 %v375
      %v384 = vunpack.c.l.bf16 %v376
      %v385 = vunpack.c.l.bf16 %v377
      %v386 = vunpack.c.l.bf16 %v378
      %v387 = vunpack.c.l.bf16 %v379
      %v388 = vunpack.c.l.bf16 %v380
      %v389 = vunpack.c.l.bf16 %v381
      %v390 = vld [vmem:[%s1 + $0x1] sm:$0x1]
      %v391 = vlaneseq
      %v392 = vshrl.u32 %v391, 7
      %v393 = vsub.s32 0, %v392
      %v394 = vrot.slane %v390, %v393
      %v395 = vmul.f32 %v345, %v394
      %v396 = vmul.f32 %v382, %v394
      %v397 = vmul.f32 %v346, %v394
      %v398 = vmul.f32 %v383, %v394
      %v399 = vmul.f32 %v347, %v394
      %v400 = vmul.f32 %v384, %v394
      %v401 = vmul.f32 %v348, %v394
      %v402 = vmul.f32 %v385, %v394
      %v403 = vmul.f32 %v349, %v394
      %v404 = vmul.f32 %v386, %v394
      %v405 = vmul.f32 %v350, %v394
      %v406 = vmul.f32 %v387, %v394
      %v407 = vmul.f32 %v351, %v394
      %v408 = vmul.f32 %v388, %v394
      %v409 = vmul.f32 %v352, %v394
      %v410 = vmul.f32 %v389, %v394
      %vm427 = vcmask 1046528
      %v428 = vrot.slane %v395, 1
      %v429 = vrot.slane %v396, 1
      %v430 = vsel %vm427, %v428, %v429
      %v431 = vrot.slane %v397, 1
      %v432 = vrot.slane %v398, 1
      %v433 = vsel %vm427, %v431, %v432
      %v434 = vrot.slane %v399, 1
      %v435 = vrot.slane %v400, 1
      %v436 = vsel %vm427, %v434, %v435
      %v437 = vrot.slane %v401, 1
      %v438 = vrot.slane %v402, 1
      %v439 = vsel %vm427, %v437, %v438
      %v440 = vrot.slane %v403, 1
      %v441 = vrot.slane %v404, 1
      %v442 = vsel %vm427, %v440, %v441
      %v443 = vrot.slane %v405, 1
      %v444 = vrot.slane %v406, 1
      %v445 = vsel %vm427, %v443, %v444
      %v446 = vrot.slane %v407, 1
      %v447 = vrot.slane %v408, 1
      %v448 = vsel %vm427, %v446, %v447
      %v449 = vrot.slane %v409, 1
      %v450 = vrot.slane %v410, 1
      %v451 = vsel %vm427, %v449, %v450
      %v460 = vadd.f32 %v366, %v430
      %v461 = vadd.f32 %v367, %v433
      %v462 = vadd.f32 %v368, %v436
      %v463 = vadd.f32 %v369, %v439
      %v464 = vadd.f32 %v370, %v442
      %v465 = vadd.f32 %v371, %v445
      %v466 = vadd.f32 %v372, %v448
      %v467 = vadd.f32 %v373, %v451
      %v468 = vld [vmem:[#allocation2] sm:$0xe]
      %v469 = vld [vmem:[#allocation2 + $0x8] sm:$0xe]
      %v470 = vld [vmem:[#allocation2 + $0x10] sm:$0xe]
      %v471 = vld [vmem:[#allocation2 + $0x18] sm:$0xe]
      %v472 = vld [vmem:[#allocation2 + $0x20] sm:$0xe]
      %v473 = vld [vmem:[#allocation2 + $0x28] sm:$0xe]
      %v474 = vld [vmem:[#allocation2 + $0x30] sm:$0xe]
      %v475 = vld [vmem:[#allocation2 + $0x38] sm:$0xe]
      %v476 = vunpack.c.l.bf16 %v468
      %v477 = vunpack.c.l.bf16 %v469
      %v478 = vunpack.c.l.bf16 %v470
      %v479 = vunpack.c.l.bf16 %v471
      %v480 = vunpack.c.l.bf16 %v472
      %v481 = vunpack.c.l.bf16 %v473
      %v482 = vunpack.c.l.bf16 %v474
      %v483 = vunpack.c.l.bf16 %v475
      %v484 = vld [vmem:[%s1 + $0x2] sm:$0x1]
      %v485 = vlaneseq
      %v486 = vshrl.u32 %v485, 7
      %v487 = vsub.s32 0, %v486
      %v488 = vrot.slane %v484, %v487
      %v489 = vmul.f32 %v476, %v488
      %v490 = vmul.f32 %v382, %v488
      %v491 = vmul.f32 %v477, %v488
      %v492 = vmul.f32 %v383, %v488
      %v493 = vmul.f32 %v478, %v488
      %v494 = vmul.f32 %v384, %v488
      %v495 = vmul.f32 %v479, %v488
      %v496 = vmul.f32 %v385, %v488
      %v497 = vmul.f32 %v480, %v488
      %v498 = vmul.f32 %v386, %v488
      %v499 = vmul.f32 %v481, %v488
      %v500 = vmul.f32 %v387, %v488
      %v501 = vmul.f32 %v482, %v488
      %v502 = vmul.f32 %v388, %v488
      %v503 = vmul.f32 %v483, %v488
      %v504 = vmul.f32 %v389, %v488
      %vm521 = vcmask 1045504
      %v522 = vrot.slane %v489, 2
      %v523 = vrot.slane %v490, 2
      %v524 = vsel %vm521, %v522, %v523
      %v525 = vrot.slane %v491, 2
      %v526 = vrot.slane %v492, 2
      %v527 = vsel %vm521, %v525, %v526
      %v528 = vrot.slane %v493, 2
      %v529 = vrot.slane %v494, 2
      %v530 = vsel %vm521, %v528, %v529
      %v531 = vrot.slane %v495, 2
      %v532 = vrot.slane %v496, 2
      %v533 = vsel %vm521, %v531, %v532
      %v534 = vrot.slane %v497, 2
      %v535 = vrot.slane %v498, 2
      %v536 = vsel %vm521, %v534, %v535
      %v537 = vrot.slane %v499, 2
      %v538 = vrot.slane %v500, 2
      %v539 = vsel %vm521, %v537, %v538
      %v540 = vrot.slane %v501, 2
      %v541 = vrot.slane %v502, 2
      %v542 = vsel %vm521, %v540, %v541
      %v543 = vrot.slane %v503, 2
      %v544 = vrot.slane %v504, 2
      %v545 = vsel %vm521, %v543, %v544
      %v554 = vadd.f32 %v460, %v524
      %v555 = vadd.f32 %v461, %v527
      %v556 = vadd.f32 %v462, %v530
      %v557 = vadd.f32 %v463, %v533
      %v558 = vadd.f32 %v464, %v536
      %v559 = vadd.f32 %v465, %v539
      %v560 = vadd.f32 %v466, %v542
      %v561 = vadd.f32 %v467, %v545
      %v562 = vld [vmem:[%s282] sm:$0xf]
      %v563 = vld [vmem:[%s282 + $0x8] sm:$0xf]
      %v564 = vld [vmem:[%s282 + $0x10] sm:$0xf]
      %v565 = vld [vmem:[%s282 + $0x18] sm:$0xf]
      %v566 = vld [vmem:[%s282 + $0x20] sm:$0xf]
      %v567 = vld [vmem:[%s282 + $0x28] sm:$0xf]
      %v568 = vld [vmem:[%s282 + $0x30] sm:$0xf]
      %v569 = vld [vmem:[%s282 + $0x38] sm:$0xf]
      %v570 = vunpack.c.l.bf16 %v562
      %v571 = vunpack.c.l.bf16 %v563
      %v572 = vunpack.c.l.bf16 %v564
      %v573 = vunpack.c.l.bf16 %v565
      %v574 = vunpack.c.l.bf16 %v566
      %v575 = vunpack.c.l.bf16 %v567
      %v576 = vunpack.c.l.bf16 %v568
      %v577 = vunpack.c.l.bf16 %v569
      %s578 = scalar_lea.vmem %s1, 4
      %v579 = vld [vmem:[%s578] sm:$0x1]
      %v580 = vlaneseq
      %v581 = vshrl.u32 %v580, 7
      %v582 = vsub.s32 0, %v581
      %v583 = vrot.slane %v579, %v582
      %v584 = vmul.f32 %v570, %v583
      %v585 = vmul.f32 %v571, %v583
      %v586 = vmul.f32 %v572, %v583
      %v587 = vmul.f32 %v573, %v583
      %v588 = vmul.f32 %v574, %v583
      %v589 = vmul.f32 %v575, %v583
      %v590 = vmul.f32 %v576, %v583
      %v591 = vmul.f32 %v577, %v583
      %v592 = vadd.f32 %v554, %v584
      %v593 = vadd.f32 %v555, %v585
      %v594 = vadd.f32 %v556, %v586
      %v595 = vadd.f32 %v557, %v587
      %v596 = vadd.f32 %v558, %v588
      %v597 = vadd.f32 %v559, %v589
      %v598 = vadd.f32 %v560, %v590
      %v599 = vadd.f32 %v561, %v591
      %v600 = vld [vmem:[%s282 + $0x4] sm:$0x1]
      %v601 = vld [vmem:[%s282 + $0xc] sm:$0x1]
      %v602 = vld [vmem:[%s282 + $0x14] sm:$0x1]
      %v603 = vld [vmem:[%s282 + $0x1c] sm:$0x1]
      %v604 = vld [vmem:[%s282 + $0x24] sm:$0x1]
      %v605 = vld [vmem:[%s282 + $0x2c] sm:$0x1]
      %v606 = vld [vmem:[%s282 + $0x34] sm:$0x1]
      %v607 = vld [vmem:[%s282 + $0x3c] sm:$0x1]
      %v608 = vunpack.c.l.bf16 %v600
      %v609 = vunpack.c.l.bf16 %v601
      %v610 = vunpack.c.l.bf16 %v602
      %v611 = vunpack.c.l.bf16 %v603
      %v612 = vunpack.c.l.bf16 %v604
      %v613 = vunpack.c.l.bf16 %v605
      %v614 = vunpack.c.l.bf16 %v606
      %v615 = vunpack.c.l.bf16 %v607
      %v616 = vld [vmem:[%s578 + $0x1] sm:$0x1]
      %v617 = vlaneseq
      %v618 = vshrl.u32 %v617, 7
      %v619 = vsub.s32 0, %v618
      %v620 = vrot.slane %v616, %v619
      %v621 = vmul.f32 %v570, %v620
      %v622 = vmul.f32 %v608, %v620
      %v623 = vmul.f32 %v571, %v620
      %v624 = vmul.f32 %v609, %v620
      %v625 = vmul.f32 %v572, %v620
      %v626 = vmul.f32 %v610, %v620
      %v627 = vmul.f32 %v573, %v620
      %v628 = vmul.f32 %v611, %v620
      %v629 = vmul.f32 %v574, %v620
      %v630 = vmul.f32 %v612, %v620
      %v631 = vmul.f32 %v575, %v620
      %v632 = vmul.f32 %v613, %v620
      %v633 = vmul.f32 %v576, %v620
      %v634 = vmul.f32 %v614, %v620
      %v635 = vmul.f32 %v577, %v620
      %v636 = vmul.f32 %v615, %v620
      %v653 = vrot.slane %v621, 1
      %v654 = vrot.slane %v622, 1
      %v655 = vsel %vm427, %v653, %v654
      %v656 = vrot.slane %v623, 1
      %v657 = vrot.slane %v624, 1
      %v658 = vsel %vm427, %v656, %v657
      %v659 = vrot.slane %v625, 1
      %v660 = vrot.slane %v626, 1
      %v661 = vsel %vm427, %v659, %v660
      %v662 = vrot.slane %v627, 1
      %v663 = vrot.slane %v628, 1
      %v664 = vsel %vm427, %v662, %v663
      %v665 = vrot.slane %v629, 1
      %v666 = vrot.slane %v630, 1
      %v667 = vsel %vm427, %v665, %v666
      %v668 = vrot.slane %v631, 1
      %v669 = vrot.slane %v632, 1
      %v670 = vsel %vm427, %v668, %v669
      %v671 = vrot.slane %v633, 1
      %v672 = vrot.slane %v634, 1
      %v673 = vsel %vm427, %v671, %v672
      %v674 = vrot.slane %v635, 1
      %v675 = vrot.slane %v636, 1
      %v676 = vsel %vm427, %v674, %v675
      %v685 = vadd.f32 %v592, %v655
      %v686 = vadd.f32 %v593, %v658
      %v687 = vadd.f32 %v594, %v661
      %v688 = vadd.f32 %v595, %v664
      %v689 = vadd.f32 %v596, %v667
      %v690 = vadd.f32 %v597, %v670
      %v691 = vadd.f32 %v598, %v673
      %v692 = vadd.f32 %v599, %v676
      %v693 = vld [vmem:[%s282] sm:$0xe]
      %v694 = vld [vmem:[%s282 + $0x8] sm:$0xe]
      %v695 = vld [vmem:[%s282 + $0x10] sm:$0xe]
      %v696 = vld [vmem:[%s282 + $0x18] sm:$0xe]
      %v697 = vld [vmem:[%s282 + $0x20] sm:$0xe]
      %v698 = vld [vmem:[%s282 + $0x28] sm:$0xe]
      %v699 = vld [vmem:[%s282 + $0x30] sm:$0xe]
      %v700 = vld [vmem:[%s282 + $0x38] sm:$0xe]
      %v701 = vunpack.c.l.bf16 %v693
      %v702 = vunpack.c.l.bf16 %v694
      %v703 = vunpack.c.l.bf16 %v695
      %v704 = vunpack.c.l.bf16 %v696
      %v705 = vunpack.c.l.bf16 %v697
      %v706 = vunpack.c.l.bf16 %v698
      %v707 = vunpack.c.l.bf16 %v699
      %v708 = vunpack.c.l.bf16 %v700
      %v709 = vld [vmem:[%s578 + $0x2] sm:$0x1]
      %v710 = vlaneseq
      %v711 = vshrl.u32 %v710, 7
      %v712 = vsub.s32 0, %v711
      %v713 = vrot.slane %v709, %v712
      %v714 = vmul.f32 %v701, %v713
      %v715 = vmul.f32 %v608, %v713
      %v716 = vmul.f32 %v702, %v713
      %v717 = vmul.f32 %v609, %v713
      %v718 = vmul.f32 %v703, %v713
      %v719 = vmul.f32 %v610, %v713
      %v720 = vmul.f32 %v704, %v713
      %v721 = vmul.f32 %v611, %v713
      %v722 = vmul.f32 %v705, %v713
      %v723 = vmul.f32 %v612, %v713
      %v724 = vmul.f32 %v706, %v713
      %v725 = vmul.f32 %v613, %v713
      %v726 = vmul.f32 %v707, %v713
      %v727 = vmul.f32 %v614, %v713
      %v728 = vmul.f32 %v708, %v713
      %v729 = vmul.f32 %v615, %v713
      %v746 = vrot.slane %v714, 2
      %v747 = vrot.slane %v715, 2
      %v748 = vsel %vm521, %v746, %v747
      %v749 = vrot.slane %v716, 2
      %v750 = vrot.slane %v717, 2
      %v751 = vsel %vm521, %v749, %v750
      %v752 = vrot.slane %v718, 2
      %v753 = vrot.slane %v719, 2
      %v754 = vsel %vm521, %v752, %v753
      %v755 = vrot.slane %v720, 2
      %v756 = vrot.slane %v721, 2
      %v757 = vsel %vm521, %v755, %v756
      %v758 = vrot.slane %v722, 2
      %v759 = vrot.slane %v723, 2
      %v760 = vsel %vm521, %v758, %v759
      %v761 = vrot.slane %v724, 2
      %v762 = vrot.slane %v725, 2
      %v763 = vsel %vm521, %v761, %v762
      %v764 = vrot.slane %v726, 2
      %v765 = vrot.slane %v727, 2
      %v766 = vsel %vm521, %v764, %v765
      %v767 = vrot.slane %v728, 2
      %v768 = vrot.slane %v729, 2
      %v769 = vsel %vm521, %v767, %v768
      %v778 = vadd.f32 %v685, %v748
      %v779 = vadd.f32 %v686, %v751
      %v780 = vadd.f32 %v687, %v754
      %v781 = vadd.f32 %v688, %v757
      %v782 = vadd.f32 %v689, %v760
      %v783 = vadd.f32 %v690, %v763
      %v784 = vadd.f32 %v691, %v766
      %v785 = vadd.f32 %v692, %v769
      %s786 = scalar_lea.vmem [#allocation2], 16
      %v787 = vld [vmem:[%s786] sm:$0xf]
      %v788 = vld [vmem:[%s786 + $0x8] sm:$0xf]
      %v789 = vld [vmem:[%s786 + $0x10] sm:$0xf]
      %v790 = vld [vmem:[%s786 + $0x18] sm:$0xf]
      %v791 = vld [vmem:[%s786 + $0x20] sm:$0xf]
      %v792 = vld [vmem:[%s786 + $0x28] sm:$0xf]
      %v793 = vld [vmem:[%s786 + $0x30] sm:$0xf]
      %v794 = vld [vmem:[%s786 + $0x38] sm:$0xf]
      %v795 = vunpack.c.l.bf16 %v787
      %v796 = vunpack.c.l.bf16 %v788
      %v797 = vunpack.c.l.bf16 %v789
      %v798 = vunpack.c.l.bf16 %v790
      %v799 = vunpack.c.l.bf16 %v791
      %v800 = vunpack.c.l.bf16 %v792
      %v801 = vunpack.c.l.bf16 %v793
      %v802 = vunpack.c.l.bf16 %v794
      %s803 = scalar_lea.vmem %s1, 8
      %v804 = vld [vmem:[%s803] sm:$0x1]
      %v805 = vlaneseq
      %v806 = vshrl.u32 %v805, 7
      %v807 = vsub.s32 0, %v806
      %v808 = vrot.slane %v804, %v807
      %v809 = vmul.f32 %v795, %v808
      %v810 = vmul.f32 %v796, %v808
      %v811 = vmul.f32 %v797, %v808
      %v812 = vmul.f32 %v798, %v808
      %v813 = vmul.f32 %v799, %v808
      %v814 = vmul.f32 %v800, %v808
      %v815 = vmul.f32 %v801, %v808
      %v816 = vmul.f32 %v802, %v808
      %v817 = vadd.f32 %v778, %v809
      %v818 = vadd.f32 %v779, %v810
      %v819 = vadd.f32 %v780, %v811
      %v820 = vadd.f32 %v781, %v812
      %v821 = vadd.f32 %v782, %v813
      %v822 = vadd.f32 %v783, %v814
      %v823 = vadd.f32 %v784, %v815
      %v824 = vadd.f32 %v785, %v816
      %v825 = vld [vmem:[%s786 + $0x4] sm:$0x1]
      %v826 = vld [vmem:[%s786 + $0xc] sm:$0x1]
      %v827 = vld [vmem:[%s786 + $0x14] sm:$0x1]
      %v828 = vld [vmem:[%s786 + $0x1c] sm:$0x1]
      %v829 = vld [vmem:[%s786 + $0x24] sm:$0x1]
      %v830 = vld [vmem:[%s786 + $0x2c] sm:$0x1]
      %v831 = vld [vmem:[%s786 + $0x34] sm:$0x1]
      %v832 = vld [vmem:[%s786 + $0x3c] sm:$0x1]
      %v833 = vunpack.c.l.bf16 %v825
      %v834 = vunpack.c.l.bf16 %v826
      %v835 = vunpack.c.l.bf16 %v827
      %v836 = vunpack.c.l.bf16 %v828
      %v837 = vunpack.c.l.bf16 %v829
      %v838 = vunpack.c.l.bf16 %v830
      %v839 = vunpack.c.l.bf16 %v831
      %v840 = vunpack.c.l.bf16 %v832
      %v841 = vld [vmem:[%s803 + $0x1] sm:$0x1]
      %v842 = vlaneseq
      %v843 = vshrl.u32 %v842, 7
      %v844 = vsub.s32 0, %v843
      %v845 = vrot.slane %v841, %v844
      %v846 = vmul.f32 %v795, %v845
      %v847 = vmul.f32 %v833, %v845
      %v848 = vmul.f32 %v796, %v845
      %v849 = vmul.f32 %v834, %v845
      %v850 = vmul.f32 %v797, %v845
      %v851 = vmul.f32 %v835, %v845
      %v852 = vmul.f32 %v798, %v845
      %v853 = vmul.f32 %v836, %v845
      %v854 = vmul.f32 %v799, %v845
      %v855 = vmul.f32 %v837, %v845
      %v856 = vmul.f32 %v800, %v845
      %v857 = vmul.f32 %v838, %v845
      %v858 = vmul.f32 %v801, %v845
      %v859 = vmul.f32 %v839, %v845
      %v860 = vmul.f32 %v802, %v845
      %v861 = vmul.f32 %v840, %v845
      %v878 = vrot.slane %v846, 1
      %v879 = vrot.slane %v847, 1
      %v880 = vsel %vm427, %v878, %v879
      %v881 = vrot.slane %v848, 1
      %v882 = vrot.slane %v849, 1
      %v883 = vsel %vm427, %v881, %v882
      %v884 = vrot.slane %v850, 1
      %v885 = vrot.slane %v851, 1
      %v886 = vsel %vm427, %v884, %v885
      %v887 = vrot.slane %v852, 1
      %v888 = vrot.slane %v853, 1
      %v889 = vsel %vm427, %v887, %v888
      %v890 = vrot.slane %v854, 1
      %v891 = vrot.slane %v855, 1
      %v892 = vsel %vm427, %v890, %v891
      %v893 = vrot.slane %v856, 1
      %v894 = vrot.slane %v857, 1
      %v895 = vsel %vm427, %v893, %v894
      %v896 = vrot.slane %v858, 1
      %v897 = vrot.slane %v859, 1
      %v898 = vsel %vm427, %v896, %v897
      %v899 = vrot.slane %v860, 1
      %v900 = vrot.slane %v861, 1
      %v901 = vsel %vm427, %v899, %v900
      %v910 = vadd.f32 %v817, %v880
      %v911 = vadd.f32 %v818, %v883
      %v912 = vadd.f32 %v819, %v886
      %v913 = vadd.f32 %v820, %v889
      %v914 = vadd.f32 %v821, %v892
      %v915 = vadd.f32 %v822, %v895
      %v916 = vadd.f32 %v823, %v898
      %v917 = vadd.f32 %v824, %v901
      %v918 = vld [vmem:[%s786] sm:$0xe]
      %v919 = vld [vmem:[%s786 + $0x8] sm:$0xe]
      %v920 = vld [vmem:[%s786 + $0x10] sm:$0xe]
      %v921 = vld [vmem:[%s786 + $0x18] sm:$0xe]
      %v922 = vld [vmem:[%s786 + $0x20] sm:$0xe]
      %v923 = vld [vmem:[%s786 + $0x28] sm:$0xe]
      %v924 = vld [vmem:[%s786 + $0x30] sm:$0xe]
      %v925 = vld [vmem:[%s786 + $0x38] sm:$0xe]
      %v926 = vunpack.c.l.bf16 %v918
      %v927 = vunpack.c.l.bf16 %v919
      %v928 = vunpack.c.l.bf16 %v920
      %v929 = vunpack.c.l.bf16 %v921
      %v930 = vunpack.c.l.bf16 %v922
      %v931 = vunpack.c.l.bf16 %v923
      %v932 = vunpack.c.l.bf16 %v924
      %v933 = vunpack.c.l.bf16 %v925
      %v934 = vld [vmem:[%s803 + $0x2] sm:$0x1]
      %v935 = vlaneseq
      %v936 = vshrl.u32 %v935, 7
      %v937 = vsub.s32 0, %v936
      %v938 = vrot.slane %v934, %v937
      %v939 = vmul.f32 %v926, %v938
      %v940 = vmul.f32 %v833, %v938
      %v941 = vmul.f32 %v927, %v938
      %v942 = vmul.f32 %v834, %v938
      %v943 = vmul.f32 %v928, %v938
      %v944 = vmul.f32 %v835, %v938
      %v945 = vmul.f32 %v929, %v938
      %v946 = vmul.f32 %v836, %v938
      %v947 = vmul.f32 %v930, %v938
      %v948 = vmul.f32 %v837, %v938
      %v949 = vmul.f32 %v931, %v938
      %v950 = vmul.f32 %v838, %v938
      %v951 = vmul.f32 %v932, %v938
      %v952 = vmul.f32 %v839, %v938
      %v953 = vmul.f32 %v933, %v938
      %v954 = vmul.f32 %v840, %v938
      %v971 = vrot.slane %v939, 2
      %v972 = vrot.slane %v940, 2
      %v973 = vsel %vm521, %v971, %v972
      %v974 = vrot.slane %v941, 2
      %v975 = vrot.slane %v942, 2
      %v976 = vsel %vm521, %v974, %v975
      %v977 = vrot.slane %v943, 2
      %v978 = vrot.slane %v944, 2
      %v979 = vsel %vm521, %v977, %v978
      %v980 = vrot.slane %v945, 2
      %v981 = vrot.slane %v946, 2
      %v982 = vsel %vm521, %v980, %v981
      %v983 = vrot.slane %v947, 2
      %v984 = vrot.slane %v948, 2
      %v985 = vsel %vm521, %v983, %v984
      %v986 = vrot.slane %v949, 2
      %v987 = vrot.slane %v950, 2
      %v988 = vsel %vm521, %v986, %v987
      %v989 = vrot.slane %v951, 2
      %v990 = vrot.slane %v952, 2
      %v991 = vsel %vm521, %v989, %v990
      %v992 = vrot.slane %v953, 2
      %v993 = vrot.slane %v954, 2
      %v994 = vsel %vm521, %v992, %v993
      %v1003 = vadd.f32 %v910, %v973
      %v1004 = vadd.f32 %v911, %v976
      %v1005 = vadd.f32 %v912, %v979
      %v1006 = vadd.f32 %v913, %v982
      %v1007 = vadd.f32 %v914, %v985
      %v1008 = vadd.f32 %v915, %v988
      %v1009 = vadd.f32 %v916, %v991
      %v1010 = vadd.f32 %v917, %v994
      %v1011 = vld [vmem:[%s2] sm:$0x1]
      %v1013 = vlaneseq
      %v1014 = vshrl.u32 %v1013, 7
      %v1015 = vsub.s32 0, %v1014
      %v1016 = vrot.slane %v1011, %v1015
      %v1018 = vadd.f32 %v1003, %v1016
      %v1019 = vadd.f32 %v1004, %v1016
      %v1020 = vadd.f32 %v1005, %v1016
      %v1021 = vadd.f32 %v1006, %v1016
      %v1022 = vadd.f32 %v1007, %v1016
      %v1023 = vadd.f32 %v1008, %v1016
      %v1024 = vadd.f32 %v1009, %v1016
      %v1025 = vadd.f32 %v1010, %v1016
      %v1026 = vxor.u32 %v1018, 2147483648
      %v1027 = vxor.u32 %v1019, 2147483648
      %v1028 = vxor.u32 %v1020, 2147483648
      %v1029 = vxor.u32 %v1021, 2147483648
      %v1030 = vxor.u32 %v1022, 2147483648
      %v1031 = vxor.u32 %v1023, 2147483648
      %v1032 = vxor.u32 %v1024, 2147483648
      %v1033 = vxor.u32 %v1025, 2147483648
      %v1034 = vmul.f32 %v1026, 1.442695
      %v1035 = vpow.pop %v1034
      %v1036 = vmul.f32 %v1027, 1.442695
      %v1037 = vpow.pop %v1036
      %v1038 = vmul.f32 %v1028, 1.442695
      %v1039 = vpow.pop %v1038
      %v1040 = vmul.f32 %v1029, 1.442695
      %v1041 = vpow.pop %v1040
      %v1042 = vmul.f32 %v1030, 1.442695
      %v1043 = vpow.pop %v1042
      %v1044 = vmul.f32 %v1031, 1.442695
      %v1045 = vpow.pop %v1044
      %v1046 = vmul.f32 %v1032, 1.442695
      %v1047 = vpow.pop %v1046
      %v1048 = vmul.f32 %v1033, 1.442695
      %v1049 = vpow.pop %v1048
      %v1050 = vadd.f32 %v1035, 1.0
      %v1051 = vadd.f32 %v1037, 1.0
      %v1052 = vadd.f32 %v1039, 1.0
      %v1053 = vadd.f32 %v1041, 1.0
      %v1054 = vadd.f32 %v1043, 1.0
      %v1055 = vadd.f32 %v1045, 1.0
      %v1056 = vadd.f32 %v1047, 1.0
      %v1057 = vadd.f32 %v1049, 1.0
      %v1058 = vrcp.pop %v1050
      %v1059 = vmul.f32 1.0, %v1058
      %v1060 = vrcp.pop %v1051
      %v1061 = vmul.f32 1.0, %v1060
      %v1062 = vrcp.pop %v1052
      %v1063 = vmul.f32 1.0, %v1062
      %v1064 = vrcp.pop %v1053
      %v1065 = vmul.f32 1.0, %v1064
      %v1066 = vrcp.pop %v1054
      %v1067 = vmul.f32 1.0, %v1066
      %v1068 = vrcp.pop %v1055
      %v1069 = vmul.f32 1.0, %v1068
      %v1070 = vrcp.pop %v1056
      %v1071 = vmul.f32 1.0, %v1070
      %v1072 = vrcp.pop %v1057
      %v1073 = vmul.f32 1.0, %v1072
      %v1074 = vmul.f32 %v1018, %v1059
      %v1075 = vmul.f32 %v1019, %v1061
      %v1076 = vmul.f32 %v1020, %v1063
      %v1077 = vmul.f32 %v1021, %v1065
      %v1078 = vmul.f32 %v1022, %v1067
      %v1079 = vmul.f32 %v1023, %v1069
      %v1080 = vmul.f32 %v1024, %v1071
      %v1081 = vmul.f32 %v1025, %v1073
      %v1082 = vpack.c.bf16 %v1074, %v1074
      %v1083 = vpack.c.bf16 %v1075, %v1075
      %v1084 = vpack.c.bf16 %v1076, %v1076
      %v1085 = vpack.c.bf16 %v1077, %v1077
      %v1086 = vpack.c.bf16 %v1078, %v1078
      %v1087 = vpack.c.bf16 %v1079, %v1079
      %v1088 = vpack.c.bf16 %v1080, %v1080
      %v1089 = vpack.c.bf16 %v1081, %v1081
      %1090 = vst.msk [vmem:[%s170] sm:$0xf] %vm172, %v1082
      %1091 = vst.msk [vmem:[%s170 + $0x4] sm:$0xf] %vm172, %v1083
      %1092 = vst.msk [vmem:[%s170 + $0x8] sm:$0xf] %vm172, %v1084
      %1093 = vst.msk [vmem:[%s170 + $0xc] sm:$0xf] %vm172, %v1085
      %1094 = vst.msk [vmem:[%s170 + $0x10] sm:$0xf] %vm172, %v1086
      %1095 = vst.msk [vmem:[%s170 + $0x14] sm:$0xf] %vm172, %v1087
      %1096 = vst.msk [vmem:[%s170 + $0x18] sm:$0xf] %vm172, %v1088
      %1097 = vst.msk [vmem:[%s170 + $0x1c] sm:$0xf] %vm172, %v1089
      %p1098 = scmp.lt.s32.totalorder %s14, 1
      %s1099 = scalar_select %p1098, %s14, 1
      %s1100 = smul.addr %s1099, 8
      %s1101 = smul.addr %s1100, 4
      %s1102 = scalar_lea.vmem %s3, %s1101
      // Predicated region
      $region33: #{ss2d_forward.5} parent=31 // pred_check
        %p1103 = pneg %p100
      $region34: #{ss2d_forward.5} parent=31 // pred_check_branch
        %1105 = sbr.rel (%p1103) target = $region36
      $region35: #{ss2d_forward.5} parent=31 // pred_region
        _
      $region36: #{ss2d_forward.5} parent=31 // pred_fallthru
        _
    $region32: #{ss2d_forward.5} parent=5 // pred_fallthru
      _
    %p1106 = scmp.le.s32.totalorder 2, %s9
    // Predicated region
    $region37: #{ss2d_forward.5} parent=5 // pred_check
      %p1107 = pneg %p1106
    $region38: #{ss2d_forward.5} parent=5 // pred_check_branch
      %1109 = sbr.rel (%p1107) target = $region40
    $region39: #{ss2d_forward.5} parent=5 // pred_region
      %s1110 = ssub.s32 %s9, 2
      // Predicated region
      $region41: #{ss2d_forward.5} parent=39 // pred_check
        %p1111 = pneg %p106
      $region42: #{ss2d_forward.5} parent=39 // pred_check_branch
        %1113 = sbr.rel (%p1111) target = $region44
      $region43: #{ss2d_forward.5} parent=39 // pred_region
        %p1114 = scmp.lt.s32.totalorder %s15, 1
        %s1115 = scalar_select %p1114, %s15, 1
        %s1116 = smul.addr %s1115, 8
        %s1117 = smul.addr %s1116, 4
        %s1118 = scalar_lea.vmem %s3, %s1117
      $region44: #{ss2d_forward.5} parent=39 // pred_fallthru
        _
    $region40: #{ss2d_forward.5} parent=5 // pred_fallthru
      _
  $region6: #{ss2d_forward.5} parent=0 // loop_footer
    %s13 = sadd.s32 1, %s9
  $region7: #{ss2d_forward.5} parent=0 // loop_footer_branch
    %8 = sbr.rel target = $region3
  $region8: #{ss2d_forward.5} parent=0 // loop_exit
    _

// kernel: ss2d_forward.6
$region0: #{ss2d_forward.6}
  #allocation0 [shape = 'u32[]', space=smem, size = 0x4, offset = 0x4, fixed_abs, tag = 'smem constant byte address 0x4 - core index']
  #allocation1 [shape = 'u32[144,128]{1,0:T(1,128)}', space=vmem, size = 0x12000, scoped, tag = 'internal scratch']
  #allocation2 [shape = 'f32[16,32]{1,0:T(8,128)}', space=vmem, size = 0x2000, scoped, tag = 'scratch operand']
  #allocation3 [shape = 'f32[16,16,32]{2,1,0:T(8,128)}', space=vmem, size = 0x20000, scoped, tag = 'scratch operand']
  #allocation4 [shape = 'f32[16,16,32]{2,1,0:T(8,128)}', space=vmem, size = 0x20000, scoped, tag = 'scratch operand']
  #allocation5 [shape = 'f32[16,16,32]{2,1,0:T(8,128)}', space=vmem, size = 0x20000, scoped, tag = 'scratch operand']
  %s0 = inlined_call_operand.vmem [shape: bf16[2,4,16,32], index: 0, kind: input, shape index: {}]
  %s1 = inlined_call_operand.vmem [shape: bf16[4,32,64], index: 1, kind: input, shape index: {}]
  %s2 = inlined_call_operand.vmem [shape: f32[4,1,32], index: 2, kind: input, shape index: {}]
  %s3 = inlined_call_operand.vmem [shape: f32[4,16,32], index: 3, kind: input, shape index: {}]
  %s4 = inlined_call_operand.vmem [shape: f32[4,1,32], index: 4, kind: input, shape index: {}]
  %s5 = inlined_call_operand.vmem [shape: bf16[2,4,16,32], index: 5, kind: output, shape index: {}]
  %s6 = sld [smem:[#allocation0]]
  $region64: #{ss2d_forward.6} parent=0
    _
  %s8 = ssub.s32 1, %s6
  %s9 = scalar_select 0, %s8, %s6
  loop: start=0, step=1, limit=10
  $region2: #{ss2d_forward.6} parent=0 // loop_pre_header
    _
  $region3: #{ss2d_forward.6} parent=0 // loop_header
    %s11 = sphi 0, %s15
    %p12 = scmp.ge.s32.totalorder %s11, 10
    %s18 = sphi 0, %s37
    %s19 = sphi 0, %s33
    %s20 = sphi 0, %s29
    %s21 = sphi 0, %s18
    %s22 = sphi 0, %s19
    %s23 = sphi 0, %s20
    %s24 = sphi 0, %s21
    %s25 = sphi 0, %s22
    %s26 = sphi 0, %s23
    %s44 = sphi 0, %s46
    %s47 = sphi 0, %s44
    %s48 = sphi 0, %s47
    %s64 = sphi 0, %s48
    %s70 = sphi 0, %s72
    %s73 = sphi 0, %s70
    %s74 = sphi 0, %s73
    %s90 = sphi 0, %s74
    %s96 = sphi 0, %s98
    %s99 = sphi 0, %s96
    %s100 = sphi 0, %s99
    %s116 = sphi 0, %s100
    %s122 = sphi 0, %s124
    %s125 = sphi 0, %s122
    %s126 = sphi 0, %s125
    %s142 = sphi 0, %s126
    %s148 = sphi 0, %s150
    %s151 = sphi 0, %s148
    %s152 = sphi 0, %s151
    %s168 = sphi 0, %s152
    %s178 = sphi 0, %s180
    %s181 = sphi 0, %s178
    %s182 = sphi 0, %s181
    %s198 = sphi 0, %s182
  $region4: #{ss2d_forward.6} parent=0 // loop_header_branch
    %14 = sbr.rel (%p12) target = $region8
  $region5: #{ss2d_forward.6} parent=0 // loop_body
    %s16 = ssub.s32 %s11, 1
    %s17 = ssub.s32 %s11, 2
    %s27 = sadd.s32 1, %s20
    %p28 = scmp.ge.s32.totalorder %s27, 1
    %s29 = scalar_select %p28, 0, %s27
    %s30 = sadd.s32 1, %s19
    %s31 = scalar_select %p28, %s30, %s19
    %p32 = scmp.ge.s32.totalorder %s31, 4
    %s33 = scalar_select %p32, 0, %s31
    %s34 = sadd.s32 1, %s18
    %s35 = scalar_select %p32, %s34, %s18
    %p36 = scmp.ge.s32.totalorder %s35, 2
    %s37 = scalar_select %p36, 0, %s35
    %s38 = ssub.s32 %s18, %s37
    %s39 = ssub.s32 %s19, %s33
    %s40 = sor.u32 %s38, %s39
    %s41 = ssub.s32 %s20, %s29
    %s42 = sor.u32 %s40, %s41
    %p43 = scmp.eq.s32.totalorder %s42, 0
    %s45 = sadd.s32 %s44, 1
    %s46 = scalar_select %p43, %s44, %s45
    %p49 = pneg %p43
    %p50 = scmp.eq.s32.totalorder %s11, 7
    %p51 = por %p49, %p50
    %p52 = scmp.ne.s32.totalorder %s44, %s47
    %p53 = scmp.eq.s32.totalorder %s11, 0
    %p54 = por %p52, %p53
    %p55 = scmp.ne.s32.totalorder %s44, %s47
    %p56 = scmp.eq.s32.totalorder %s16, 7
    %p57 = por %p55, %p56
    %p58 = scmp.ne.s32.totalorder %s47, %s48
    %p59 = scmp.eq.s32.totalorder %s16, 0
    %p60 = por %p58, %p59
    %p61 = scmp.ne.s32.totalorder %s47, %s48
    %p62 = scmp.eq.s32.totalorder %s17, 7
    %p63 = por %p61, %p62
    %p65 = scmp.ne.s32.totalorder %s48, %s64
    %p66 = scmp.eq.s32.totalorder %s17, 0
    %p67 = por %p65, %p66
    %s68 = ssub.s32 %s19, %s33
    %p69 = scmp.eq.s32.totalorder %s68, 0
    %s71 = sadd.s32 %s70, 1
    %s72 = scalar_select %p69, %s70, %s71
    %p75 = pneg %p69
    %p76 = scmp.eq.s32.totalorder %s11, 7
    %p77 = por %p75, %p76
    %p78 = scmp.ne.s32.totalorder %s70, %s73
    %p79 = scmp.eq.s32.totalorder %s11, 0
    %p80 = por %p78, %p79
    %p81 = scmp.ne.s32.totalorder %s70, %s73
    %p82 = scmp.eq.s32.totalorder %s16, 7
    %p83 = por %p81, %p82
    %p84 = scmp.ne.s32.totalorder %s73, %s74
    %p85 = scmp.eq.s32.totalorder %s16, 0
    %p86 = por %p84, %p85
    %p87 = scmp.ne.s32.totalorder %s73, %s74
    %p88 = scmp.eq.s32.totalorder %s17, 7
    %p89 = por %p87, %p88
    %p91 = scmp.ne.s32.totalorder %s74, %s90
    %p92 = scmp.eq.s32.totalorder %s17, 0
    %p93 = por %p91, %p92
    %s94 = ssub.s32 %s19, %s33
    %p95 = scmp.eq.s32.totalorder %s94, 0
    %s97 = sadd.s32 %s96, 1
    %s98 = scalar_select %p95, %s96, %s97
    %p101 = pneg %p95
    %p102 = scmp.eq.s32.totalorder %s11, 7
    %p103 = por %p101, %p102
    %p104 = scmp.ne.s32.totalorder %s96, %s99
    %p105 = scmp.eq.s32.totalorder %s11, 0
    %p106 = por %p104, %p105
    %p107 = scmp.ne.s32.totalorder %s96, %s99
    %p108 = scmp.eq.s32.totalorder %s16, 7
    %p109 = por %p107, %p108
    %p110 = scmp.ne.s32.totalorder %s99, %s100
    %p111 = scmp.eq.s32.totalorder %s16, 0
    %p112 = por %p110, %p111
    %p113 = scmp.ne.s32.totalorder %s99, %s100
    %p114 = scmp.eq.s32.totalorder %s17, 7
    %p115 = por %p113, %p114
    %p117 = scmp.ne.s32.totalorder %s100, %s116
    %p118 = scmp.eq.s32.totalorder %s17, 0
    %p119 = por %p117, %p118
    %s120 = ssub.s32 %s19, %s33
    %p121 = scmp.eq.s32.totalorder %s120, 0
    %s123 = sadd.s32 %s122, 1
    %s124 = scalar_select %p121, %s122, %s123
    %p127 = pneg %p121
    %p128 = scmp.eq.s32.totalorder %s11, 7
    %p129 = por %p127, %p128
    %p130 = scmp.ne.s32.totalorder %s122, %s125
    %p131 = scmp.eq.s32.totalorder %s11, 0
    %p132 = por %p130, %p131
    %p133 = scmp.ne.s32.totalorder %s122, %s125
    %p134 = scmp.eq.s32.totalorder %s16, 7
    %p135 = por %p133, %p134
    %p136 = scmp.ne.s32.totalorder %s125, %s126
    %p137 = scmp.eq.s32.totalorder %s16, 0
    %p138 = por %p136, %p137
    %p139 = scmp.ne.s32.totalorder %s125, %s126
    %p140 = scmp.eq.s32.totalorder %s17, 7
    %p141 = por %p139, %p140
    %p143 = scmp.ne.s32.totalorder %s126, %s142
    %p144 = scmp.eq.s32.totalorder %s17, 0
    %p145 = por %p143, %p144
    %s146 = ssub.s32 %s19, %s33
    %p147 = scmp.eq.s32.totalorder %s146, 0
    %s149 = sadd.s32 %s148, 1
    %s150 = scalar_select %p147, %s148, %s149
    %p153 = pneg %p147
    %p154 = scmp.eq.s32.totalorder %s11, 7
    %p155 = por %p153, %p154
    %p156 = scmp.ne.s32.totalorder %s148, %s151
    %p157 = scmp.eq.s32.totalorder %s11, 0
    %p158 = por %p156, %p157
    %p159 = scmp.ne.s32.totalorder %s148, %s151
    %p160 = scmp.eq.s32.totalorder %s16, 7
    %p161 = por %p159, %p160
    %p162 = scmp.ne.s32.totalorder %s151, %s152
    %p163 = scmp.eq.s32.totalorder %s16, 0
    %p164 = por %p162, %p163
    %p165 = scmp.ne.s32.totalorder %s151, %s152
    %p166 = scmp.eq.s32.totalorder %s17, 7
    %p167 = por %p165, %p166
    %p169 = scmp.ne.s32.totalorder %s152, %s168
    %p170 = scmp.eq.s32.totalorder %s17, 0
    %p171 = por %p169, %p170
    %s172 = ssub.s32 %s18, %s37
    %s173 = ssub.s32 %s19, %s33
    %s174 = sor.u32 %s172, %s173
    %s175 = ssub.s32 %s20, %s29
    %s176 = sor.u32 %s174, %s175
    %p177 = scmp.eq.s32.totalorder %s176, 0
    %s179 = sadd.s32 %s178, 1
    %s180 = scalar_select %p177, %s178, %s179
    %p183 = pneg %p177
    %p184 = scmp.eq.s32.totalorder %s11, 7
    %p185 = por %p183, %p184
    %p186 = scmp.ne.s32.totalorder %s178, %s181
    %p187 = scmp.eq.s32.totalorder %s11, 0
    %p188 = por %p186, %p187
    %p189 = scmp.ne.s32.totalorder %s178, %s181
    %p190 = scmp.eq.s32.totalorder %s16, 7
    %p191 = por %p189, %p190
    %p192 = scmp.ne.s32.totalorder %s181, %s182
    %p193 = scmp.eq.s32.totalorder %s16, 0
    %p194 = por %p192, %p193
    %p195 = scmp.ne.s32.totalorder %s181, %s182
    %p196 = scmp.eq.s32.totalorder %s17, 7
    %p197 = por %p195, %p196
    %p199 = scmp.ne.s32.totalorder %s182, %s198
    %p200 = scmp.eq.s32.totalorder %s17, 0
    %p201 = por %p199, %p200
    %p202 = scmp.le.s32.totalorder 1, %s11
    %p203 = scmp.lt.s32.totalorder %s11, 9
    %p204 = pnand %p202, %p203
    %p205 = pneg %p204
    // Predicated region
    $region9: #{ss2d_forward.6} parent=5 // pred_check
      _
    $region10: #{ss2d_forward.6} parent=5 // pred_check_branch
      %207 = sbr.rel (%p204) target = $region12
    $region11: #{ss2d_forward.6} parent=5 // pred_region
      %s208 = ssub.s32 %s11, 1
    $region12: #{ss2d_forward.6} parent=5 // pred_fallthru
      _
    %p209 = scmp.lt.s32.totalorder %s11, 8
    // Predicated region
    $region13: #{ss2d_forward.6} parent=5 // pred_check
      %p210 = pneg %p209
    $region14: #{ss2d_forward.6} parent=5 // pred_check_branch
      %212 = sbr.rel (%p210) target = $region16
    $region15: #{ss2d_forward.6} parent=5 // pred_region
      // Predicated region
      $region17: #{ss2d_forward.6} parent=15 // pred_check
        %p213 = pneg %p54
      $region18: #{ss2d_forward.6} parent=15 // pred_check_branch
        %215 = sbr.rel (%p213) target = $region20
      $region19: #{ss2d_forward.6} parent=15 // pred_region
        %s216 = smul.u32 2, %s20
        %p217 = scmp.lt.s32.totalorder %s18, 1
        %s218 = scalar_select %p217, %s18, 1
        %p219 = scmp.lt.s32.totalorder %s19, 3
        %s220 = scalar_select %p219, %s19, 3
        %p221 = scmp.lt.s32.totalorder %s216, 1
        %s222 = scalar_select %p221, %s216, 1
        %s223 = smul.addr %s220, 2
        %s224 = sadd.s32 %s222, %s223
        %s225 = smul.addr %s218, 8
        %s226 = sadd.s32 %s224, %s225
        %s227 = smul.addr %s226, 4
        %s228 = scalar_lea.vmem %s0, %s227
        %s229 = smul.u32 2, %s20
      $region20: #{ss2d_forward.6} parent=15 // pred_fallthru
        _
      // Predicated region
      $region21: #{ss2d_forward.6} parent=15 // pred_check
        %p230 = pneg %p80
      $region22: #{ss2d_forward.6} parent=15 // pred_check_branch
        %232 = sbr.rel (%p230) target = $region24
      $region23: #{ss2d_forward.6} parent=15 // pred_region
        %p233 = scmp.lt.s32.totalorder %s19, 3
        %s234 = scalar_select %p233, %s19, 3
        %s235 = smul.addr %s234, 4
        %s236 = smul.addr %s235, 4
        %s237 = scalar_lea.vmem %s1, %s236
      $region24: #{ss2d_forward.6} parent=15 // pred_fallthru
        _
      // Predicated region
      $region25: #{ss2d_forward.6} parent=15 // pred_check
        %p238 = pneg %p106
      $region26: #{ss2d_forward.6} parent=15 // pred_check_branch
        %240 = sbr.rel (%p238) target = $region28
      $region27: #{ss2d_forward.6} parent=15 // pred_region
        %p241 = scmp.lt.s32.totalorder %s19, 3
        %s242 = scalar_select %p241, %s19, 3
        %s243 = scalar_lea.vmem %s2, %s242
      $region28: #{ss2d_forward.6} parent=15 // pred_fallthru
        _
      // Predicated region
      $region29: #{ss2d_forward.6} parent=15 // pred_check
        %p244 = pneg %p132
      $region30: #{ss2d_forward.6} parent=15 // pred_check_branch
        %246 = sbr.rel (%p244) target = $region32
      $region31: #{ss2d_forward.6} parent=15 // pred_region
        %p247 = scmp.lt.s32.totalorder %s19, 3
        %s248 = scalar_select %p247, %s19, 3
        %s249 = smul.addr %s248, 2
        %s250 = smul.addr %s249, 8
        %s251 = scalar_lea.vmem %s3, %s250
      $region32: #{ss2d_forward.6} parent=15 // pred_fallthru
        _
      // Predicated region
      $region33: #{ss2d_forward.6} parent=15 // pred_check
        %p252 = pneg %p158
      $region34: #{ss2d_forward.6} parent=15 // pred_check_branch
        %254 = sbr.rel (%p252) target = $region36
      $region35: #{ss2d_forward.6} parent=15 // pred_region
        %p255 = scmp.lt.s32.totalorder %s19, 3
        %s256 = scalar_select %p255, %s19, 3
        %s257 = scalar_lea.vmem %s4, %s256
      $region36: #{ss2d_forward.6} parent=15 // pred_fallthru
        _
    $region16: #{ss2d_forward.6} parent=5 // pred_fallthru
      _
    %p258 = scmp.le.s32.totalorder 1, %s11
    %p259 = scmp.lt.s32.totalorder %s11, 9
    %p260 = pnand %p258, %p259
    %p261 = pneg %p260
    // Predicated region
    $region37: #{ss2d_forward.6} parent=5 // pred_check
      _
    $region38: #{ss2d_forward.6} parent=5 // pred_check_branch
      %263 = sbr.rel (%p260) target = $region40
    $region39: #{ss2d_forward.6} parent=5 // pred_region
      %s264 = ssub.s32 %s11, 1
      %s265 = smul.u32 2, %s23
      %p266 = scmp.lt.s32.totalorder %s21, 1
      %s267 = scalar_select %p266, %s21, 1
      %p268 = scmp.lt.s32.totalorder %s22, 3
      %s269 = scalar_select %p268, %s22, 3
      %p270 = scmp.lt.s32.totalorder %s265, 1
      %s271 = scalar_select %p270, %s265, 1
      %s272 = smul.addr %s269, 2
      %s273 = sadd.s32 %s271, %s272
      %s274 = smul.addr %s267, 8
      %s275 = sadd.s32 %s273, %s274
      %s276 = smul.addr %s275, 4
      %s277 = scalar_lea.vmem %s0, %s276
      %p278 = pneg %p60
      %p279 = pneg %p57
      %p280 = scmp.lt.s32.totalorder %s22, 3
      %s281 = scalar_select %p280, %s22, 3
      %s282 = smul.addr %s281, 4
      %s283 = smul.addr %s282, 4
      %s284 = scalar_lea.vmem %s1, %s283
      %p285 = pneg %p86
      %p286 = pneg %p83
      %p287 = scmp.lt.s32.totalorder %s22, 3
      %s288 = scalar_select %p287, %s22, 3
      %s289 = scalar_lea.vmem %s2, %s288
      %p290 = pneg %p112
      %p291 = pneg %p109
      %p292 = scmp.lt.s32.totalorder %s22, 3
      %s293 = scalar_select %p292, %s22, 3
      %s294 = smul.addr %s293, 2
      %s295 = smul.addr %s294, 8
      %s296 = scalar_lea.vmem %s3, %s295
      %p297 = pneg %p138
      %p298 = pneg %p135
      %p299 = scmp.lt.s32.totalorder %s22, 3
      %s300 = scalar_select %p299, %s22, 3
      %s301 = scalar_lea.vmem %s4, %s300
      %p302 = pneg %p164
      %p303 = pneg %p161
      %p304 = pneg %p194
      %p305 = pneg %p191
      %s306 = smul.u32 2, %s23
      %p307 = scmp.lt.s32.totalorder %s21, 1
      %s308 = scalar_select %p307, %s21, 1
      %p309 = scmp.lt.s32.totalorder %s22, 3
      %s310 = scalar_select %p309, %s22, 3
      %p311 = scmp.lt.s32.totalorder %s306, 1
      %s312 = scalar_select %p311, %s306, 1
      %s313 = smul.addr %s310, 2
      %s314 = sadd.s32 %s312, %s313
      %s315 = smul.addr %s308, 8
      %s316 = sadd.s32 %s314, %s315
      %s317 = smul.addr %s316, 4
      %s318 = scalar_lea.vmem %s5, %s317
      %s319 = smul.u32 2, %s23
      %p320 = scmp.lt.s32.totalorder %s21, 1
      %s321 = scalar_select %p320, %s21, 1
      %p322 = scmp.lt.s32.totalorder %s22, 3
      %s323 = scalar_select %p322, %s22, 3
      %p324 = scmp.lt.s32.totalorder %s319, 1
      %s325 = scalar_select %p324, %s319, 1
      %s326 = smul.addr %s323, 2
      %s327 = sadd.s32 %s325, %s326
      %s328 = smul.addr %s321, 8
      %s329 = sadd.s32 %s327, %s328
      %s330 = smul.addr %s329, 4
      %s331 = scalar_lea.vmem %s0, %s330
      %s332 = smul.u32 2, %s23
      %p333 = scmp.lt.s32.totalorder %s22, 3
      %s334 = scalar_select %p333, %s22, 3
      %s335 = smul.addr %s334, 4
      %s336 = smul.addr %s335, 4
      %s337 = scalar_lea.vmem %s1, %s336
      %p338 = scmp.lt.s32.totalorder %s22, 3
      %s339 = scalar_select %p338, %s22, 3
      %s340 = scalar_lea.vmem %s2, %s339
      %p341 = scmp.lt.s32.totalorder %s22, 3
      %s342 = scalar_select %p341, %s22, 3
      %s343 = smul.addr %s342, 2
      %s344 = smul.addr %s343, 8
      %s345 = scalar_lea.vmem %s3, %s344
      %p346 = scmp.lt.s32.totalorder %s22, 3
      %s347 = scalar_select %p346, %s22, 3
      %s348 = scalar_lea.vmem %s4, %s347
      %s349 = smul.u32 2, %s23
      %p350 = scmp.lt.s32.totalorder %s21, 1
      %s351 = scalar_select %p350, %s21, 1
      %p352 = scmp.lt.s32.totalorder %s22, 3
      %s353 = scalar_select %p352, %s22, 3
      %p354 = scmp.lt.s32.totalorder %s349, 1
      %s355 = scalar_select %p354, %s349, 1
      %s356 = smul.addr %s353, 2
      %s357 = sadd.s32 %s355, %s356
      %s358 = smul.addr %s351, 8
      %s359 = sadd.s32 %s357, %s358
      %s360 = smul.addr %s359, 4
      %s361 = scalar_lea.vmem %s5, %s360
      %s362 = smul.u32 2, %s23
      %p364 = scmp.eq.s32.totalorder %s23, 0
      // Predicated region
      $region41: #{ss2d_forward.6} parent=39 // pred_check
        %p365 = pneg %p364
      $region42: #{ss2d_forward.6} parent=39 // pred_check_branch
        %367 = sbr.rel (%p365) target = $region44
      $region43: #{ss2d_forward.6} parent=39 // pred_region
        %vm368 = vcmask 261120
        %369 = vst.msk [vmem:[#allocation2] sm:$0xff] %vm368, 0.0
        %370 = vst.msk [vmem:[#allocation2 + $0x8] sm:$0xff] %vm368, 0.0
      $region44: #{ss2d_forward.6} parent=39 // pred_fallthru
        _
      %v371 = vld [vmem:[%s331] sm:$0xf]
      %v372 = vld [vmem:[%s331 + $0x4] sm:$0xf]
      %v373 = vunpack.c.l.bf16 %v371
      %v374 = vunpack.c.l.bf16 %v372
      %v375 = vld [vmem:[%s337] sm:$0xf]
      %v376 = vld [vmem:[%s337 + $0x4] sm:$0xf]
      %v377 = vld [vmem:[%s337 + $0x8] sm:$0xf]
      %v378 = vld [vmem:[%s337 + $0xc] sm:$0xf]
      %v381 = vunpack.c.l.b16 %v371
      %v382 = vunpack.c.l.b16 %v372
      %v383 = vpack.c.b16 %v382, %v381
      %v388 = vunpack.c.l.b16 %v375
      %v389 = vunpack.c.l.b16 %v376
      %v390 = vunpack.c.l.b16 %v377
      %v391 = vunpack.c.l.b16 %v378
      %v392 = vpack.c.b16 %v389, %v388
      %v393 = vpack.c.b16 %v391, %v390
      %vm396 = vcmask 261120
      %v398 = vsel %vm396, %v383, 0
      %400 = vmatprep.subr.bf16.mxu0 0
      %401 = vmatpush1.bf16.msra.mxu0 %v392
      %402 = vmatprep.subr.bf16.mxu0 0
      %403 = vmatpush1.bf16.msra.mxu0 %v393
      %404 = vmatprep.subr.bf16.mxu0 0
      %405 = vmatpush1.bf16.msra.mxu0 0
      %406 = vmatprep.subr.bf16.mxu0 0
      %407 = vmatpush1.bf16.msra.mxu0 0
      %408 = vmatprep.subr.bf16.mxu0 0
      %409 = vmatpush1.bf16.msra.mxu0 0
      %410 = vmatprep.subr.bf16.mxu0 0
      %411 = vmatpush1.bf16.msra.mxu0 0
      %412 = vmatprep.subr.bf16.mxu0 0
      %413 = vmatpush1.bf16.msra.mxu0 0
      %414 = vmatprep.subr.bf16.mxu0 0
      %415 = vmatpush1.bf16.msra.mxu0 0
      %416 = vmatprep.subr.bf16.mxu0 0
      %417 = vmatpush1.bf16.msra.mxu0 0
      %418 = vmatprep.subr.bf16.mxu0 0
      %419 = vmatpush1.bf16.msra.mxu0 0
      %420 = vmatprep.subr.bf16.mxu0 0
      %421 = vmatpush1.bf16.msra.mxu0 0
      %422 = vmatprep.subr.bf16.mxu0 0
      %423 = vmatpush1.bf16.msra.mxu0 0
      %424 = vmatprep.subr.bf16.mxu0 0
      %425 = vmatpush1.bf16.msra.mxu0 0
      %426 = vmatprep.subr.bf16.mxu0 0
      %427 = vmatpush1.bf16.msra.mxu0 0
      %428 = vmatprep.subr.bf16.mxu0 0
      %429 = vmatpush1.bf16.msra.mxu0 0
      %430 = vmatprep.subr.bf16.mxu0 0
      %431 = vmatpush1.bf16.msra.mxu0 0
      %432 = vmatprep.mubr.bf16.mxu0 0
      %433 = vmatmul.mubr.bf16.gmra.mrb[0].mxu0 %v398
      %v434 = vpop.f32.mrb[0].mxu0
      %v435 = vadd.f32 0.0, %v434
      %v436 = vpop.f32.mrb[0].mxu0
      %v437 = vpop.f32.mrb[0].mxu0
      %v438 = vadd.f32 0.0, %v437
      %v439 = vpop.f32.mrb[0].mxu0
      %440 = vdwg.mxu0
      %v441 = vld [vmem:[%s340] sm:$0x1]
      %v443 = vlaneseq
      %v444 = vshrl.u32 %v443, 7
      %v445 = vsub.s32 0, %v444
      %v446 = vrot.slane %v441, %v445
      %v448 = vadd.f32 %v435, %v446
      %v449 = vadd.f32 %v438, %v446
      %v450 = vmax.f32 %v448, 0.0
      %v451 = vmax.f32 %v449, 0.0
      %vm452 = vcmp.ne.f32.partialorder %v448, %v448
      %vm453 = vcmp.ne.f32.partialorder %v449, %v449
      %v454 = vadd.f32 %v448, 0.0
      %v455 = vadd.f32 %v449, 0.0
      %v456 = vand.u32 2147483647, %v448
      %v457 = vand.u32 2147483647, %v449
      %v458 = vsub.f32 0.0, %v456
      %v459 = vsub.f32 0.0, %v457
      %v460 = vmul.f32 %v458, 1.442695
      %v461 = vpow.pop %v460
      %v462 = vmul.f32 %v459, 1.442695
      %v463 = vpow.pop %v462
      %v464 = vadd.f32 %v461, 1.0
      %v465 = vlog2.pop %v464
      %v466 = vmul.f32 %v465, 0.6931472
      %v467 = vmul.f32 -0.5, %v461
      %v468 = vadd.f32 %v467, 1.0
      %v469 = vmul.f32 %v468, %v461
      %v470 = vand.u32 2147483647, %v461
      %vm471 = vcmp.lt.f32.partialorder %v470, 0.0004427343
      %v472 = vsel %vm471, %v469, %v466
      %v473 = vadd.f32 %v463, 1.0
      %v474 = vlog2.pop %v473
      %v475 = vmul.f32 %v474, 0.6931472
      %v476 = vmul.f32 -0.5, %v463
      %v477 = vadd.f32 %v476, 1.0
      %v478 = vmul.f32 %v477, %v463
      %v479 = vand.u32 2147483647, %v463
      %vm480 = vcmp.lt.f32.partialorder %v479, 0.0004427343
      %v481 = vsel %vm480, %v478, %v475
      %v482 = vadd.f32 %v450, %v472
      %v483 = vadd.f32 %v451, %v481
      %v484 = vsel %vm452, %v454, %v482
      %v485 = vsel %vm453, %v455, %v483
      %v486 = vld [vmem:[%s345] sm:$0xff]
      %v487 = vld [vmem:[%s345 + $0x8] sm:$0xff]
      %v490 = vcombine.high %v484, %v484
      %v492 = vunpack.c.l.s4 1966171168
      %v493 = vunpack.c.0.s8 %v492
      %v494 = vlaneseq
      %v495 = vshrl.u32 %v494, 7
      %v496 = vsub.s32 %v493, %v495
      %v497 = vrot.slane %v484, %v496
      %v499 = vunpack.c.l.s4 1966171168
      %v500 = vunpack.c.0.s8 %v499
      %v501 = vlaneseq
      %v502 = vshrl.u32 %v501, 7
      %v503 = vsub.s32 %v500, %v502
      %v504 = vrot.slane %v490, %v503
      %v505 = vcombine.high %v497, %v497
      %v506 = vcombine.high %v504, %v504
      %v508 = vunpack.c.l.s4 1966171168
      %v509 = vunpack.c.0.s8 %v508
      %v510 = vlaneseq
      %v511 = vshrl.u32 %v510, 7
      %v512 = vsub.s32 %v509, %v511
      %v513 = vrot.slane %v497, %v512
      %v515 = vunpack.c.l.s4 1966171168
      %v516 = vunpack.c.0.s8 %v515
      %v517 = vlaneseq
      %v518 = vshrl.u32 %v517, 7
      %v519 = vsub.s32 %v516, %v518
      %v520 = vrot.slane %v504, %v519
      %v522 = vunpack.c.l.s4 1966171168
      %v523 = vunpack.c.0.s8 %v522
      %v524 = vlaneseq
      %v525 = vshrl.u32 %v524, 7
      %v526 = vsub.s32 %v523, %v525
      %v527 = vrot.slane %v505, %v526
      %v529 = vunpack.c.l.s4 1966171168
      %v530 = vunpack.c.0.s8 %v529
      %v531 = vlaneseq
      %v532 = vshrl.u32 %v531, 7
      %v533 = vsub.s32 %v530, %v532
      %v534 = vrot.slane %v506, %v533
      %v535 = vcombine.high %v513, %v513
      %v536 = vcombine.high %v520, %v520
      %v537 = vcombine.high %v527, %v527
      %v538 = vcombine.high %v534, %v534
      %v539 = vcombine.high %v485, %v485
      %v541 = vunpack.c.l.s4 1966171168
      %v542 = vunpack.c.0.s8 %v541
      %v543 = vlaneseq
      %v544 = vshrl.u32 %v543, 7
      %v545 = vsub.s32 %v542, %v544
      %v546 = vrot.slane %v485, %v545
      %v548 = vunpack.c.l.s4 1966171168
      %v549 = vunpack.c.0.s8 %v548
      %v550 = vlaneseq
      %v551 = vshrl.u32 %v550, 7
      %v552 = vsub.s32 %v549, %v551
      %v553 = vrot.slane %v539, %v552
      %v554 = vcombine.high %v546, %v546
      %v555 = vcombine.high %v553, %v553
      %v557 = vunpack.c.l.s4 1966171168
      %v558 = vunpack.c.0.s8 %v557
      %v559 = vlaneseq
      %v560 = vshrl.u32 %v559, 7
      %v561 = vsub.s32 %v558, %v560
      %v562 = vrot.slane %v546, %v561
      %v564 = vunpack.c.l.s4 1966171168
      %v565 = vunpack.c.0.s8 %v564
      %v566 = vlaneseq
      %v567 = vshrl.u32 %v566, 7
      %v568 = vsub.s32 %v565, %v567
      %v569 = vrot.slane %v553, %v568
      %v571 = vunpack.c.l.s4 1966171168
      %v572 = vunpack.c.0.s8 %v571
      %v573 = vlaneseq
      %v574 = vshrl.u32 %v573, 7
      %v575 = vsub.s32 %v572, %v574
      %v576 = vrot.slane %v554, %v575
      %v578 = vunpack.c.l.s4 1966171168
      %v579 = vunpack.c.0.s8 %v578
      %v580 = vlaneseq
      %v581 = vshrl.u32 %v580, 7
      %v582 = vsub.s32 %v579, %v581
      %v583 = vrot.slane %v555, %v582
      %v584 = vcombine.high %v562, %v562
      %v585 = vcombine.high %v569, %v569
      %v586 = vcombine.high %v576, %v576
      %v587 = vcombine.high %v583, %v583
      %v588 = vlaneseq
      %v589 = vshrl.u32 %v588, 7
      %v590 = vsub.s32 0, %v589
      %v591 = vrot.slane %v513, %v590
      %v592 = vlaneseq
      %v593 = vshrl.u32 %v592, 7
      %v594 = vsub.s32 0, %v593
      %v595 = vrot.slane %v527, %v594
      %v596 = vlaneseq
      %v597 = vshrl.u32 %v596, 7
      %v598 = vsub.s32 0, %v597
      %v599 = vrot.slane %v535, %v598
      %v600 = vlaneseq
      %v601 = vshrl.u32 %v600, 7
      %v602 = vsub.s32 0, %v601
      %v603 = vrot.slane %v537, %v602
      %v604 = vlaneseq
      %v605 = vshrl.u32 %v604, 7
      %v606 = vsub.s32 0, %v605
      %v607 = vrot.slane %v520, %v606
      %v608 = vlaneseq
      %v609 = vshrl.u32 %v608, 7
      %v610 = vsub.s32 0, %v609
      %v611 = vrot.slane %v534, %v610
      %v612 = vlaneseq
      %v613 = vshrl.u32 %v612, 7
      %v614 = vsub.s32 0, %v613
      %v615 = vrot.slane %v536, %v614
      %v616 = vlaneseq
      %v617 = vshrl.u32 %v616, 7
      %v618 = vsub.s32 0, %v617
      %v619 = vrot.slane %v538, %v618
      %v620 = vlaneseq
      %v621 = vshrl.u32 %v620, 7
      %v622 = vsub.s32 0, %v621
      %v623 = vrot.slane %v562, %v622
      %v624 = vlaneseq
      %v625 = vshrl.u32 %v624, 7
      %v626 = vsub.s32 0, %v625
      %v627 = vrot.slane %v576, %v626
      %v628 = vlaneseq
      %v629 = vshrl.u32 %v628, 7
      %v630 = vsub.s32 0, %v629
      %v631 = vrot.slane %v584, %v630
      %v632 = vlaneseq
      %v633 = vshrl.u32 %v632, 7
      %v634 = vsub.s32 0, %v633
      %v635 = vrot.slane %v586, %v634
      %v636 = vlaneseq
      %v637 = vshrl.u32 %v636, 7
      %v638 = vsub.s32 0, %v637
      %v639 = vrot.slane %v569, %v638
      %v640 = vlaneseq
      %v641 = vshrl.u32 %v640, 7
      %v642 = vsub.s32 0, %v641
      %v643 = vrot.slane %v583, %v642
      %v644 = vlaneseq
      %v645 = vshrl.u32 %v644, 7
      %v646 = vsub.s32 0, %v645
      %v647 = vrot.slane %v585, %v646
      %v648 = vlaneseq
      %v649 = vshrl.u32 %v648, 7
      %v650 = vsub.s32 0, %v649
      %v651 = vrot.slane %v587, %v650
      %v668 = vmul.f32 %v591, %v486
      %v669 = vmul.f32 %v591, %v487
      %v670 = vmul.f32 %v595, %v486
      %v671 = vmul.f32 %v595, %v487
      %v672 = vmul.f32 %v599, %v486
      %v673 = vmul.f32 %v599, %v487
      %v674 = vmul.f32 %v603, %v486
      %v675 = vmul.f32 %v603, %v487
      %v676 = vmul.f32 %v607, %v486
      %v677 = vmul.f32 %v607, %v487
      %v678 = vmul.f32 %v611, %v486
      %v679 = vmul.f32 %v611, %v487
      %v680 = vmul.f32 %v615, %v486
      %v681 = vmul.f32 %v615, %v487
      %v682 = vmul.f32 %v619, %v486
      %v683 = vmul.f32 %v619, %v487
      %v684 = vmul.f32 %v623, %v486
      %v685 = vmul.f32 %v623, %v487
      %v686 = vmul.f32 %v627, %v486
      %v687 = vmul.f32 %v627, %v487
      %v688 = vmul.f32 %v631, %v486
      %v689 = vmul.f32 %v631, %v487
      %v690 = vmul.f32 %v635, %v486
      %v691 = vmul.f32 %v635, %v487
      %v692 = vmul.f32 %v639, %v486
      %v693 = vmul.f32 %v639, %v487
      %v694 = vmul.f32 %v643, %v486
      %v695 = vmul.f32 %v643, %v487
      %v696 = vmul.f32 %v647, %v486
      %v697 = vmul.f32 %v647, %v487
      %v698 = vmul.f32 %v651, %v486
      %v699 = vmul.f32 %v651, %v487
      %v700 = vmul.f32 %v668, 1.442695
      %v701 = vpow.pop %v700
      %v702 = vmul.f32 %v669, 1.442695
      %v703 = vpow.pop %v702
      %v704 = vmul.f32 %v670, 1.442695
      %v705 = vpow.pop %v704
      %v706 = vmul.f32 %v671, 1.442695
      %v707 = vpow.pop %v706
      %v708 = vmul.f32 %v672, 1.442695
      %v709 = vpow.pop %v708
      %v710 = vmul.f32 %v673, 1.442695
      %v711 = vpow.pop %v710
      %v712 = vmul.f32 %v674, 1.442695
      %v713 = vpow.pop %v712
      %v714 = vmul.f32 %v675, 1.442695
      %v715 = vpow.pop %v714
      %v716 = vmul.f32 %v676, 1.442695
      %v717 = vpow.pop %v716
      %v718 = vmul.f32 %v677, 1.442695
      %v719 = vpow.pop %v718
      %v720 = vmul.f32 %v678, 1.442695
      %v721 = vpow.pop %v720
      %v722 = vmul.f32 %v679, 1.442695
      %v723 = vpow.pop %v722
      %v724 = vmul.f32 %v680, 1.442695
      %v725 = vpow.pop %v724
      %v726 = vmul.f32 %v681, 1.442695
      %v727 = vpow.pop %v726
      %v728 = vmul.f32 %v682, 1.442695
      %v729 = vpow.pop %v728
      %v730 = vmul.f32 %v683, 1.442695
      %v731 = vpow.pop %v730
      %v732 = vmul.f32 %v684, 1.442695
      %v733 = vpow.pop %v732
      %v734 = vmul.f32 %v685, 1.442695
      %v735 = vpow.pop %v734
      %v736 = vmul.f32 %v686, 1.442695
      %v737 = vpow.pop %v736
      %v738 = vmul.f32 %v687, 1.442695
      %v739 = vpow.pop %v738
      %v740 = vmul.f32 %v688, 1.442695
      %v741 = vpow.pop %v740
      %v742 = vmul.f32 %v689, 1.442695
      %v743 = vpow.pop %v742
      %v744 = vmul.f32 %v690, 1.442695
      %v745 = vpow.pop %v744
      %v746 = vmul.f32 %v691, 1.442695
      %v747 = vpow.pop %v746
      %v748 = vmul.f32 %v692, 1.442695
      %v749 = vpow.pop %v748
      %v750 = vmul.f32 %v693, 1.442695
      %v751 = vpow.pop %v750
      %v752 = vmul.f32 %v694, 1.442695
      %v753 = vpow.pop %v752
      %v754 = vmul.f32 %v695, 1.442695
      %v755 = vpow.pop %v754
      %v756 = vmul.f32 %v696, 1.442695
      %v757 = vpow.pop %v756
      %v758 = vmul.f32 %v697, 1.442695
      %v759 = vpow.pop %v758
      %v760 = vmul.f32 %v698, 1.442695
      %v761 = vpow.pop %v760
      %v762 = vmul.f32 %v699, 1.442695
      %v763 = vpow.pop %v762
      %764 = vst.msk [vmem:[#allocation3] sm:$0xff] %vm396, %v701
      %765 = vst.msk [vmem:[#allocation3 + $0x8] sm:$0xff] %vm396, %v703
      %766 = vst.msk [vmem:[#allocation3 + $0x10] sm:$0xff] %vm396, %v705
      %767 = vst.msk [vmem:[#allocation3 + $0x18] sm:$0xff] %vm396, %v707
      %768 = vst.msk [vmem:[#allocation3 + $0x20] sm:$0xff] %vm396, %v709
      %769 = vst.msk [vmem:[#allocation3 + $0x28] sm:$0xff] %vm396, %v711
      %770 = vst.msk [vmem:[#allocation3 + $0x30] sm:$0xff] %vm396, %v713
      %771 = vst.msk [vmem:[#allocation3 + $0x38] sm:$0xff] %vm396, %v715
      %772 = vst.msk [vmem:[#allocation3 + $0x40] sm:$0xff] %vm396, %v717
      %773 = vst.msk [vmem:[#allocation3 + $0x48] sm:$0xff] %vm396, %v719
      %774 = vst.msk [vmem:[#allocation3 + $0x50] sm:$0xff] %vm396, %v721
      %775 = vst.msk [vmem:[#allocation3 + $0x58] sm:$0xff] %vm396, %v723
      %776 = vst.msk [vmem:[#allocation3 + $0x60] sm:$0xff] %vm396, %v725
      %777 = vst.msk [vmem:[#allocation3 + $0x68] sm:$0xff] %vm396, %v727
      %778 = vst.msk [vmem:[#allocation3 + $0x70] sm:$0xff] %vm396, %v729
      %779 = vst.msk [vmem:[#allocation3 + $0x78] sm:$0xff] %vm396, %v731
      %780 = vst.msk [vmem:[#allocation3 + $0x80] sm:$0xff] %vm396, %v733
      %781 = vst.msk [vmem:[#allocation3 + $0x88] sm:$0xff] %vm396, %v735
      %782 = vst.msk [vmem:[#allocation3 + $0x90] sm:$0xff] %vm396, %v737
      %783 = vst.msk [vmem:[#allocation3 + $0x98] sm:$0xff] %vm396, %v739
      %784 = vst.msk [vmem:[#allocation3 + $0xa0] sm:$0xff] %vm396, %v741
      %785 = vst.msk [vmem:[#allocation3 + $0xa8] sm:$0xff] %vm396, %v743
      %786 = vst.msk [vmem:[#allocation3 + $0xb0] sm:$0xff] %vm396, %v745
      %787 = vst.msk [vmem:[#allocation3 + $0xb8] sm:$0xff] %vm396, %v747
      %788 = vst.msk [vmem:[#allocation3 + $0xc0] sm:$0xff] %vm396, %v749
      %789 = vst.msk [vmem:[#allocation3 + $0xc8] sm:$0xff] %vm396, %v751
      %790 = vst.msk [vmem:[#allocation3 + $0xd0] sm:$0xff] %vm396, %v753
      %791 = vst.msk [vmem:[#allocation3 + $0xd8] sm:$0xff] %vm396, %v755
      %792 = vst.msk [vmem:[#allocation3 + $0xe0] sm:$0xff] %vm396, %v757
      %793 = vst.msk [vmem:[#allocation3 + $0xe8] sm:$0xff] %vm396, %v759
      %794 = vst.msk [vmem:[#allocation3 + $0xf0] sm:$0xff] %vm396, %v761
      %795 = vst.msk [vmem:[#allocation3 + $0xf8] sm:$0xff] %vm396, %v763
      %v796 = vmul.f32 %v484, %v373
      %v797 = vmul.f32 %v485, %v374
      %v800 = vcombine.high %v796, %v796
      %v802 = vunpack.c.l.s4 1966171168
      %v803 = vunpack.c.0.s8 %v802
      %v804 = vlaneseq
      %v805 = vshrl.u32 %v804, 7
      %v806 = vsub.s32 %v803, %v805
      %v807 = vrot.slane %v796, %v806
      %v809 = vunpack.c.l.s4 1966171168
      %v810 = vunpack.c.0.s8 %v809
      %v811 = vlaneseq
      %v812 = vshrl.u32 %v811, 7
      %v813 = vsub.s32 %v810, %v812
      %v814 = vrot.slane %v800, %v813
      %v815 = vcombine.high %v807, %v807
      %v816 = vcombine.high %v814, %v814
      %v818 = vunpack.c.l.s4 1966171168
      %v819 = vunpack.c.0.s8 %v818
      %v820 = vlaneseq
      %v821 = vshrl.u32 %v820, 7
      %v822 = vsub.s32 %v819, %v821
      %v823 = vrot.slane %v807, %v822
      %v825 = vunpack.c.l.s4 1966171168
      %v826 = vunpack.c.0.s8 %v825
      %v827 = vlaneseq
      %v828 = vshrl.u32 %v827, 7
      %v829 = vsub.s32 %v826, %v828
      %v830 = vrot.slane %v814, %v829
      %v832 = vunpack.c.l.s4 1966171168
      %v833 = vunpack.c.0.s8 %v832
      %v834 = vlaneseq
      %v835 = vshrl.u32 %v834, 7
      %v836 = vsub.s32 %v833, %v835
      %v837 = vrot.slane %v815, %v836
      %v839 = vunpack.c.l.s4 1966171168
      %v840 = vunpack.c.0.s8 %v839
      %v841 = vlaneseq
      %v842 = vshrl.u32 %v841, 7
      %v843 = vsub.s32 %v840, %v842
      %v844 = vrot.slane %v816, %v843
      %v845 = vcombine.high %v823, %v823
      %v846 = vcombine.high %v830, %v830
      %v847 = vcombine.high %v837, %v837
      %v848 = vcombine.high %v844, %v844
      %v849 = vcombine.high %v797, %v797
      %v851 = vunpack.c.l.s4 1966171168
      %v852 = vunpack.c.0.s8 %v851
      %v853 = vlaneseq
      %v854 = vshrl.u32 %v853, 7
      %v855 = vsub.s32 %v852, %v854
      %v856 = vrot.slane %v797, %v855
      %v858 = vunpack.c.l.s4 1966171168
      %v859 = vunpack.c.0.s8 %v858
      %v860 = vlaneseq
      %v861 = vshrl.u32 %v860, 7
      %v862 = vsub.s32 %v859, %v861
      %v863 = vrot.slane %v849, %v862
      %v864 = vcombine.high %v856, %v856
      %v865 = vcombine.high %v863, %v863
      %v867 = vunpack.c.l.s4 1966171168
      %v868 = vunpack.c.0.s8 %v867
      %v869 = vlaneseq
      %v870 = vshrl.u32 %v869, 7
      %v871 = vsub.s32 %v868, %v870
      %v872 = vrot.slane %v856, %v871
      %v874 = vunpack.c.l.s4 1966171168
      %v875 = vunpack.c.0.s8 %v874
      %v876 = vlaneseq
      %v877 = vshrl.u32 %v876, 7
      %v878 = vsub.s32 %v875, %v877
      %v879 = vrot.slane %v863, %v878
      %v881 = vunpack.c.l.s4 1966171168
      %v882 = vunpack.c.0.s8 %v881
      %v883 = vlaneseq
      %v884 = vshrl.u32 %v883, 7
      %v885 = vsub.s32 %v882, %v884
      %v886 = vrot.slane %v864, %v885
      %v888 = vunpack.c.l.s4 1966171168
      %v889 = vunpack.c.0.s8 %v888
      %v890 = vlaneseq
      %v891 = vshrl.u32 %v890, 7
      %v892 = vsub.s32 %v889, %v891
      %v893 = vrot.slane %v865, %v892
      %v894 = vcombine.high %v872, %v872
      %v895 = vcombine.high %v879, %v879
      %v896 = vcombine.high %v886, %v886
      %v897 = vcombine.high %v893, %v893
      %v898 = vlaneseq
      %v899 = vshrl.u32 %v898, 7
      %v900 = vsub.s32 0, %v899
      %v901 = vrot.slane %v435, %v900
      %s903 = sor.u32 256, 32
      %904 = vbcast.lane.b32.xlu0 %v901, %s903
      %v905 = vpop.permute.xlu0 %904
      %s907 = sor.u32 256, 40
      %908 = vbcast.lane.b32.xlu0 %v901, %s907
      %v909 = vpop.permute.xlu0 %908
      %v910 = vlaneseq
      %v911 = vshrl.u32 %v910, 7
      %v912 = vsub.s32 1, %v911
      %v913 = vrot.slane %v435, %v912
      %s915 = sor.u32 256, 32
      %916 = vbcast.lane.b32.xlu0 %v913, %s915
      %v917 = vpop.permute.xlu0 %916
      %s919 = sor.u32 256, 40
      %920 = vbcast.lane.b32.xlu0 %v913, %s919
      %v921 = vpop.permute.xlu0 %920
      %v922 = vlaneseq
      %v923 = vshrl.u32 %v922, 7
      %v924 = vsub.s32 2, %v923
      %v925 = vrot.slane %v435, %v924
      %s927 = sor.u32 256, 32
      %928 = vbcast.lane.b32.xlu0 %v925, %s927
      %v929 = vpop.permute.xlu0 %928
      %s931 = sor.u32 256, 40
      %932 = vbcast.lane.b32.xlu0 %v925, %s931
      %v933 = vpop.permute.xlu0 %932
      %v934 = vlaneseq
      %v935 = vshrl.u32 %v934, 7
      %v936 = vsub.s32 3, %v935
      %v937 = vrot.slane %v435, %v936
      %s939 = sor.u32 256, 32
      %940 = vbcast.lane.b32.xlu0 %v937, %s939
      %v941 = vpop.permute.xlu0 %940
      %s943 = sor.u32 256, 40
      %944 = vbcast.lane.b32.xlu0 %v937, %s943
      %v945 = vpop.permute.xlu0 %944
      %v946 = vlaneseq
      %v947 = vshrl.u32 %v946, 7
      %v948 = vsub.s32 4, %v947
      %v949 = vrot.slane %v435, %v948
      %s951 = sor.u32 256, 32
      %952 = vbcast.lane.b32.xlu0 %v949, %s951
      %v953 = vpop.permute.xlu0 %952
      %s955 = sor.u32 256, 40
      %956 = vbcast.lane.b32.xlu0 %v949, %s955
      %v957 = vpop.permute.xlu0 %956
      %v958 = vlaneseq
      %v959 = vshrl.u32 %v958, 7
      %v960 = vsub.s32 5, %v959
      %v961 = vrot.slane %v435, %v960
      %s963 = sor.u32 256, 32
      %964 = vbcast.lane.b32.xlu0 %v961, %s963
      %v965 = vpop.permute.xlu0 %964
      %s967 = sor.u32 256, 40
      %968 = vbcast.lane.b32.xlu0 %v961, %s967
      %v969 = vpop.permute.xlu0 %968
      %v970 = vlaneseq
      %v971 = vshrl.u32 %v970, 7
      %v972 = vsub.s32 6, %v971
      %v973 = vrot.slane %v435, %v972
      %s975 = sor.u32 256, 32
      %976 = vbcast.lane.b32.xlu0 %v973, %s975
      %v977 = vpop.permute.xlu0 %976
      %s979 = sor.u32 256, 40
      %980 = vbcast.lane.b32.xlu0 %v973, %s979
      %v981 = vpop.permute.xlu0 %980
      %v982 = vlaneseq
      %v983 = vshrl.u32 %v982, 7
      %v984 = vsub.s32 7, %v983
      %v985 = vrot.slane %v435, %v984
      %s987 = sor.u32 256, 32
      %988 = vbcast.lane.b32.xlu0 %v985, %s987
      %v989 = vpop.permute.xlu0 %988
      %s991 = sor.u32 256, 40
      %992 = vbcast.lane.b32.xlu0 %v985, %s991
      %v993 = vpop.permute.xlu0 %992
      %v994 = vlaneseq
      %v995 = vshrl.u32 %v994, 7
      %v996 = vsub.s32 0, %v995
      %v997 = vrot.slane %v438, %v996
      %s999 = sor.u32 256, 32
      %1000 = vbcast.lane.b32.xlu0 %v997, %s999
      %v1001 = vpop.permute.xlu0 %1000
      %s1003 = sor.u32 256, 40
      %1004 = vbcast.lane.b32.xlu0 %v997, %s1003
      %v1005 = vpop.permute.xlu0 %1004
      %v1006 = vlaneseq
      %v1007 = vshrl.u32 %v1006, 7
      %v1008 = vsub.s32 1, %v1007
      %v1009 = vrot.slane %v438, %v1008
      %s1011 = sor.u32 256, 32
      %1012 = vbcast.lane.b32.xlu0 %v1009, %s1011
      %v1013 = vpop.permute.xlu0 %1012
      %s1015 = sor.u32 256, 40
      %1016 = vbcast.lane.b32.xlu0 %v1009, %s1015
      %v1017 = vpop.permute.xlu0 %1016
      %v1018 = vlaneseq
      %v1019 = vshrl.u32 %v1018, 7
      %v1020 = vsub.s32 2, %v1019
      %v1021 = vrot.slane %v438, %v1020
      %s1023 = sor.u32 256, 32
      %1024 = vbcast.lane.b32.xlu0 %v1021, %s1023
      %v1025 = vpop.permute.xlu0 %1024
      %s1027 = sor.u32 256, 40
      %1028 = vbcast.lane.b32.xlu0 %v1021, %s1027
      %v1029 = vpop.permute.xlu0 %1028
      %v1030 = vlaneseq
      %v1031 = vshrl.u32 %v1030, 7
      %v1032 = vsub.s32 3, %v1031
      %v1033 = vrot.slane %v438, %v1032
      %s1035 = sor.u32 256, 32
      %1036 = vbcast.lane.b32.xlu0 %v1033, %s1035
      %v1037 = vpop.permute.xlu0 %1036
      %s1039 = sor.u32 256, 40
      %1040 = vbcast.lane.b32.xlu0 %v1033, %s1039
      %v1041 = vpop.permute.xlu0 %1040
      %v1042 = vlaneseq
      %v1043 = vshrl.u32 %v1042, 7
      %v1044 = vsub.s32 4, %v1043
      %v1045 = vrot.slane %v438, %v1044
      %s1047 = sor.u32 256, 32
      %1048 = vbcast.lane.b32.xlu0 %v1045, %s1047
      %v1049 = vpop.permute.xlu0 %1048
      %s1051 = sor.u32 256, 40
      %1052 = vbcast.lane.b32.xlu0 %v1045, %s1051
      %v1053 = vpop.permute.xlu0 %1052
      %v1054 = vlaneseq
      %v1055 = vshrl.u32 %v1054, 7
      %v1056 = vsub.s32 5, %v1055
      %v1057 = vrot.slane %v438, %v1056
      %s1059 = sor.u32 256, 32
      %1060 = vbcast.lane.b32.xlu0 %v1057, %s1059
      %v1061 = vpop.permute.xlu0 %1060
      %s1063 = sor.u32 256, 40
      %1064 = vbcast.lane.b32.xlu0 %v1057, %s1063
      %v1065 = vpop.permute.xlu0 %1064
      %v1066 = vlaneseq
      %v1067 = vshrl.u32 %v1066, 7
      %v1068 = vsub.s32 6, %v1067
      %v1069 = vrot.slane %v438, %v1068
      %s1071 = sor.u32 256, 32
      %1072 = vbcast.lane.b32.xlu0 %v1069, %s1071
      %v1073 = vpop.permute.xlu0 %1072
      %s1075 = sor.u32 256, 40
      %1076 = vbcast.lane.b32.xlu0 %v1069, %s1075
      %v1077 = vpop.permute.xlu0 %1076
      %v1078 = vlaneseq
      %v1079 = vshrl.u32 %v1078, 7
      %v1080 = vsub.s32 7, %v1079
      %v1081 = vrot.slane %v438, %v1080
      %s1083 = sor.u32 256, 32
      %1084 = vbcast.lane.b32.xlu0 %v1081, %s1083
      %v1085 = vpop.permute.xlu0 %1084
      %s1087 = sor.u32 256, 40
      %1088 = vbcast.lane.b32.xlu0 %v1081, %s1087
      %v1089 = vpop.permute.xlu0 %1088
      %v1090 = vlaneseq
      %v1091 = vshrl.u32 %v1090, 7
      %v1092 = vsub.s32 0, %v1091
      %v1093 = vrot.slane %v823, %v1092
      %v1094 = vlaneseq
      %v1095 = vshrl.u32 %v1094, 7
      %v1096 = vsub.s32 0, %v1095
      %v1097 = vrot.slane %v837, %v1096
      %v1098 = vlaneseq
      %v1099 = vshrl.u32 %v1098, 7
      %v1100 = vsub.s32 0, %v1099
      %v1101 = vrot.slane %v845, %v1100
      %v1102 = vlaneseq
      %v1103 = vshrl.u32 %v1102, 7
      %v1104 = vsub.s32 0, %v1103
      %v1105 = vrot.slane %v847, %v1104
      %v1106 = vlaneseq
      %v1107 = vshrl.u32 %v1106, 7
      %v1108 = vsub.s32 0, %v1107
      %v1109 = vrot.slane %v830, %v1108
      %v1110 = vlaneseq
      %v1111 = vshrl.u32 %v1110, 7
      %v1112 = vsub.s32 0, %v1111
      %v1113 = vrot.slane %v844, %v1112
      %v1114 = vlaneseq
      %v1115 = vshrl.u32 %v1114, 7
      %v1116 = vsub.s32 0, %v1115
      %v1117 = vrot.slane %v846, %v1116
      %v1118 = vlaneseq
      %v1119 = vshrl.u32 %v1118, 7
      %v1120 = vsub.s32 0, %v1119
      %v1121 = vrot.slane %v848, %v1120
      %v1122 = vlaneseq
      %v1123 = vshrl.u32 %v1122, 7
      %v1124 = vsub.s32 0, %v1123
      %v1125 = vrot.slane %v872, %v1124
      %v1126 = vlaneseq
      %v1127 = vshrl.u32 %v1126, 7
      %v1128 = vsub.s32 0, %v1127
      %v1129 = vrot.slane %v886, %v1128
      %v1130 = vlaneseq
      %v1131 = vshrl.u32 %v1130, 7
      %v1132 = vsub.s32 0, %v1131
      %v1133 = vrot.slane %v894, %v1132
      %v1134 = vlaneseq
      %v1135 = vshrl.u32 %v1134, 7
      %v1136 = vsub.s32 0, %v1135
      %v1137 = vrot.slane %v896, %v1136
      %v1138 = vlaneseq
      %v1139 = vshrl.u32 %v1138, 7
      %v1140 = vsub.s32 0, %v1139
      %v1141 = vrot.slane %v879, %v1140
      %v1142 = vlaneseq
      %v1143 = vshrl.u32 %v1142, 7
      %v1144 = vsub.s32 0, %v1143
      %v1145 = vrot.slane %v893, %v1144
      %v1146 = vlaneseq
      %v1147 = vshrl.u32 %v1146, 7
      %v1148 = vsub.s32 0, %v1147
      %v1149 = vrot.slane %v895, %v1148
      %v1150 = vlaneseq
      %v1151 = vshrl.u32 %v1150, 7
      %v1152 = vsub.s32 0, %v1151
      %v1153 = vrot.slane %v897, %v1152
      %v1170 = vmul.f32 %v1093, %v905
      %v1171 = vmul.f32 %v1093, %v909
      %v1172 = vmul.f32 %v1097, %v917
      %v1173 = vmul.f32 %v1097, %v921
      %v1174 = vmul.f32 %v1101, %v929
      %v1175 = vmul.f32 %v1101, %v933
      %v1176 = vmul.f32 %v1105, %v941
      %v1177 = vmul.f32 %v1105, %v945
      %v1178 = vmul.f32 %v1109, %v953
      %v1179 = vmul.f32 %v1109, %v957
      %v1180 = vmul.f32 %v1113, %v965
      %v1181 = vmul.f32 %v1113, %v969
      %v1182 = vmul.f32 %v1117, %v977
      %v1183 = vmul.f32 %v1117, %v981
      %v1184 = vmul.f32 %v1121, %v989
      %v1185 = vmul.f32 %v1121, %v993
      %v1186 = vmul.f32 %v1125, %v1001
      %v1187 = vmul.f32 %v1125, %v1005
      %v1188 = vmul.f32 %v1129, %v1013
      %v1189 = vmul.f32 %v1129, %v1017
      %v1190 = vmul.f32 %v1133, %v1025
      %v1191 = vmul.f32 %v1133, %v1029
      %v1192 = vmul.f32 %v1137, %v1037
      %v1193 = vmul.f32 %v1137, %v1041
      %v1194 = vmul.f32 %v1141, %v1049
      %v1195 = vmul.f32 %v1141, %v1053
      %v1196 = vmul.f32 %v1145, %v1061
      %v1197 = vmul.f32 %v1145, %v1065
      %v1198 = vmul.f32 %v1149, %v1073
      %v1199 = vmul.f32 %v1149, %v1077
      %v1200 = vmul.f32 %v1153, %v1085
      %v1201 = vmul.f32 %v1153, %v1089
      %1202 = vst.msk [vmem:[#allocation4] sm:$0xff] %vm396, %v1170
      %1203 = vst.msk [vmem:[#allocation4 + $0x8] sm:$0xff] %vm396, %v1171
      %1204 = vst.msk [vmem:[#allocation4 + $0x10] sm:$0xff] %vm396, %v1172
      %1205 = vst.msk [vmem:[#allocation4 + $0x18] sm:$0xff] %vm396, %v1173
      %1206 = vst.msk [vmem:[#allocation4 + $0x20] sm:$0xff] %vm396, %v1174
      %1207 = vst.msk [vmem:[#allocation4 + $0x28] sm:$0xff] %vm396, %v1175
      %1208 = vst.msk [vmem:[#allocation4 + $0x30] sm:$0xff] %vm396, %v1176
      %1209 = vst.msk [vmem:[#allocation4 + $0x38] sm:$0xff] %vm396, %v1177
      %1210 = vst.msk [vmem:[#allocation4 + $0x40] sm:$0xff] %vm396, %v1178
      %1211 = vst.msk [vmem:[#allocation4 + $0x48] sm:$0xff] %vm396, %v1179
      %1212 = vst.msk [vmem:[#allocation4 + $0x50] sm:$0xff] %vm396, %v1180
      %1213 = vst.msk [vmem:[#allocation4 + $0x58] sm:$0xff] %vm396, %v1181
      %1214 = vst.msk [vmem:[#allocation4 + $0x60] sm:$0xff] %vm396, %v1182
      %1215 = vst.msk [vmem:[#allocation4 + $0x68] sm:$0xff] %vm396, %v1183
      %1216 = vst.msk [vmem:[#allocation4 + $0x70] sm:$0xff] %vm396, %v1184
      %1217 = vst.msk [vmem:[#allocation4 + $0x78] sm:$0xff] %vm396, %v1185
      %1218 = vst.msk [vmem:[#allocation4 + $0x80] sm:$0xff] %vm396, %v1186
      %1219 = vst.msk [vmem:[#allocation4 + $0x88] sm:$0xff] %vm396, %v1187
      %1220 = vst.msk [vmem:[#allocation4 + $0x90] sm:$0xff] %vm396, %v1188
      %1221 = vst.msk [vmem:[#allocation4 + $0x98] sm:$0xff] %vm396, %v1189
      %1222 = vst.msk [vmem:[#allocation4 + $0xa0] sm:$0xff] %vm396, %v1190
      %1223 = vst.msk [vmem:[#allocation4 + $0xa8] sm:$0xff] %vm396, %v1191
      %1224 = vst.msk [vmem:[#allocation4 + $0xb0] sm:$0xff] %vm396, %v1192
      %1225 = vst.msk [vmem:[#allocation4 + $0xb8] sm:$0xff] %vm396, %v1193
      %1226 = vst.msk [vmem:[#allocation4 + $0xc0] sm:$0xff] %vm396, %v1194
      %1227 = vst.msk [vmem:[#allocation4 + $0xc8] sm:$0xff] %vm396, %v1195
      %1228 = vst.msk [vmem:[#allocation4 + $0xd0] sm:$0xff] %vm396, %v1196
      %1229 = vst.msk [vmem:[#allocation4 + $0xd8] sm:$0xff] %vm396, %v1197
      %1230 = vst.msk [vmem:[#allocation4 + $0xe0] sm:$0xff] %vm396, %v1198
      %1231 = vst.msk [vmem:[#allocation4 + $0xe8] sm:$0xff] %vm396, %v1199
      %1232 = vst.msk [vmem:[#allocation4 + $0xf0] sm:$0xff] %vm396, %v1200
      %1233 = vst.msk [vmem:[#allocation4 + $0xf8] sm:$0xff] %vm396, %v1201
      %s1235 = sor.u32 256, 48
      %1236 = vbcast.lane.b32.xlu0 %v901, %s1235
      %v1237 = vpop.permute.xlu0 %1236
      %s1239 = sor.u32 256, 56
      %1240 = vbcast.lane.b32.xlu0 %v901, %s1239
      %v1241 = vpop.permute.xlu0 %1240
      %s1243 = sor.u32 256, 48
      %1244 = vbcast.lane.b32.xlu0 %v913, %s1243
      %v1245 = vpop.permute.xlu0 %1244
      %s1247 = sor.u32 256, 56
      %1248 = vbcast.lane.b32.xlu0 %v913, %s1247
      %v1249 = vpop.permute.xlu0 %1248
      %s1251 = sor.u32 256, 48
      %1252 = vbcast.lane.b32.xlu0 %v925, %s1251
      %v1253 = vpop.permute.xlu0 %1252
      %s1255 = sor.u32 256, 56
      %1256 = vbcast.lane.b32.xlu0 %v925, %s1255
      %v1257 = vpop.permute.xlu0 %1256
      %s1259 = sor.u32 256, 48
      %1260 = vbcast.lane.b32.xlu0 %v937, %s1259
      %v1261 = vpop.permute.xlu0 %1260
      %s1263 = sor.u32 256, 56
      %1264 = vbcast.lane.b32.xlu0 %v937, %s1263
      %v1265 = vpop.permute.xlu0 %1264
      %s1267 = sor.u32 256, 48
      %1268 = vbcast.lane.b32.xlu0 %v949, %s1267
      %v1269 = vpop.permute.xlu0 %1268
      %s1271 = sor.u32 256, 56
      %1272 = vbcast.lane.b32.xlu0 %v949, %s1271
      %v1273 = vpop.permute.xlu0 %1272
      %s1275 = sor.u32 256, 48
      %1276 = vbcast.lane.b32.xlu0 %v961, %s1275
      %v1277 = vpop.permute.xlu0 %1276
      %s1279 = sor.u32 256, 56
      %1280 = vbcast.lane.b32.xlu0 %v961, %s1279
      %v1281 = vpop.permute.xlu0 %1280
      %s1283 = sor.u32 256, 48
      %1284 = vbcast.lane.b32.xlu0 %v973, %s1283
      %v1285 = vpop.permute.xlu0 %1284
      %s1287 = sor.u32 256, 56
      %1288 = vbcast.lane.b32.xlu0 %v973, %s1287
      %v1289 = vpop.permute.xlu0 %1288
      %s1291 = sor.u32 256, 48
      %1292 = vbcast.lane.b32.xlu0 %v985, %s1291
      %v1293 = vpop.permute.xlu0 %1292
      %s1295 = sor.u32 256, 56
      %1296 = vbcast.lane.b32.xlu0 %v985, %s1295
      %v1297 = vpop.permute.xlu0 %1296
      %s1299 = sor.u32 256, 48
      %1300 = vbcast.lane.b32.xlu0 %v997, %s1299
      %v1301 = vpop.permute.xlu0 %1300
      %s1303 = sor.u32 256, 56
      %1304 = vbcast.lane.b32.xlu0 %v997, %s1303
      %v1305 = vpop.permute.xlu0 %1304
      %s1307 = sor.u32 256, 48
      %1308 = vbcast.lane.b32.xlu0 %v1009, %s1307
      %v1309 = vpop.permute.xlu0 %1308
      %s1311 = sor.u32 256, 56
      %1312 = vbcast.lane.b32.xlu0 %v1009, %s1311
      %v1313 = vpop.permute.xlu0 %1312
      %s1315 = sor.u32 256, 48
      %1316 = vbcast.lane.b32.xlu0 %v1021, %s1315
      %v1317 = vpop.permute.xlu0 %1316
      %s1319 = sor.u32 256, 56
      %1320 = vbcast.lane.b32.xlu0 %v1021, %s1319
      %v1321 = vpop.permute.xlu0 %1320
      %s1323 = sor.u32 256, 48
      %1324 = vbcast.lane.b32.xlu0 %v1033, %s1323
      %v1325 = vpop.permute.xlu0 %1324
      %s1327 = sor.u32 256, 56
      %1328 = vbcast.lane.b32.xlu0 %v1033, %s1327
      %v1329 = vpop.permute.xlu0 %1328
      %s1331 = sor.u32 256, 48
      %1332 = vbcast.lane.b32.xlu0 %v1045, %s1331
      %v1333 = vpop.permute.xlu0 %1332
      %s1335 = sor.u32 256, 56
      %1336 = vbcast.lane.b32.xlu0 %v1045, %s1335
      %v1337 = vpop.permute.xlu0 %1336
      %s1339 = sor.u32 256, 48
      %1340 = vbcast.lane.b32.xlu0 %v1057, %s1339
      %v1341 = vpop.permute.xlu0 %1340
      %s1343 = sor.u32 256, 56
      %1344 = vbcast.lane.b32.xlu0 %v1057, %s1343
      %v1345 = vpop.permute.xlu0 %1344
      %s1347 = sor.u32 256, 48
      %1348 = vbcast.lane.b32.xlu0 %v1069, %s1347
      %v1349 = vpop.permute.xlu0 %1348
      %s1351 = sor.u32 256, 56
      %1352 = vbcast.lane.b32.xlu0 %v1069, %s1351
      %v1353 = vpop.permute.xlu0 %1352
      %s1355 = sor.u32 256, 48
      %1356 = vbcast.lane.b32.xlu0 %v1081, %s1355
      %v1357 = vpop.permute.xlu0 %1356
      %s1359 = sor.u32 256, 56
      %1360 = vbcast.lane.b32.xlu0 %v1081, %s1359
      %v1361 = vpop.permute.xlu0 %1360
      %1362 = vst.msk [vmem:[#allocation5] sm:$0xff] %vm396, %v1237
      %1363 = vst.msk [vmem:[#allocation5 + $0x8] sm:$0xff] %vm396, %v1241
      %1364 = vst.msk [vmem:[#allocation5 + $0x10] sm:$0xff] %vm396, %v1245
      %1365 = vst.msk [vmem:[#allocation5 + $0x18] sm:$0xff] %vm396, %v1249
      %1366 = vst.msk [vmem:[#allocation5 + $0x20] sm:$0xff] %vm396, %v1253
      %1367 = vst.msk [vmem:[#allocation5 + $0x28] sm:$0xff] %vm396, %v1257
      %1368 = vst.msk [vmem:[#allocation5 + $0x30] sm:$0xff] %vm396, %v1261
      %1369 = vst.msk [vmem:[#allocation5 + $0x38] sm:$0xff] %vm396, %v1265
      %1370 = vst.msk [vmem:[#allocation5 + $0x40] sm:$0xff] %vm396, %v1269
      %1371 = vst.msk [vmem:[#allocation5 + $0x48] sm:$0xff] %vm396, %v1273
      %1372 = vst.msk [vmem:[#allocation5 + $0x50] sm:$0xff] %vm396, %v1277
      %1373 = vst.msk [vmem:[#allocation5 + $0x58] sm:$0xff] %vm396, %v1281
      %1374 = vst.msk [vmem:[#allocation5 + $0x60] sm:$0xff] %vm396, %v1285
      %1375 = vst.msk [vmem:[#allocation5 + $0x68] sm:$0xff] %vm396, %v1289
      %1376 = vst.msk [vmem:[#allocation5 + $0x70] sm:$0xff] %vm396, %v1293
      %1377 = vst.msk [vmem:[#allocation5 + $0x78] sm:$0xff] %vm396, %v1297
      %1378 = vst.msk [vmem:[#allocation5 + $0x80] sm:$0xff] %vm396, %v1301
      %1379 = vst.msk [vmem:[#allocation5 + $0x88] sm:$0xff] %vm396, %v1305
      %1380 = vst.msk [vmem:[#allocation5 + $0x90] sm:$0xff] %vm396, %v1309
      %1381 = vst.msk [vmem:[#allocation5 + $0x98] sm:$0xff] %vm396, %v1313
      %1382 = vst.msk [vmem:[#allocation5 + $0xa0] sm:$0xff] %vm396, %v1317
      %1383 = vst.msk [vmem:[#allocation5 + $0xa8] sm:$0xff] %vm396, %v1321
      %1384 = vst.msk [vmem:[#allocation5 + $0xb0] sm:$0xff] %vm396, %v1325
      %1385 = vst.msk [vmem:[#allocation5 + $0xb8] sm:$0xff] %vm396, %v1329
      %1386 = vst.msk [vmem:[#allocation5 + $0xc0] sm:$0xff] %vm396, %v1333
      %1387 = vst.msk [vmem:[#allocation5 + $0xc8] sm:$0xff] %vm396, %v1337
      %1388 = vst.msk [vmem:[#allocation5 + $0xd0] sm:$0xff] %vm396, %v1341
      %1389 = vst.msk [vmem:[#allocation5 + $0xd8] sm:$0xff] %vm396, %v1345
      %1390 = vst.msk [vmem:[#allocation5 + $0xe0] sm:$0xff] %vm396, %v1349
      %1391 = vst.msk [vmem:[#allocation5 + $0xe8] sm:$0xff] %vm396, %v1353
      %1392 = vst.msk [vmem:[#allocation5 + $0xf0] sm:$0xff] %vm396, %v1357
      %1393 = vst.msk [vmem:[#allocation5 + $0xf8] sm:$0xff] %vm396, %v1361
      %v1394 = vld [vmem:[%s348] sm:$0x1]
      %v1395 = vld [vmem:[#allocation2] sm:$0xff]
      %v1396 = vld [vmem:[#allocation2 + $0x8] sm:$0xff]
      loop: start=0, step=1, limit=2
      $region45: #{ss2d_forward.6} parent=39 // loop_pre_header
        _
      $region46: #{ss2d_forward.6} parent=39 // loop_header
        %s1398 = sphi 0, %s1402
        %p1399 = scmp.ge.s32.totalorder %s1398, 2
        %v1403 = vphi %v1395, %v1597
        %v1404 = vphi %v1396, %v1598
      $region47: #{ss2d_forward.6} parent=39 // loop_header_branch
        %1401 = sbr.rel (%p1399) target = $region51
      $region48: #{ss2d_forward.6} parent=39 // loop_body
        %s1405 = smul.u32 %s1398, 8
        %s1406 = smul.u32 %s1405, 16
        %s1407 = scalar_lea.vmem [#allocation3], %s1406
        %v1408 = vld [vmem:[%s1407] sm:$0xff]
        %v1409 = vld [vmem:[%s1407 + $0x8] sm:$0xff]
        %v1410 = vmul.f32 %v1408, %v1403
        %v1411 = vmul.f32 %v1409, %v1404
        %s1412 = scalar_lea.vmem [#allocation4], %s1406
        %v1413 = vld [vmem:[%s1412] sm:$0xff]
        %v1414 = vld [vmem:[%s1412 + $0x8] sm:$0xff]
        %v1415 = vadd.f32 %v1410, %v1413
        %v1416 = vadd.f32 %v1411, %v1414
        %s1417 = scalar_lea.vmem [#allocation5], %s1406
        %v1418 = vld [vmem:[%s1417] sm:$0xff]
        %v1419 = vld [vmem:[%s1417 + $0x8] sm:$0xff]
        %v1420 = vmul.f32 %v1415, %v1418
        %v1421 = vmul.f32 %v1416, %v1419
        %v1422 = vsel %vm396, %v1420, 0.0
        %v1423 = vsel %vm396, %v1421, 0.0
        %v1424 = vadd.f32 %v1422, %v1423
        %v1425 = vrot.slane %v1424, 4
        %v1426 = vadd.f32 %v1424, %v1425
        %v1427 = vrot.slane %v1426, 2
        %v1428 = vadd.f32 %v1426, %v1427
        %v1429 = vrot.slane %v1428, 1
        %v1430 = vadd.f32 %v1428, %v1429
        %s1431 = sadd.s32 %s1405, 1
        %s1432 = smul.u32 %s1431, 16
        %s1433 = scalar_lea.vmem [#allocation3], %s1432
        %v1434 = vld [vmem:[%s1433] sm:$0xff]
        %v1435 = vld [vmem:[%s1433 + $0x8] sm:$0xff]
        %v1436 = vmul.f32 %v1434, %v1415
        %v1437 = vmul.f32 %v1435, %v1416
        %s1438 = scalar_lea.vmem [#allocation4], %s1432
        %v1439 = vld [vmem:[%s1438] sm:$0xff]
        %v1440 = vld [vmem:[%s1438 + $0x8] sm:$0xff]
        %v1441 = vadd.f32 %v1436, %v1439
        %v1442 = vadd.f32 %v1437, %v1440
        %s1443 = scalar_lea.vmem [#allocation5], %s1432
        %v1444 = vld [vmem:[%s1443] sm:$0xff]
        %v1445 = vld [vmem:[%s1443 + $0x8] sm:$0xff]
        %v1446 = vmul.f32 %v1441, %v1444
        %v1447 = vmul.f32 %v1442, %v1445
        %v1448 = vsel %vm396, %v1446, 0.0
        %v1449 = vsel %vm396, %v1447, 0.0
        %v1450 = vadd.f32 %v1448, %v1449
        %v1451 = vrot.slane %v1450, 4
        %v1452 = vadd.f32 %v1450, %v1451
        %v1453 = vrot.slane %v1452, 2
        %v1454 = vadd.f32 %v1452, %v1453
        %v1455 = vrot.slane %v1454, 1
        %v1456 = vadd.f32 %v1454, %v1455
        %s1457 = sadd.s32 %s1405, 2
        %s1458 = smul.u32 %s1457, 16
        %s1459 = scalar_lea.vmem [#allocation3], %s1458
        %v1460 = vld [vmem:[%s1459] sm:$0xff]
        %v1461 = vld [vmem:[%s1459 + $0x8] sm:$0xff]
        %v1462 = vmul.f32 %v1460, %v1441
        %v1463 = vmul.f32 %v1461, %v1442
        %s1464 = scalar_lea.vmem [#allocation4], %s1458
        %v1465 = vld [vmem:[%s1464] sm:$0xff]
        %v1466 = vld [vmem:[%s1464 + $0x8] sm:$0xff]
        %v1467 = vadd.f32 %v1462, %v1465
        %v1468 = vadd.f32 %v1463, %v1466
        %s1469 = scalar_lea.vmem [#allocation5], %s1458
        %v1470 = vld [vmem:[%s1469] sm:$0xff]
        %v1471 = vld [vmem:[%s1469 + $0x8] sm:$0xff]
        %v1472 = vmul.f32 %v1467, %v1470
        %v1473 = vmul.f32 %v1468, %v1471
        %v1474 = vsel %vm396, %v1472, 0.0
        %v1475 = vsel %vm396, %v1473, 0.0
        %v1476 = vadd.f32 %v1474, %v1475
        %v1477 = vrot.slane %v1476, 4
        %v1478 = vadd.f32 %v1476, %v1477
        %v1479 = vrot.slane %v1478, 2
        %v1480 = vadd.f32 %v1478, %v1479
        %v1481 = vrot.slane %v1480, 1
        %v1482 = vadd.f32 %v1480, %v1481
        %s1483 = sadd.s32 %s1405, 3
        %s1484 = smul.u32 %s1483, 16
        %s1485 = scalar_lea.vmem [#allocation3], %s1484
        %v1486 = vld [vmem:[%s1485] sm:$0xff]
        %v1487 = vld [vmem:[%s1485 + $0x8] sm:$0xff]
        %v1488 = vmul.f32 %v1486, %v1467
        %v1489 = vmul.f32 %v1487, %v1468
        %s1490 = scalar_lea.vmem [#allocation4], %s1484
        %v1491 = vld [vmem:[%s1490] sm:$0xff]
        %v1492 = vld [vmem:[%s1490 + $0x8] sm:$0xff]
        %v1493 = vadd.f32 %v1488, %v1491
        %v1494 = vadd.f32 %v1489, %v1492
        %s1495 = scalar_lea.vmem [#allocation5], %s1484
        %v1496 = vld [vmem:[%s1495] sm:$0xff]
        %v1497 = vld [vmem:[%s1495 + $0x8] sm:$0xff]
        %v1498 = vmul.f32 %v1493, %v1496
        %v1499 = vmul.f32 %v1494, %v1497
        %v1500 = vsel %vm396, %v1498, 0.0
        %v1501 = vsel %vm396, %v1499, 0.0
        %v1502 = vadd.f32 %v1500, %v1501
        %v1503 = vrot.slane %v1502, 4
        %v1504 = vadd.f32 %v1502, %v1503
        %v1505 = vrot.slane %v1504, 2
        %v1506 = vadd.f32 %v1504, %v1505
        %v1507 = vrot.slane %v1506, 1
        %v1508 = vadd.f32 %v1506, %v1507
        %s1509 = sadd.s32 %s1405, 4
        %s1510 = smul.u32 %s1509, 16
        %s1511 = scalar_lea.vmem [#allocation3], %s1510
        %v1512 = vld [vmem:[%s1511] sm:$0xff]
        %v1513 = vld [vmem:[%s1511 + $0x8] sm:$0xff]
        %v1514 = vmul.f32 %v1512, %v1493
        %v1515 = vmul.f32 %v1513, %v1494
        %s1516 = scalar_lea.vmem [#allocation4], %s1510
        %v1517 = vld [vmem:[%s1516] sm:$0xff]
        %v1518 = vld [vmem:[%s1516 + $0x8] sm:$0xff]
        %v1519 = vadd.f32 %v1514, %v1517
        %v1520 = vadd.f32 %v1515, %v1518
        %s1521 = scalar_lea.vmem [#allocation5], %s1510
        %v1522 = vld [vmem:[%s1521] sm:$0xff]
        %v1523 = vld [vmem:[%s1521 + $0x8] sm:$0xff]
        %v1524 = vmul.f32 %v1519, %v1522
        %v1525 = vmul.f32 %v1520, %v1523
        %v1526 = vsel %vm396, %v1524, 0.0
        %v1527 = vsel %vm396, %v1525, 0.0
        %v1528 = vadd.f32 %v1526, %v1527
        %v1529 = vrot.slane %v1528, 4
        %v1530 = vadd.f32 %v1528, %v1529
        %v1531 = vrot.slane %v1530, 2
        %v1532 = vadd.f32 %v1530, %v1531
        %v1533 = vrot.slane %v1532, 1
        %v1534 = vadd.f32 %v1532, %v1533
        %s1535 = sadd.s32 %s1405, 5
        %s1536 = smul.u32 %s1535, 16
        %s1537 = scalar_lea.vmem [#allocation3], %s1536
        %v1538 = vld [vmem:[%s1537] sm:$0xff]
        %v1539 = vld [vmem:[%s1537 + $0x8] sm:$0xff]
        %v1540 = vmul.f32 %v1538, %v1519
        %v1541 = vmul.f32 %v1539, %v1520
        %s1542 = scalar_lea.vmem [#allocation4], %s1536
        %v1543 = vld [vmem:[%s1542] sm:$0xff]
        %v1544 = vld [vmem:[%s1542 + $0x8] sm:$0xff]
        %v1545 = vadd.f32 %v1540, %v1543
        %v1546 = vadd.f32 %v1541, %v1544
        %s1547 = scalar_lea.vmem [#allocation5], %s1536
        %v1548 = vld [vmem:[%s1547] sm:$0xff]
        %v1549 = vld [vmem:[%s1547 + $0x8] sm:$0xff]
        %v1550 = vmul.f32 %v1545, %v1548
        %v1551 = vmul.f32 %v1546, %v1549
        %v1552 = vsel %vm396, %v1550, 0.0
        %v1553 = vsel %vm396, %v1551, 0.0
        %v1554 = vadd.f32 %v1552, %v1553
        %v1555 = vrot.slane %v1554, 4
        %v1556 = vadd.f32 %v1554, %v1555
        %v1557 = vrot.slane %v1556, 2
        %v1558 = vadd.f32 %v1556, %v1557
        %v1559 = vrot.slane %v1558, 1
        %v1560 = vadd.f32 %v1558, %v1559
        %s1561 = sadd.s32 %s1405, 6
        %s1562 = smul.u32 %s1561, 16
        %s1563 = scalar_lea.vmem [#allocation3], %s1562
        %v1564 = vld [vmem:[%s1563] sm:$0xff]
        %v1565 = vld [vmem:[%s1563 + $0x8] sm:$0xff]
        %v1566 = vmul.f32 %v1564, %v1545
        %v1567 = vmul.f32 %v1565, %v1546
        %s1568 = scalar_lea.vmem [#allocation4], %s1562
        %v1569 = vld [vmem:[%s1568] sm:$0xff]
        %v1570 = vld [vmem:[%s1568 + $0x8] sm:$0xff]
        %v1571 = vadd.f32 %v1566, %v1569
        %v1572 = vadd.f32 %v1567, %v1570
        %s1573 = scalar_lea.vmem [#allocation5], %s1562
        %v1574 = vld [vmem:[%s1573] sm:$0xff]
        %v1575 = vld [vmem:[%s1573 + $0x8] sm:$0xff]
        %v1576 = vmul.f32 %v1571, %v1574
        %v1577 = vmul.f32 %v1572, %v1575
        %v1578 = vsel %vm396, %v1576, 0.0
        %v1579 = vsel %vm396, %v1577, 0.0
        %v1580 = vadd.f32 %v1578, %v1579
        %v1581 = vrot.slane %v1580, 4
        %v1582 = vadd.f32 %v1580, %v1581
        %v1583 = vrot.slane %v1582, 2
        %v1584 = vadd.f32 %v1582, %v1583
        %v1585 = vrot.slane %v1584, 1
        %v1586 = vadd.f32 %v1584, %v1585
        %s1587 = sadd.s32 %s1405, 7
        %s1588 = smul.u32 %s1587, 16
        %s1589 = scalar_lea.vmem [#allocation3], %s1588
        %v1590 = vld [vmem:[%s1589] sm:$0xff]
        %v1591 = vld [vmem:[%s1589 + $0x8] sm:$0xff]
        %v1592 = vmul.f32 %v1590, %v1571
        %v1593 = vmul.f32 %v1591, %v1572
        %s1594 = scalar_lea.vmem [#allocation4], %s1588
        %v1595 = vld [vmem:[%s1594] sm:$0xff]
        %v1596 = vld [vmem:[%s1594 + $0x8] sm:$0xff]
        %v1597 = vadd.f32 %v1592, %v1595
        %v1598 = vadd.f32 %v1593, %v1596
        %s1599 = scalar_lea.vmem [#allocation5], %s1588
        %v1600 = vld [vmem:[%s1599] sm:$0xff]
        %v1601 = vld [vmem:[%s1599 + $0x8] sm:$0xff]
        %v1602 = vmul.f32 %v1597, %v1600
        %v1603 = vmul.f32 %v1598, %v1601
        %v1604 = vsel %vm396, %v1602, 0.0
        %v1605 = vsel %vm396, %v1603, 0.0
        %v1606 = vadd.f32 %v1604, %v1605
        %v1607 = vrot.slane %v1606, 4
        %v1608 = vadd.f32 %v1606, %v1607
        %v1609 = vrot.slane %v1608, 2
        %v1610 = vadd.f32 %v1608, %v1609
        %v1611 = vrot.slane %v1610, 1
        %v1612 = vadd.f32 %v1610, %v1611
        %vm1613 = vcmask 1040384
        %v1614 = vsel %vm1613, %v1430, %v1456
        %vm1615 = vcmask 1041408
        %v1616 = vsel %vm1615, %v1614, %v1482
        %vm1617 = vcmask 1042432
        %v1618 = vsel %vm1617, %v1616, %v1508
        %vm1619 = vcmask 1043456
        %v1620 = vsel %vm1619, %v1618, %v1534
        %vm1621 = vcmask 1044480
        %v1622 = vsel %vm1621, %v1620, %v1560
        %vm1623 = vcmask 1045504
        %v1624 = vsel %vm1623, %v1622, %v1586
        %vm1625 = vcmask 1046528
        %v1626 = vsel %vm1625, %v1624, %v1612
        %s1627 = sshra.s32 %s1405, 3
        %s1628 = sand.u32 %s1405, 7
        %s1629 = smul.addr %s1627, 4
        %s1630 = scalar_lea.vmem %s331, %s1629
        %v1631 = vld [vmem:[%s1630] sm:$0xf]
        %v1632 = vunpack.c.l.bf16 %v1631
        %v1634 = vlaneseq
        %v1635 = vshrl.u32 %v1634, 7
        %v1636 = vsub.s32 0, %v1635
        %v1637 = vrot.slane %v1394, %v1636
        %v1639 = vmul.f32 %v1637, %v1632
        %v1640 = vadd.f32 %v1626, %v1639
        %v1641 = vpack.c.bf16 %v1640, %v1640
        %s1642 = smul.addr %s1627, 4
        %s1643 = scalar_lea.vmem %s361, %s1642
        %vm1644 = vcmask 257024
        %1645 = vst.msk [vmem:[%s1643] sm:$0xf] %vm1644, %v1641
      $region49: #{ss2d_forward.6} parent=39 // loop_footer
        %s1402 = sadd.s32 1, %s1398
      $region50: #{ss2d_forward.6} parent=39 // loop_footer_branch
        %1397 = sbr.rel target = $region46
      $region51: #{ss2d_forward.6} parent=39 // loop_exit
        _
      %1646 = vst.msk [vmem:[#allocation2] sm:$0xff] %vm396, %v1403
      %1647 = vst.msk [vmem:[#allocation2 + $0x8] sm:$0xff] %vm396, %v1404
      %s1648 = smul.u32 2, %s23
      %p1649 = scmp.lt.s32.totalorder %s21, 1
      %s1650 = scalar_select %p1649, %s21, 1
      %p1651 = scmp.lt.s32.totalorder %s22, 3
      %s1652 = scalar_select %p1651, %s22, 3
      %p1653 = scmp.lt.s32.totalorder %s1648, 1
      %s1654 = scalar_select %p1653, %s1648, 1
      %s1655 = smul.addr %s1652, 2
      %s1656 = sadd.s32 %s1654, %s1655
      %s1657 = smul.addr %s1650, 8
      %s1658 = sadd.s32 %s1656, %s1657
      %s1659 = smul.addr %s1658, 4
      %s1660 = scalar_lea.vmem %s5, %s1659
      // Predicated region
      $region52: #{ss2d_forward.6} parent=39 // pred_check
        %p1661 = pneg %p191
      $region53: #{ss2d_forward.6} parent=39 // pred_check_branch
        %1663 = sbr.rel (%p1661) target = $region55
      $region54: #{ss2d_forward.6} parent=39 // pred_region
        %s1664 = smul.u32 2, %s23
      $region55: #{ss2d_forward.6} parent=39 // pred_fallthru
        _
    $region40: #{ss2d_forward.6} parent=5 // pred_fallthru
      _
    %p1665 = scmp.le.s32.totalorder 2, %s11
    // Predicated region
    $region56: #{ss2d_forward.6} parent=5 // pred_check
      %p1666 = pneg %p1665
    $region57: #{ss2d_forward.6} parent=5 // pred_check_branch
      %1668 = sbr.rel (%p1666) target = $region59
    $region58: #{ss2d_forward.6} parent=5 // pred_region
      %s1669 = ssub.s32 %s11, 2
      // Predicated region
      $region60: #{ss2d_forward.6} parent=58 // pred_check
        %p1670 = pneg %p197
      $region61: #{ss2d_forward.6} parent=58 // pred_check_branch
        %1672 = sbr.rel (%p1670) target = $region63
      $region62: #{ss2d_forward.6} parent=58 // pred_region
        %s1673 = smul.u32 2, %s26
        %p1674 = scmp.lt.s32.totalorder %s24, 1
        %s1675 = scalar_select %p1674, %s24, 1
        %p1676 = scmp.lt.s32.totalorder %s25, 3
        %s1677 = scalar_select %p1676, %s25, 3
        %p1678 = scmp.lt.s32.totalorder %s1673, 1
        %s1679 = scalar_select %p1678, %s1673, 1
        %s1680 = smul.addr %s1677, 2
        %s1681 = sadd.s32 %s1679, %s1680
        %s1682 = smul.addr %s1675, 8
        %s1683 = sadd.s32 %s1681, %s1682
        %s1684 = smul.addr %s1683, 4
        %s1685 = scalar_lea.vmem %s5, %s1684
      $region63: #{ss2d_forward.6} parent=58 // pred_fallthru
        _
    $region59: #{ss2d_forward.6} parent=5 // pred_fallthru
      _
  $region6: #{ss2d_forward.6} parent=0 // loop_footer
    %s15 = sadd.s32 1, %s11
  $region7: #{ss2d_forward.6} parent=0 // loop_footer_branch
    %10 = sbr.rel target = $region3
  $region8: #{ss2d_forward.6} parent=0 // loop_exit
    _

// kernel: ss2d_forward.7
$region0: #{ss2d_forward.7}
  #allocation0 [shape = 'u32[]', space=smem, size = 0x4, offset = 0x4, fixed_abs, tag = 'smem constant byte address 0x4 - core index']
  #allocation1 [shape = 'u32[144,128]{1,0:T(1,128)}', space=vmem, size = 0x12000, scoped, tag = 'internal scratch']
  %s0 = inlined_call_operand.vmem [shape: bf16[128,32], index: 0, kind: input, shape index: {}]
  %s1 = inlined_call_operand.vmem [shape: bf16[128,32], index: 1, kind: input, shape index: {}]
  %s2 = inlined_call_operand.vmem [shape: f32[1,32], index: 2, kind: input, shape index: {}]
  %s3 = inlined_call_operand.vmem [shape: f32[1,32], index: 3, kind: input, shape index: {}]
  %s4 = inlined_call_operand.vmem [shape: bf16[32,16], index: 4, kind: input, shape index: {}]
  %s5 = inlined_call_operand.hbm [shape: f32[128,16], index: 5, kind: output, shape index: {}]
  %s6 = sld [smem:[#allocation0]]
  $region30: #{ss2d_forward.7} parent=0
    _
  %s8 = ssub.s32 1, %s6
  %s9 = scalar_select 0, %s8, %s6
  $region1: #{ss2d_forward.7} parent=0
    #allocation2 [shape = 'u8[65536]{0}', space=vmem, size = 0x10000, scoped, tag = 'output window, operand 0, single buffered']
    #allocation3 [shape = 's32[1]{0}', space=sflag, size = 0x4, scoped, tag = 'scoped memory for ss2d_forward.7']
    %10 = vsyncpa [#allocation3], 0
    // Predicated region
    $region2: #{ss2d_forward.7} parent=1 // pred_check
      _
    $region3: #{ss2d_forward.7} parent=1 // pred_check_branch
      %12 = sbr.rel (0) target = $region5
    $region4: #{ss2d_forward.7} parent=1 // pred_region
      _
    $region5: #{ss2d_forward.7} parent=1 // pred_fallthru
      _
    // Predicated region
    $region6: #{ss2d_forward.7} parent=1 // pred_check
      _
    $region7: #{ss2d_forward.7} parent=1 // pred_check_branch
      %14 = sbr.rel (0) target = $region9
    $region8: #{ss2d_forward.7} parent=1 // pred_region
      _
    $region9: #{ss2d_forward.7} parent=1 // pred_fallthru
      _
    // Predicated region
    $region10: #{ss2d_forward.7} parent=1 // pred_check
      _
    $region11: #{ss2d_forward.7} parent=1 // pred_check_branch
      %16 = sbr.rel (0) target = $region13
    $region12: #{ss2d_forward.7} parent=1 // pred_region
      _
    $region13: #{ss2d_forward.7} parent=1 // pred_fallthru
      _
    // Predicated region
    $region14: #{ss2d_forward.7} parent=1 // pred_check
      _
    $region15: #{ss2d_forward.7} parent=1 // pred_check_branch
      %18 = sbr.rel (0) target = $region17
    $region16: #{ss2d_forward.7} parent=1 // pred_region
      _
    $region17: #{ss2d_forward.7} parent=1 // pred_fallthru
      _
    // Predicated region
    $region18: #{ss2d_forward.7} parent=1 // pred_check
      _
    $region19: #{ss2d_forward.7} parent=1 // pred_check_branch
      %20 = sbr.rel (0) target = $region21
    $region20: #{ss2d_forward.7} parent=1 // pred_region
      _
    $region21: #{ss2d_forward.7} parent=1 // pred_fallthru
      _
    %v22 = vld [vmem:[%s0] sm:$0xf]
    %v23 = vld [vmem:[%s0 + $0x4] sm:$0xf]
    %v24 = vld [vmem:[%s0 + $0x8] sm:$0xf]
    %v25 = vld [vmem:[%s0 + $0xc] sm:$0xf]
    %v26 = vld [vmem:[%s0 + $0x10] sm:$0xf]
    %v27 = vld [vmem:[%s0 + $0x14] sm:$0xf]
    %v28 = vld [vmem:[%s0 + $0x18] sm:$0xf]
    %v29 = vld [vmem:[%s0 + $0x1c] sm:$0xf]
    %v30 = vld [vmem:[%s0 + $0x20] sm:$0xf]
    %v31 = vld [vmem:[%s0 + $0x24] sm:$0xf]
    %v32 = vld [vmem:[%s0 + $0x28] sm:$0xf]
    %v33 = vld [vmem:[%s0 + $0x2c] sm:$0xf]
    %v34 = vld [vmem:[%s0 + $0x30] sm:$0xf]
    %v35 = vld [vmem:[%s0 + $0x34] sm:$0xf]
    %v36 = vld [vmem:[%s0 + $0x38] sm:$0xf]
    %v37 = vld [vmem:[%s0 + $0x3c] sm:$0xf]
    %v38 = vunpack.c.l.bf16 %v22
    %v39 = vunpack.c.l.bf16 %v23
    %v40 = vunpack.c.l.bf16 %v24
    %v41 = vunpack.c.l.bf16 %v25
    %v42 = vunpack.c.l.bf16 %v26
    %v43 = vunpack.c.l.bf16 %v27
    %v44 = vunpack.c.l.bf16 %v28
    %v45 = vunpack.c.l.bf16 %v29
    %v46 = vunpack.c.l.bf16 %v30
    %v47 = vunpack.c.l.bf16 %v31
    %v48 = vunpack.c.l.bf16 %v32
    %v49 = vunpack.c.l.bf16 %v33
    %v50 = vunpack.c.l.bf16 %v34
    %v51 = vunpack.c.l.bf16 %v35
    %v52 = vunpack.c.l.bf16 %v36
    %v53 = vunpack.c.l.bf16 %v37
    %vm54 = vcmask 261120
    %v55 = vsel %vm54, %v38, 0.0
    %56 = vadd.xlane.f32.xlu0 %v55
    %v57 = vpop.xlane.xlu0 %56
    %v58 = vsel %vm54, %v39, 0.0
    %59 = vadd.xlane.f32.xlu0 %v58
    %v60 = vpop.xlane.xlu0 %59
    %v61 = vsel %vm54, %v40, 0.0
    %62 = vadd.xlane.f32.xlu0 %v61
    %v63 = vpop.xlane.xlu0 %62
    %v64 = vsel %vm54, %v41, 0.0
    %65 = vadd.xlane.f32.xlu0 %v64
    %v66 = vpop.xlane.xlu0 %65
    %v67 = vsel %vm54, %v42, 0.0
    %68 = vadd.xlane.f32.xlu0 %v67
    %v69 = vpop.xlane.xlu0 %68
    %v70 = vsel %vm54, %v43, 0.0
    %71 = vadd.xlane.f32.xlu0 %v70
    %v72 = vpop.xlane.xlu0 %71
    %v73 = vsel %vm54, %v44, 0.0
    %74 = vadd.xlane.f32.xlu0 %v73
    %v75 = vpop.xlane.xlu0 %74
    %v76 = vsel %vm54, %v45, 0.0
    %77 = vadd.xlane.f32.xlu0 %v76
    %v78 = vpop.xlane.xlu0 %77
    %v79 = vsel %vm54, %v46, 0.0
    %80 = vadd.xlane.f32.xlu0 %v79
    %v81 = vpop.xlane.xlu0 %80
    %v82 = vsel %vm54, %v47, 0.0
    %83 = vadd.xlane.f32.xlu0 %v82
    %v84 = vpop.xlane.xlu0 %83
    %v85 = vsel %vm54, %v48, 0.0
    %86 = vadd.xlane.f32.xlu0 %v85
    %v87 = vpop.xlane.xlu0 %86
    %v88 = vsel %vm54, %v49, 0.0
    %89 = vadd.xlane.f32.xlu0 %v88
    %v90 = vpop.xlane.xlu0 %89
    %v91 = vsel %vm54, %v50, 0.0
    %92 = vadd.xlane.f32.xlu0 %v91
    %v93 = vpop.xlane.xlu0 %92
    %v94 = vsel %vm54, %v51, 0.0
    %95 = vadd.xlane.f32.xlu0 %v94
    %v96 = vpop.xlane.xlu0 %95
    %v97 = vsel %vm54, %v52, 0.0
    %98 = vadd.xlane.f32.xlu0 %v97
    %v99 = vpop.xlane.xlu0 %98
    %v100 = vsel %vm54, %v53, 0.0
    %101 = vadd.xlane.f32.xlu0 %v100
    %v102 = vpop.xlane.xlu0 %101
    %v103 = vrcp.pop 32.0
    %v104 = vmul.f32 %v57, %v103
    %v105 = vmul.f32 %v60, %v103
    %v106 = vmul.f32 %v63, %v103
    %v107 = vmul.f32 %v66, %v103
    %v108 = vmul.f32 %v69, %v103
    %v109 = vmul.f32 %v72, %v103
    %v110 = vmul.f32 %v75, %v103
    %v111 = vmul.f32 %v78, %v103
    %v112 = vmul.f32 %v81, %v103
    %v113 = vmul.f32 %v84, %v103
    %v114 = vmul.f32 %v87, %v103
    %v115 = vmul.f32 %v90, %v103
    %v116 = vmul.f32 %v93, %v103
    %v117 = vmul.f32 %v96, %v103
    %v118 = vmul.f32 %v99, %v103
    %v119 = vmul.f32 %v102, %v103
    %v120 = vsub.f32 %v38, %v104
    %v121 = vsub.f32 %v39, %v105
    %v122 = vsub.f32 %v40, %v106
    %v123 = vsub.f32 %v41, %v107
    %v124 = vsub.f32 %v42, %v108
    %v125 = vsub.f32 %v43, %v109
    %v126 = vsub.f32 %v44, %v110
    %v127 = vsub.f32 %v45, %v111
    %v128 = vsub.f32 %v46, %v112
    %v129 = vsub.f32 %v47, %v113
    %v130 = vsub.f32 %v48, %v114
    %v131 = vsub.f32 %v49, %v115
    %v132 = vsub.f32 %v50, %v116
    %v133 = vsub.f32 %v51, %v117
    %v134 = vsub.f32 %v52, %v118
    %v135 = vsub.f32 %v53, %v119
    %v136 = vmul.f32 %v120, %v120
    %v137 = vmul.f32 %v121, %v121
    %v138 = vmul.f32 %v122, %v122
    %v139 = vmul.f32 %v123, %v123
    %v140 = vmul.f32 %v124, %v124
    %v141 = vmul.f32 %v125, %v125
    %v142 = vmul.f32 %v126, %v126
    %v143 = vmul.f32 %v127, %v127
    %v144 = vmul.f32 %v128, %v128
    %v145 = vmul.f32 %v129, %v129
    %v146 = vmul.f32 %v130, %v130
    %v147 = vmul.f32 %v131, %v131
    %v148 = vmul.f32 %v132, %v132
    %v149 = vmul.f32 %v133, %v133
    %v150 = vmul.f32 %v134, %v134
    %v151 = vmul.f32 %v135, %v135
    %v152 = vsel %vm54, %v136, 0.0
    %153 = vadd.xlane.f32.xlu0 %v152
    %v154 = vpop.xlane.xlu0 %153
    %v155 = vsel %vm54, %v137, 0.0
    %156 = vadd.xlane.f32.xlu0 %v155
    %v157 = vpop.xlane.xlu0 %156
    %v158 = vsel %vm54, %v138, 0.0
    %159 = vadd.xlane.f32.xlu0 %v158
    %v160 = vpop.xlane.xlu0 %159
    %v161 = vsel %vm54, %v139, 0.0
    %162 = vadd.xlane.f32.xlu0 %v161
    %v163 = vpop.xlane.xlu0 %162
    %v164 = vsel %vm54, %v140, 0.0
    %165 = vadd.xlane.f32.xlu0 %v164
    %v166 = vpop.xlane.xlu0 %165
    %v167 = vsel %vm54, %v141, 0.0
    %168 = vadd.xlane.f32.xlu0 %v167
    %v169 = vpop.xlane.xlu0 %168
    %v170 = vsel %vm54, %v142, 0.0
    %171 = vadd.xlane.f32.xlu0 %v170
    %v172 = vpop.xlane.xlu0 %171
    %v173 = vsel %vm54, %v143, 0.0
    %174 = vadd.xlane.f32.xlu0 %v173
    %v175 = vpop.xlane.xlu0 %174
    %v176 = vsel %vm54, %v144, 0.0
    %177 = vadd.xlane.f32.xlu0 %v176
    %v178 = vpop.xlane.xlu0 %177
    %v179 = vsel %vm54, %v145, 0.0
    %180 = vadd.xlane.f32.xlu0 %v179
    %v181 = vpop.xlane.xlu0 %180
    %v182 = vsel %vm54, %v146, 0.0
    %183 = vadd.xlane.f32.xlu0 %v182
    %v184 = vpop.xlane.xlu0 %183
    %v185 = vsel %vm54, %v147, 0.0
    %186 = vadd.xlane.f32.xlu0 %v185
    %v187 = vpop.xlane.xlu0 %186
    %v188 = vsel %vm54, %v148, 0.0
    %189 = vadd.xlane.f32.xlu0 %v188
    %v190 = vpop.xlane.xlu0 %189
    %v191 = vsel %vm54, %v149, 0.0
    %192 = vadd.xlane.f32.xlu0 %v191
    %v193 = vpop.xlane.xlu0 %192
    %v194 = vsel %vm54, %v150, 0.0
    %195 = vadd.xlane.f32.xlu0 %v194
    %v196 = vpop.xlane.xlu0 %195
    %v197 = vsel %vm54, %v151, 0.0
    %198 = vadd.xlane.f32.xlu0 %v197
    %v199 = vpop.xlane.xlu0 %198
    %v200 = vmul.f32 %v154, %v103
    %v201 = vmul.f32 %v157, %v103
    %v202 = vmul.f32 %v160, %v103
    %v203 = vmul.f32 %v163, %v103
    %v204 = vmul.f32 %v166, %v103
    %v205 = vmul.f32 %v169, %v103
    %v206 = vmul.f32 %v172, %v103
    %v207 = vmul.f32 %v175, %v103
    %v208 = vmul.f32 %v178, %v103
    %v209 = vmul.f32 %v181, %v103
    %v210 = vmul.f32 %v184, %v103
    %v211 = vmul.f32 %v187, %v103
    %v212 = vmul.f32 %v190, %v103
    %v213 = vmul.f32 %v193, %v103
    %v214 = vmul.f32 %v196, %v103
    %v215 = vmul.f32 %v199, %v103
    %v216 = vadd.f32 %v200, 1e-05
    %v217 = vadd.f32 %v201, 1e-05
    %v218 = vadd.f32 %v202, 1e-05
    %v219 = vadd.f32 %v203, 1e-05
    %v220 = vadd.f32 %v204, 1e-05
    %v221 = vadd.f32 %v205, 1e-05
    %v222 = vadd.f32 %v206, 1e-05
    %v223 = vadd.f32 %v207, 1e-05
    %v224 = vadd.f32 %v208, 1e-05
    %v225 = vadd.f32 %v209, 1e-05
    %v226 = vadd.f32 %v210, 1e-05
    %v227 = vadd.f32 %v211, 1e-05
    %v228 = vadd.f32 %v212, 1e-05
    %v229 = vadd.f32 %v213, 1e-05
    %v230 = vadd.f32 %v214, 1e-05
    %v231 = vadd.f32 %v215, 1e-05
    %v232 = vrsqrt.pop %v216
    %v233 = vrsqrt.pop %v217
    %v234 = vrsqrt.pop %v218
    %v235 = vrsqrt.pop %v219
    %v236 = vrsqrt.pop %v220
    %v237 = vrsqrt.pop %v221
    %v238 = vrsqrt.pop %v222
    %v239 = vrsqrt.pop %v223
    %v240 = vrsqrt.pop %v224
    %v241 = vrsqrt.pop %v225
    %v242 = vrsqrt.pop %v226
    %v243 = vrsqrt.pop %v227
    %v244 = vrsqrt.pop %v228
    %v245 = vrsqrt.pop %v229
    %v246 = vrsqrt.pop %v230
    %v247 = vrsqrt.pop %v231
    %v248 = vmul.f32 %v120, %v232
    %v249 = vmul.f32 %v121, %v233
    %v250 = vmul.f32 %v122, %v234
    %v251 = vmul.f32 %v123, %v235
    %v252 = vmul.f32 %v124, %v236
    %v253 = vmul.f32 %v125, %v237
    %v254 = vmul.f32 %v126, %v238
    %v255 = vmul.f32 %v127, %v239
    %v256 = vmul.f32 %v128, %v240
    %v257 = vmul.f32 %v129, %v241
    %v258 = vmul.f32 %v130, %v242
    %v259 = vmul.f32 %v131, %v243
    %v260 = vmul.f32 %v132, %v244
    %v261 = vmul.f32 %v133, %v245
    %v262 = vmul.f32 %v134, %v246
    %v263 = vmul.f32 %v135, %v247
    %v264 = vld [vmem:[%s2] sm:$0x1]
    %v266 = vlaneseq
    %v267 = vshrl.u32 %v266, 7
    %v268 = vsub.s32 0, %v267
    %v269 = vrot.slane %v264, %v268
    %v271 = vmul.f32 %v248, %v269
    %v272 = vmul.f32 %v249, %v269
    %v273 = vmul.f32 %v250, %v269
    %v274 = vmul.f32 %v251, %v269
    %v275 = vmul.f32 %v252, %v269
    %v276 = vmul.f32 %v253, %v269
    %v277 = vmul.f32 %v254, %v269
    %v278 = vmul.f32 %v255, %v269
    %v279 = vmul.f32 %v256, %v269
    %v280 = vmul.f32 %v257, %v269
    %v281 = vmul.f32 %v258, %v269
    %v282 = vmul.f32 %v259, %v269
    %v283 = vmul.f32 %v260, %v269
    %v284 = vmul.f32 %v261, %v269
    %v285 = vmul.f32 %v262, %v269
    %v286 = vmul.f32 %v263, %v269
    %v287 = vld [vmem:[%s3] sm:$0x1]
    %v289 = vlaneseq
    %v290 = vshrl.u32 %v289, 7
    %v291 = vsub.s32 0, %v290
    %v292 = vrot.slane %v287, %v291
    %v294 = vadd.f32 %v271, %v292
    %v295 = vadd.f32 %v272, %v292
    %v296 = vadd.f32 %v273, %v292
    %v297 = vadd.f32 %v274, %v292
    %v298 = vadd.f32 %v275, %v292
    %v299 = vadd.f32 %v276, %v292
    %v300 = vadd.f32 %v277, %v292
    %v301 = vadd.f32 %v278, %v292
    %v302 = vadd.f32 %v279, %v292
    %v303 = vadd.f32 %v280, %v292
    %v304 = vadd.f32 %v281, %v292
    %v305 = vadd.f32 %v282, %v292
    %v306 = vadd.f32 %v283, %v292
    %v307 = vadd.f32 %v284, %v292
    %v308 = vadd.f32 %v285, %v292
    %v309 = vadd.f32 %v286, %v292
    %v310 = vld [vmem:[%s1] sm:$0xf]
    %v311 = vld [vmem:[%s1 + $0x4] sm:$0xf]
    %v312 = vld [vmem:[%s1 + $0x8] sm:$0xf]
    %v313 = vld [vmem:[%s1 + $0xc] sm:$0xf]
    %v314 = vld [vmem:[%s1 + $0x10] sm:$0xf]
    %v315 = vld [vmem:[%s1 + $0x14] sm:$0xf]
    %v316 = vld [vmem:[%s1 + $0x18] sm:$0xf]
    %v317 = vld [vmem:[%s1 + $0x1c] sm:$0xf]
    %v318 = vld [vmem:[%s1 + $0x20] sm:$0xf]
    %v319 = vld [vmem:[%s1 + $0x24] sm:$0xf]
    %v320 = vld [vmem:[%s1 + $0x28] sm:$0xf]
    %v321 = vld [vmem:[%s1 + $0x2c] sm:$0xf]
    %v322 = vld [vmem:[%s1 + $0x30] sm:$0xf]
    %v323 = vld [vmem:[%s1 + $0x34] sm:$0xf]
    %v324 = vld [vmem:[%s1 + $0x38] sm:$0xf]
    %v325 = vld [vmem:[%s1 + $0x3c] sm:$0xf]
    %v326 = vunpack.c.l.bf16 %v310
    %v327 = vunpack.c.l.bf16 %v311
    %v328 = vunpack.c.l.bf16 %v312
    %v329 = vunpack.c.l.bf16 %v313
    %v330 = vunpack.c.l.bf16 %v314
    %v331 = vunpack.c.l.bf16 %v315
    %v332 = vunpack.c.l.bf16 %v316
    %v333 = vunpack.c.l.bf16 %v317
    %v334 = vunpack.c.l.bf16 %v318
    %v335 = vunpack.c.l.bf16 %v319
    %v336 = vunpack.c.l.bf16 %v320
    %v337 = vunpack.c.l.bf16 %v321
    %v338 = vunpack.c.l.bf16 %v322
    %v339 = vunpack.c.l.bf16 %v323
    %v340 = vunpack.c.l.bf16 %v324
    %v341 = vunpack.c.l.bf16 %v325
    %v342 = vxor.u32 %v326, 2147483648
    %v343 = vxor.u32 %v327, 2147483648
    %v344 = vxor.u32 %v328, 2147483648
    %v345 = vxor.u32 %v329, 2147483648
    %v346 = vxor.u32 %v330, 2147483648
    %v347 = vxor.u32 %v331, 2147483648
    %v348 = vxor.u32 %v332, 2147483648
    %v349 = vxor.u32 %v333, 2147483648
    %v350 = vxor.u32 %v334, 2147483648
    %v351 = vxor.u32 %v335, 2147483648
    %v352 = vxor.u32 %v336, 2147483648
    %v353 = vxor.u32 %v337, 2147483648
    %v354 = vxor.u32 %v338, 2147483648
    %v355 = vxor.u32 %v339, 2147483648
    %v356 = vxor.u32 %v340, 2147483648
    %v357 = vxor.u32 %v341, 2147483648
    %v358 = vmul.f32 %v342, 1.442695
    %v359 = vpow.pop %v358
    %v360 = vmul.f32 %v343, 1.442695
    %v361 = vpow.pop %v360
    %v362 = vmul.f32 %v344, 1.442695
    %v363 = vpow.pop %v362
    %v364 = vmul.f32 %v345, 1.442695
    %v365 = vpow.pop %v364
    %v366 = vmul.f32 %v346, 1.442695
    %v367 = vpow.pop %v366
    %v368 = vmul.f32 %v347, 1.442695
    %v369 = vpow.pop %v368
    %v370 = vmul.f32 %v348, 1.442695
    %v371 = vpow.pop %v370
    %v372 = vmul.f32 %v349, 1.442695
    %v373 = vpow.pop %v372
    %v374 = vmul.f32 %v350, 1.442695
    %v375 = vpow.pop %v374
    %v376 = vmul.f32 %v351, 1.442695
    %v377 = vpow.pop %v376
    %v378 = vmul.f32 %v352, 1.442695
    %v379 = vpow.pop %v378
    %v380 = vmul.f32 %v353, 1.442695
    %v381 = vpow.pop %v380
    %v382 = vmul.f32 %v354, 1.442695
    %v383 = vpow.pop %v382
    %v384 = vmul.f32 %v355, 1.442695
    %v385 = vpow.pop %v384
    %v386 = vmul.f32 %v356, 1.442695
    %v387 = vpow.pop %v386
    %v388 = vmul.f32 %v357, 1.442695
    %v389 = vpow.pop %v388
    %v390 = vadd.f32 %v359, 1.0
    %v391 = vadd.f32 %v361, 1.0
    %v392 = vadd.f32 %v363, 1.0
    %v393 = vadd.f32 %v365, 1.0
    %v394 = vadd.f32 %v367, 1.0
    %v395 = vadd.f32 %v369, 1.0
    %v396 = vadd.f32 %v371, 1.0
    %v397 = vadd.f32 %v373, 1.0
    %v398 = vadd.f32 %v375, 1.0
    %v399 = vadd.f32 %v377, 1.0
    %v400 = vadd.f32 %v379, 1.0
    %v401 = vadd.f32 %v381, 1.0
    %v402 = vadd.f32 %v383, 1.0
    %v403 = vadd.f32 %v385, 1.0
    %v404 = vadd.f32 %v387, 1.0
    %v405 = vadd.f32 %v389, 1.0
    %v406 = vrcp.pop %v390
    %v407 = vmul.f32 1.0, %v406
    %v408 = vrcp.pop %v391
    %v409 = vmul.f32 1.0, %v408
    %v410 = vrcp.pop %v392
    %v411 = vmul.f32 1.0, %v410
    %v412 = vrcp.pop %v393
    %v413 = vmul.f32 1.0, %v412
    %v414 = vrcp.pop %v394
    %v415 = vmul.f32 1.0, %v414
    %v416 = vrcp.pop %v395
    %v417 = vmul.f32 1.0, %v416
    %v418 = vrcp.pop %v396
    %v419 = vmul.f32 1.0, %v418
    %v420 = vrcp.pop %v397
    %v421 = vmul.f32 1.0, %v420
    %v422 = vrcp.pop %v398
    %v423 = vmul.f32 1.0, %v422
    %v424 = vrcp.pop %v399
    %v425 = vmul.f32 1.0, %v424
    %v426 = vrcp.pop %v400
    %v427 = vmul.f32 1.0, %v426
    %v428 = vrcp.pop %v401
    %v429 = vmul.f32 1.0, %v428
    %v430 = vrcp.pop %v402
    %v431 = vmul.f32 1.0, %v430
    %v432 = vrcp.pop %v403
    %v433 = vmul.f32 1.0, %v432
    %v434 = vrcp.pop %v404
    %v435 = vmul.f32 1.0, %v434
    %v436 = vrcp.pop %v405
    %v437 = vmul.f32 1.0, %v436
    %v438 = vmul.f32 %v326, %v407
    %v439 = vmul.f32 %v327, %v409
    %v440 = vmul.f32 %v328, %v411
    %v441 = vmul.f32 %v329, %v413
    %v442 = vmul.f32 %v330, %v415
    %v443 = vmul.f32 %v331, %v417
    %v444 = vmul.f32 %v332, %v419
    %v445 = vmul.f32 %v333, %v421
    %v446 = vmul.f32 %v334, %v423
    %v447 = vmul.f32 %v335, %v425
    %v448 = vmul.f32 %v336, %v427
    %v449 = vmul.f32 %v337, %v429
    %v450 = vmul.f32 %v338, %v431
    %v451 = vmul.f32 %v339, %v433
    %v452 = vmul.f32 %v340, %v435
    %v453 = vmul.f32 %v341, %v437
    %v454 = vmul.f32 %v294, %v438
    %v455 = vmul.f32 %v295, %v439
    %v456 = vmul.f32 %v296, %v440
    %v457 = vmul.f32 %v297, %v441
    %v458 = vmul.f32 %v298, %v442
    %v459 = vmul.f32 %v299, %v443
    %v460 = vmul.f32 %v300, %v444
    %v461 = vmul.f32 %v301, %v445
    %v462 = vmul.f32 %v302, %v446
    %v463 = vmul.f32 %v303, %v447
    %v464 = vmul.f32 %v304, %v448
    %v465 = vmul.f32 %v305, %v449
    %v466 = vmul.f32 %v306, %v450
    %v467 = vmul.f32 %v307, %v451
    %v468 = vmul.f32 %v308, %v452
    %v469 = vmul.f32 %v309, %v453
    %v470 = vpack.c.bf16 %v455, %v454
    %v471 = vpack.c.bf16 %v457, %v456
    %v472 = vpack.c.bf16 %v459, %v458
    %v473 = vpack.c.bf16 %v461, %v460
    %v474 = vpack.c.bf16 %v463, %v462
    %v475 = vpack.c.bf16 %v465, %v464
    %v476 = vpack.c.bf16 %v467, %v466
    %v477 = vpack.c.bf16 %v469, %v468
    %v478 = vld [vmem:[%s4] sm:$0xf]
    %v479 = vld [vmem:[%s4 + $0x4] sm:$0xf]
    %v480 = vld [vmem:[%s4 + $0x8] sm:$0xf]
    %v481 = vld [vmem:[%s4 + $0xc] sm:$0xf]
    %v486 = vunpack.c.l.b16 %v478
    %v487 = vunpack.c.l.b16 %v479
    %v488 = vunpack.c.l.b16 %v480
    %v489 = vunpack.c.l.b16 %v481
    %v490 = vpack.c.b16 %v487, %v486
    %v491 = vpack.c.b16 %v489, %v488
    %v495 = vsel %vm54, %v470, 0
    %v498 = vsel %vm54, %v471, 0
    %v501 = vsel %vm54, %v472, 0
    %v504 = vsel %vm54, %v473, 0
    %v507 = vsel %vm54, %v474, 0
    %v510 = vsel %vm54, %v475, 0
    %v513 = vsel %vm54, %v476, 0
    %v516 = vsel %vm54, %v477, 0
    %518 = vmatprep.subr.bf16.mxu0 0
    %519 = vmatpush1.bf16.msra.mxu0 %v490
    %520 = vmatprep.subr.bf16.mxu0 0
    %521 = vmatpush1.bf16.msra.mxu0 %v491
    %522 = vmatprep.subr.bf16.mxu0 0
    %523 = vmatpush1.bf16.msra.mxu0 0
    %524 = vmatprep.subr.bf16.mxu0 0
    %525 = vmatpush1.bf16.msra.mxu0 0
    %526 = vmatprep.subr.bf16.mxu0 0
    %527 = vmatpush1.bf16.msra.mxu0 0
    %528 = vmatprep.subr.bf16.mxu0 0
    %529 = vmatpush1.bf16.msra.mxu0 0
    %530 = vmatprep.subr.bf16.mxu0 0
    %531 = vmatpush1.bf16.msra.mxu0 0
    %532 = vmatprep.subr.bf16.mxu0 0
    %533 = vmatpush1.bf16.msra.mxu0 0
    %534 = vmatprep.subr.bf16.mxu0 0
    %535 = vmatpush1.bf16.msra.mxu0 0
    %536 = vmatprep.subr.bf16.mxu0 0
    %537 = vmatpush1.bf16.msra.mxu0 0
    %538 = vmatprep.subr.bf16.mxu0 0
    %539 = vmatpush1.bf16.msra.mxu0 0
    %540 = vmatprep.subr.bf16.mxu0 0
    %541 = vmatpush1.bf16.msra.mxu0 0
    %542 = vmatprep.subr.bf16.mxu0 0
    %543 = vmatpush1.bf16.msra.mxu0 0
    %544 = vmatprep.subr.bf16.mxu0 0
    %545 = vmatpush1.bf16.msra.mxu0 0
    %546 = vmatprep.subr.bf16.mxu0 0
    %547 = vmatpush1.bf16.msra.mxu0 0
    %548 = vmatprep.subr.bf16.mxu0 0
    %549 = vmatpush1.bf16.msra.mxu0 0
    %550 = vmatprep.mubr.bf16.mxu0 0
    %551 = vmatmul.mubr.bf16.gmra.mrb[0].mxu0 %v495
    %v552 = vpop.f32.mrb[0].mxu0
    %v553 = vadd.f32 0.0, %v552
    %v554 = vpop.f32.mrb[0].mxu0
    %v555 = vpop.f32.mrb[0].mxu0
    %v556 = vadd.f32 0.0, %v555
    %v557 = vpop.f32.mrb[0].mxu0
    %558 = vmatprep.mubr.bf16.mxu0 0
    %559 = vmatmul.mubr.bf16.gmra.mrb[0].mxu0 %v498
    %v560 = vpop.f32.mrb[0].mxu0
    %v561 = vadd.f32 0.0, %v560
    %v562 = vpop.f32.mrb[0].mxu0
    %v563 = vpop.f32.mrb[0].mxu0
    %v564 = vadd.f32 0.0, %v563
    %v565 = vpop.f32.mrb[0].mxu0
    %566 = vmatprep.mubr.bf16.mxu0 0
    %567 = vmatmul.mubr.bf16.gmra.mrb[0].mxu0 %v501
    %v568 = vpop.f32.mrb[0].mxu0
    %v569 = vadd.f32 0.0, %v568
    %v570 = vpop.f32.mrb[0].mxu0
    %v571 = vpop.f32.mrb[0].mxu0
    %v572 = vadd.f32 0.0, %v571
    %v573 = vpop.f32.mrb[0].mxu0
    %574 = vmatprep.mubr.bf16.mxu0 0
    %575 = vmatmul.mubr.bf16.gmra.mrb[0].mxu0 %v504
    %v576 = vpop.f32.mrb[0].mxu0
    %v577 = vadd.f32 0.0, %v576
    %v578 = vpop.f32.mrb[0].mxu0
    %v579 = vpop.f32.mrb[0].mxu0
    %v580 = vadd.f32 0.0, %v579
    %v581 = vpop.f32.mrb[0].mxu0
    %582 = vmatprep.mubr.bf16.mxu0 0
    %583 = vmatmul.mubr.bf16.gmra.mrb[0].mxu0 %v507
    %v584 = vpop.f32.mrb[0].mxu0
    %v585 = vadd.f32 0.0, %v584
    %v586 = vpop.f32.mrb[0].mxu0
    %v587 = vpop.f32.mrb[0].mxu0
    %v588 = vadd.f32 0.0, %v587
    %v589 = vpop.f32.mrb[0].mxu0
    %590 = vmatprep.mubr.bf16.mxu0 0
    %591 = vmatmul.mubr.bf16.gmra.mrb[0].mxu0 %v510
    %v592 = vpop.f32.mrb[0].mxu0
    %v593 = vadd.f32 0.0, %v592
    %v594 = vpop.f32.mrb[0].mxu0
    %v595 = vpop.f32.mrb[0].mxu0
    %v596 = vadd.f32 0.0, %v595
    %v597 = vpop.f32.mrb[0].mxu0
    %598 = vmatprep.mubr.bf16.mxu0 0
    %599 = vmatmul.mubr.bf16.gmra.mrb[0].mxu0 %v513
    %v600 = vpop.f32.mrb[0].mxu0
    %v601 = vadd.f32 0.0, %v600
    %v602 = vpop.f32.mrb[0].mxu0
    %v603 = vpop.f32.mrb[0].mxu0
    %v604 = vadd.f32 0.0, %v603
    %v605 = vpop.f32.mrb[0].mxu0
    %606 = vmatprep.mubr.bf16.mxu0 0
    %607 = vmatmul.mubr.bf16.gmra.mrb[0].mxu0 %v516
    %v608 = vpop.f32.mrb[0].mxu0
    %v609 = vadd.f32 0.0, %v608
    %v610 = vpop.f32.mrb[0].mxu0
    %v611 = vpop.f32.mrb[0].mxu0
    %v612 = vadd.f32 0.0, %v611
    %v613 = vpop.f32.mrb[0].mxu0
    %614 = vdwg.mxu0
    %vm615 = vcmask 130048
    %616 = vst.msk [vmem:[#allocation2] sm:$0xff] %vm615, %v553
    %617 = vst.msk [vmem:[#allocation2 + $0x8] sm:$0xff] %vm615, %v556
    %618 = vst.msk [vmem:[#allocation2 + $0x10] sm:$0xff] %vm615, %v561
    %619 = vst.msk [vmem:[#allocation2 + $0x18] sm:$0xff] %vm615, %v564
    %620 = vst.msk [vmem:[#allocation2 + $0x20] sm:$0xff] %vm615, %v569
    %621 = vst.msk [vmem:[#allocation2 + $0x28] sm:$0xff] %vm615, %v572
    %622 = vst.msk [vmem:[#allocation2 + $0x30] sm:$0xff] %vm615, %v577
    %623 = vst.msk [vmem:[#allocation2 + $0x38] sm:$0xff] %vm615, %v580
    %624 = vst.msk [vmem:[#allocation2 + $0x40] sm:$0xff] %vm615, %v585
    %625 = vst.msk [vmem:[#allocation2 + $0x48] sm:$0xff] %vm615, %v588
    %626 = vst.msk [vmem:[#allocation2 + $0x50] sm:$0xff] %vm615, %v593
    %627 = vst.msk [vmem:[#allocation2 + $0x58] sm:$0xff] %vm615, %v596
    %628 = vst.msk [vmem:[#allocation2 + $0x60] sm:$0xff] %vm615, %v601
    %629 = vst.msk [vmem:[#allocation2 + $0x68] sm:$0xff] %vm615, %v604
    %630 = vst.msk [vmem:[#allocation2 + $0x70] sm:$0xff] %vm615, %v609
    %631 = vst.msk [vmem:[#allocation2 + $0x78] sm:$0xff] %vm615, %v612
    // Predicated region
    $region22: #{ss2d_forward.7} parent=1 // pred_check
      _
    $region23: #{ss2d_forward.7} parent=1 // pred_check_branch
      %633 = sbr.rel (0) target = $region25
    $region24: #{ss2d_forward.7} parent=1 // pred_region
      %s635 = ssub.s32 2048, 2048
      %636 = vsyncadd [#allocation3], %s635
      %s637 = sshll.u32 [#allocation2], 4
      %s638 = int_to_ptr.vmem [resolvable:$true] %s637
      %643 = dma.vmem_to_hbm [thread:$0]  %s638, 2048, %s5, [#allocation3], 128, 128, 8
    $region25: #{ss2d_forward.7} parent=1 // pred_fallthru
      _
    // Predicated region
    $region26: #{ss2d_forward.7} parent=1 // pred_check
      _
    $region27: #{ss2d_forward.7} parent=1 // pred_check_branch
      %645 = sbr.rel (0) target = $region29
    $region28: #{ss2d_forward.7} parent=1 // pred_region
      %646 = dma.done [#allocation3], 2048
    $region29: #{ss2d_forward.7} parent=1 // pred_fallthru
      _
    %647 = vsyncpa [#allocation3], 1

</llo_original>
